<compile_context>
chip_gen: v6e
topology: v6e:2x2x1
jax: 0.10.0
libtpu: 0.0.40
codegen_flags: <defaults>
</compile_context>

<pallas_src>
import functools

import jax
import jax.numpy as jnp
from jax.experimental import pallas as pl
from jax.experimental.pallas import tpu as pltpu

ROW_TILE = 512  # row tile for the (rowwise) mem-bound kernels when M is large

_PAR1 = pltpu.CompilerParams(dimension_semantics=("parallel",))


def _row_grid(M):
    """Single block for small M, otherwise 512-row tiles (partial last block is fine for
    rowwise kernels — no wrapper pad / slice passes)."""
    if M <= ROW_TILE:
        return M, 1
    return ROW_TILE, pl.cdiv(M, ROW_TILE)


# ----------------------------- small rowwise kernels ------------------------------------

def _layernorm_kernel(x_ref, g_ref, b_ref, o_ref, *, eps):
    x = x_ref[...].astype(jnp.float32)
    mu = jnp.mean(x, axis=-1, keepdims=True)
    var = jnp.mean(jnp.square(x - mu), axis=-1, keepdims=True)
    y = (x - mu) * jax.lax.rsqrt(var + eps)
    o_ref[...] = (y * g_ref[...] + b_ref[...]).astype(o_ref.dtype)


def pallas_layernorm(x, gamma, beta, eps):
    M, E = x.shape
    tm, nt = _row_grid(M)
    return pl.pallas_call(
        functools.partial(_layernorm_kernel, eps=eps),
        out_shape=jax.ShapeDtypeStruct((M, E), jnp.float32),
        grid=(nt,),
        in_specs=[pl.BlockSpec((tm, E), lambda i: (i, 0)),
                  pl.BlockSpec((1, E), lambda i: (0, 0)),
                  pl.BlockSpec((1, E), lambda i: (0, 0))],
        out_specs=pl.BlockSpec((tm, E), lambda i: (i, 0)),
        compiler_params=_PAR1,
    )(x, gamma.reshape(1, E), beta.reshape(1, E))


def _ln_linear_kernel(x_ref, g_ref, b_ref, w_ref, bias_ref, o_ref, *, eps):
    """Fused LayerNorm + matmul (+bias).  Used for the prediction head."""
    x = x_ref[...].astype(jnp.float32)
    mu = jnp.mean(x, axis=-1, keepdims=True)
    var = jnp.mean(jnp.square(x - mu), axis=-1, keepdims=True)
    xn = (x - mu) * jax.lax.rsqrt(var + eps) * g_ref[...] + b_ref[...]
    y = jnp.dot(xn.astype(w_ref.dtype), w_ref[...], preferred_element_type=jnp.float32)
    o_ref[...] = (y + bias_ref[...]).astype(o_ref.dtype)


def pallas_ln_linear(x, gamma, beta, w, bias, eps):
    M, K = x.shape
    N = w.shape[1]
    tm, nt = _row_grid(M)
    return pl.pallas_call(
        functools.partial(_ln_linear_kernel, eps=eps),
        out_shape=jax.ShapeDtypeStruct((M, N), jnp.float32),
        grid=(nt,),
        in_specs=[pl.BlockSpec((tm, K), lambda i: (i, 0)),
                  pl.BlockSpec((1, K), lambda i: (0, 0)),
                  pl.BlockSpec((1, K), lambda i: (0, 0)),
                  pl.BlockSpec((K, N), lambda i: (0, 0)),
                  pl.BlockSpec((1, N), lambda i: (0, 0))],
        out_specs=pl.BlockSpec((tm, N), lambda i: (i, 0)),
        compiler_params=_PAR1,
    )(x, gamma.reshape(1, K), beta.reshape(1, K), w, bias.reshape(1, N))


# ----------------------------- fused GAT layer kernel ------------------------------------

def _gat_layer_kernel(x_ref, m_ref, w_ref, b_ref, asrc_ref, adst_ref, o_ref):
    """One GAT layer, fully fused: Wh, leaky-relu scores, masked softmax, aggregation, ELU."""
    x = x_ref[...].astype(jnp.float32)                                   # [S, E]
    wh = jnp.dot(x.astype(w_ref.dtype), w_ref[...],
                 preferred_element_type=jnp.float32) + b_ref[...]        # [S, E]
    whb = wh.astype(jnp.bfloat16)
    e_src = jnp.dot(whb, asrc_ref[...], preferred_element_type=jnp.float32)   # [S, 1]
    # [1,E] x [S,E]^T -> [1,S] (trans_b matmul; avoids an in-kernel transpose)
    e_dst = jnp.einsum('oe,se->os', adst_ref[...], whb,
                       preferred_element_type=jnp.float32)                    # [1, S]
    e = e_src + e_dst                                                         # [S, S]
    e = jnp.where(e > 0, e, 0.2 * e) + m_ref[...].astype(jnp.float32)
    e = e - jnp.max(e, axis=-1, keepdims=True)
    p = jnp.exp(e)
    alpha = p * pl.reciprocal(jnp.sum(p, axis=-1, keepdims=True), approx=True)
    h = jnp.dot(alpha.astype(jnp.bfloat16), whb, preferred_element_type=jnp.float32)
    o_ref[...] = jnp.where(h > 0, h, jnp.exp(h) - 1.0).astype(o_ref.dtype)    # ELU


def pallas_gat_layer(x, mask2d, W, b, a_src, a_dst):
    N, S, E = x.shape
    return pl.pallas_call(
        _gat_layer_kernel,
        out_shape=jax.ShapeDtypeStruct((N, S, E), jnp.float32),
        grid=(N,),
        in_specs=[pl.BlockSpec((None, S, E), lambda n: (n, 0, 0)),
                  pl.BlockSpec((None, S, S), lambda n: (n, 0, 0)),
                  pl.BlockSpec((E, E), lambda n: (0, 0)),
                  pl.BlockSpec((1, E), lambda n: (0, 0)),
                  pl.BlockSpec((E, 1), lambda n: (0, 0)),
                  pl.BlockSpec((1, E), lambda n: (0, 0))],
        out_specs=pl.BlockSpec((None, S, E), lambda n: (n, 0, 0)),
        compiler_params=_PAR1,
    )(x, mask2d, W, b, a_src, a_dst)


def gat_attention(layer_params, inp, mask2d, pos):
    """Masked GAT stack + mask-weighted pooling.  inp: [N,S,E], mask2d: [N,S,S], pos: [N,S,1]."""
    h = inp
    for lp in layer_params:
        h = pallas_gat_layer(h, mask2d, lp['W'], lp['b'], lp['a_src'], lp['a_dst'])
    denom = jnp.maximum(jnp.sum(pos, axis=1), 1.0)
    return jnp.sum(h * pos, axis=1) / denom                                   # [N, E]


# ----------------------------- fused encoder kernel --------------------------------------

def _encoder_layer_kernel(x_ref, m_ref, eo_ref,
                          lag_ref, lab_ref, wqkv_ref, bqkv_ref, wo_ref, bo_ref,
                          lfg_ref, lfb_ref, w1_ref, b1_ref, w2_ref, b2_ref,
                          ekbd_ref, evbd_ref, pg_ref, pb_ref,
                          o_ref, carry,
                          *, n_head, n_edge, eps):
    """One grid step = one (batch element, layer).  The activation stays resident in the
    `carry` VMEM scratch across the (arbitrary) layer axis; output is written only at the
    last layer after the final post-LN."""
    l = pl.program_id(1)
    S, E = carry.shape
    Dh = E // n_head
    scale = Dh ** -0.5

    @pl.when(l == 0)
    def _():
        carry[...] = x_ref[...].astype(jnp.float32)

    x = carry[...]

    # ---- pre-LN + fused QKV projection (single [E, 3E] MXU call) ----
    mu = jnp.mean(x, axis=-1, keepdims=True)
    var = jnp.mean(jnp.square(x - mu), axis=-1, keepdims=True)
    xn = (x - mu) * jax.lax.rsqrt(var + eps) * lag_ref[...] + lab_ref[...]
    qkv = jnp.dot(xn.astype(wqkv_ref.dtype), wqkv_ref[...],
                  preferred_element_type=jnp.float32) + bqkv_ref[...]
    q = qkv[:, :E]
    k = qkv[:, E:2 * E]
    v = qkv[:, 2 * E:]

    # edge-key scores for ALL heads in one block-diagonal MXU call: [S, H*n_edge]
    edge_scores = jnp.dot(q.astype(jnp.bfloat16), ekbd_ref[...],
                          preferred_element_type=jnp.float32)

    mask = m_ref[...].astype(jnp.float32)          # [S, S] additive, shared across heads
    oneh = eo_ref[...].astype(jnp.float32)         # [n_edge, S, S] edge-masked one-hot

    ctx_heads = []
    pmass_heads = []
    for h in range(n_head):                        # static unroll; heads on the lane axis
        lo = h * Dh
        qh = q[:, lo:lo + Dh].astype(jnp.bfloat16)
        kh = k[:, lo:lo + Dh].astype(jnp.bfloat16)
        vh = v[:, lo:lo + Dh].astype(jnp.bfloat16)
        s_qk = jnp.einsum('sd,td->st', qh, kh, preferred_element_type=jnp.float32)
        es_h = edge_scores[:, h * n_edge:(h + 1) * n_edge]                 # [S, n_edge]
        # gather edge-key score by label via the masked one-hot (n_edge is tiny)
        e_k = jnp.zeros((S, S), jnp.float32)
        for e in range(n_edge):
            e_k = e_k + oneh[e] * es_h[:, e][:, None]
        sc = (s_qk + e_k) * scale + mask
        sc = sc - jnp.max(sc, axis=-1, keepdims=True)
        p = jnp.exp(sc)
        p = p * pl.reciprocal(jnp.sum(p, axis=-1, keepdims=True), approx=True)
        ctx_heads.append(jnp.einsum('st,td->sd', p.astype(jnp.bfloat16), vh,
                                    preferred_element_type=jnp.float32))
        # per-edge-class probability mass [S, n_edge] (drives the factored value bias)
        pmass_heads.append(jnp.concatenate(
            [jnp.sum(p * oneh[e], axis=-1, keepdims=True) for e in range(n_edge)], axis=-1))

    ctx_all = jnp.concatenate(ctx_heads, axis=-1)                          # [S, E]
    pmass_all = jnp.concatenate(pmass_heads, axis=-1)                      # [S, H*n_edge]
    # edge-value bias for ALL heads in one block-diagonal MXU call
    ctx_all = ctx_all + jnp.dot(pmass_all.astype(jnp.bfloat16), evbd_ref[...],
                                preferred_element_type=jnp.float32)

    # ---- output projection + residual ----
    x = x + jnp.dot(ctx_all.astype(wo_ref.dtype), wo_ref[...],
                    preferred_element_type=jnp.float32) + bo_ref[...]

    # ---- pre-LN FFN + residual ----
    mu = jnp.mean(x, axis=-1, keepdims=True)
    var = jnp.mean(jnp.square(x - mu), axis=-1, keepdims=True)
    xn = (x - mu) * jax.lax.rsqrt(var + eps) * lfg_ref[...] + lfb_ref[...]
    hh = jnp.dot(xn.astype(w1_ref.dtype), w1_ref[...],
                 preferred_element_type=jnp.float32) + b1_ref[...]
    # TODO(synk): encoder class body not in the reference file; tanh-approx GELU used here.
    hh = 0.5 * hh * (1.0 + jnp.tanh(0.7978845608028654 * (hh + 0.044715 * hh * hh * hh)))
    x = x + jnp.dot(hh.astype(w2_ref.dtype), w2_ref[...],
                    preferred_element_type=jnp.float32) + b2_ref[...]

    carry[...] = x

    @pl.when(l == pl.num_programs(1) - 1)
    def _():
        mu2 = jnp.mean(x, axis=-1, keepdims=True)
        var2 = jnp.mean(jnp.square(x - mu2), axis=-1, keepdims=True)
        y = (x - mu2) * jax.lax.rsqrt(var2 + eps) * pg_ref[...] + pb_ref[...]
        o_ref[...] = y.astype(o_ref.dtype)


# ----------------------------- parameters ------------------------------------------------

def init_params(key, cfg):
    E = cfg['hidden_size']
    I = cfg['intermediate_size']
    Dh = E // cfg['num_attention_heads']
    keys = iter(jax.random.split(key, 256))

    def nrm(shape, scale=0.02):
        return scale * jax.random.normal(next(keys), shape, dtype=jnp.float32)

    params = {
        'node_embedding': nrm((cfg['vocab_size'], E)),
        'edge_embedding_k': nrm((cfg['num_edges'], Dh)),
        'edge_embedding_v': nrm((cfg['num_edges'], Dh)),
        'ln1_g': jnp.ones((E,), jnp.float32), 'ln1_b': jnp.zeros((E,), jnp.float32),
        'ln2_g': jnp.ones((E,), jnp.float32), 'ln2_b': jnp.zeros((E,), jnp.float32),
        'fc2_bias': jnp.zeros((cfg['num_relations'],), jnp.float32),
        'fc3_bias': jnp.zeros((cfg['num_types'],), jnp.float32),
        'enc_post_ln_g': jnp.ones((E,), jnp.float32),
        'enc_post_ln_b': jnp.zeros((E,), jnp.float32),
    }
    layers = []
    for _ in range(cfg['self_attention_layers']):
        layers.append(dict(
            wq=nrm((E, E)), bq=jnp.zeros((E,), jnp.float32),
            wk=nrm((E, E)), bk=jnp.zeros((E,), jnp.float32),
            wv=nrm((E, E)), bv=jnp.zeros((E,), jnp.float32),
            wo=nrm((E, E)), bo=jnp.zeros((E,), jnp.float32),
            ln_attn_g=jnp.ones((E,), jnp.float32), ln_attn_b=jnp.zeros((E,), jnp.float32),
            ln_ffn_g=jnp.ones((E,), jnp.float32), ln_ffn_b=jnp.zeros((E,), jnp.float32),
            w1=nrm((E, I)), b1=jnp.zeros((I,), jnp.float32),
            w2=nrm((I, E)), b2=jnp.zeros((E,), jnp.float32),
        ))
    params['enc_layers'] = layers

    def gat_params(n_layers):
        return [dict(W=nrm((E, E)), b=jnp.zeros((E,), jnp.float32),
                     a_src=nrm((E,)), a_dst=nrm((E,))) for _ in range(n_layers)]

    params['gat1'] = gat_params(cfg['gat_layers'])
    params['gat2'] = gat_params(cfg['gat_layers'])
    return params


def prepare_params(raw, cfg):
    """Build fused / stacked / bf16 weight forms once, outside the per-step path."""
    E = cfg['hidden_size']
    Iw = cfg['intermediate_size']
    H = cfg['num_attention_heads']
    n_rel = cfg['num_relations']
    n_type = cfg['num_types']
    voc_size = cfg['vocab_size'] - n_type
    layers = raw['enc_layers']
    L = len(layers)

    p = {k: raw[k] for k in ('node_embedding', 'ln1_g', 'ln1_b', 'ln2_g', 'ln2_b')}

    def stk(f):
        return jnp.stack([f(lp) for lp in layers])

    p['enc_stack'] = dict(
        ln_attn_g=stk(lambda lp: lp['ln_attn_g']).reshape(L, 1, E),
        ln_attn_b=stk(lambda lp: lp['ln_attn_b']).reshape(L, 1, E),
        w_qkv=stk(lambda lp: jnp.concatenate([lp['wq'], lp['wk'], lp['wv']],
                                             axis=1)).astype(jnp.bfloat16),
        b_qkv=stk(lambda lp: jnp.concatenate([lp['bq'], lp['bk'], lp['bv']])).reshape(L, 1, 3 * E),
        wo=stk(lambda lp: lp['wo']).astype(jnp.bfloat16),
        bo=stk(lambda lp: lp['bo']).reshape(L, 1, E),
        ln_ffn_g=stk(lambda lp: lp['ln_ffn_g']).reshape(L, 1, E),
        ln_ffn_b=stk(lambda lp: lp['ln_ffn_b']).reshape(L, 1, E),
        w1=stk(lambda lp: lp['w1']).astype(jnp.bfloat16),
        b1=stk(lambda lp: lp['b1']).reshape(L, 1, Iw),
        w2=stk(lambda lp: lp['w2']).astype(jnp.bfloat16),
        b2=stk(lambda lp: lp['b2']).reshape(L, 1, E),
        # block-diagonal edge tables: one MXU call covers every head's edge score / value bias
        ek_bd=jnp.kron(jnp.eye(H, dtype=jnp.float32),
                       raw['edge_embedding_k'].T).astype(jnp.bfloat16),        # [E, H*n_edge]
        ev_bd=jnp.kron(jnp.eye(H, dtype=jnp.float32),
                       raw['edge_embedding_v']).astype(jnp.bfloat16),          # [H*n_edge, E]
        post_g=raw['enc_post_ln_g'].reshape(1, E),
        post_b=raw['enc_post_ln_b'].reshape(1, E),
    )

    # prediction head: LN(1e-7) + one [E, n_rel+n_type] matmul (rel logits | type logits)
    node_emb = raw['node_embedding']
    w_head = jnp.concatenate([node_emb[3:3 + n_rel, :],
                              node_emb[voc_size:cfg['vocab_size'], :]], axis=0).T
    p['w_head'] = w_head.astype(jnp.bfloat16)
    p['b_head'] = jnp.concatenate([raw['fc2_bias'], raw['fc3_bias']])

    for name in ('gat1', 'gat2'):
        p[name] = [dict(W=lp['W'].astype(jnp.bfloat16),
                        b=lp['b'].reshape(1, E),
                        a_src=lp['a_src'].reshape(E, 1).astype(jnp.bfloat16),
                        a_dst=lp['a_dst'].reshape(1, E).astype(jnp.bfloat16))
                   for lp in raw[name]]
    return p


# ----------------------------- jitted forward --------------------------------------------

def make_helios_forward(cfg):
    E = cfg['hidden_size']
    I = cfg['intermediate_size']
    H = cfg['num_attention_heads']
    L = cfg['self_attention_layers']
    n_rel = cfg['num_relations']
    n_type = cfg['num_types']
    n_edge = cfg['num_edges']
    spars = cfg['sparsifier']
    ma = cfg['max_arity']

    def encoder_fwd(params, x, attn_mask, edge_onehot):
        """Whole encoder (all layers + post-LN) in one pallas_call; grid (B 'parallel', L 'arbitrary')."""
        B, S, _ = x.shape
        ep = params['enc_stack']
        return pl.pallas_call(
            functools.partial(_encoder_layer_kernel, n_head=H, n_edge=n_edge, eps=1e-12),
            out_shape=jax.ShapeDtypeStruct((B, S, E), jnp.float32),
            grid=(B, L),
            in_specs=[
                pl.BlockSpec((None, S, E), lambda b, l: (b, 0, 0)),          # x
                pl.BlockSpec((None, S, S), lambda b, l: (b, 0, 0)),          # attn mask
                pl.BlockSpec((None, n_edge, S, S), lambda b, l: (b, 0, 0, 0)),  # edge one-hot
                pl.BlockSpec((None, 1, E), lambda b, l: (l, 0, 0)),          # ln_attn_g
                pl.BlockSpec((None, 1, E), lambda b, l: (l, 0, 0)),          # ln_attn_b
                pl.BlockSpec((None, E, 3 * E), lambda b, l: (l, 0, 0)),      # w_qkv
                pl.BlockSpec((None, 1, 3 * E), lambda b, l: (l, 0, 0)),      # b_qkv
                pl.BlockSpec((None, E, E), lambda b, l: (l, 0, 0)),          # wo
                pl.BlockSpec((None, 1, E), lambda b, l: (l, 0, 0)),          # bo
                pl.BlockSpec((None, 1, E), lambda b, l: (l, 0, 0)),          # ln_ffn_g
                pl.BlockSpec((None, 1, E), lambda b, l: (l, 0, 0)),          # ln_ffn_b
                pl.BlockSpec((None, E, I), lambda b, l: (l, 0, 0)),          # w1
                pl.BlockSpec((None, 1, I), lambda b, l: (l, 0, 0)),          # b1
                pl.BlockSpec((None, I, E), lambda b, l: (l, 0, 0)),          # w2
                pl.BlockSpec((None, 1, E), lambda b, l: (l, 0, 0)),          # b2
                pl.BlockSpec((E, H * n_edge), lambda b, l: (0, 0)),          # ek_bd
                pl.BlockSpec((H * n_edge, E), lambda b, l: (0, 0)),          # ev_bd
                pl.BlockSpec((1, E), lambda b, l: (0, 0)),                   # post ln g
                pl.BlockSpec((1, E), lambda b, l: (0, 0)),                   # post ln b
            ],
            out_specs=pl.BlockSpec((None, S, E), lambda b, l: (b, 0, 0)),
            scratch_shapes=[pltpu.VMEM((S, E), jnp.float32)],
            compiler_params=pltpu.CompilerParams(
                dimension_semantics=("parallel", "arbitrary")),
        )(x, attn_mask, edge_onehot,
          ep['ln_attn_g'], ep['ln_attn_b'], ep['w_qkv'], ep['b_qkv'],
          ep['wo'], ep['bo'], ep['ln_ffn_g'], ep['ln_ffn_b'],
          ep['w1'], ep['b1'], ep['w2'], ep['b2'],
          ep['ek_bd'], ep['ev_bd'], ep['post_g'], ep['post_b'])

    @jax.jit
    def fwd(params, input_ids, input_mask, edge_labels, mask_pos, mask_label,
            mask_type, ent_types, ground_truth, type_attn_l2_matrix):
        del mask_label  # unused by the reference forward as well
        B, S = input_ids.shape
        node_emb = params['node_embedding']

        emb_out = node_emb[input_ids]                                            # [B, S, E]
        emb_out = pallas_layernorm(emb_out.reshape(B * S, E),
                                   params['ln1_g'], params['ln1_b'], 1e-12).reshape(B, S, E)
        # dropout -> identity (inference)

        # ---- GAT over per-entity type neighbourhoods -------------------------------------
        type_matrix = jnp.concatenate([
            jnp.zeros((1, spars), ent_types.dtype),
            jnp.ones((1, spars), ent_types.dtype),
            jnp.full((1, spars), 2, ent_types.dtype),
            ent_types[:, 1:]], axis=0)

        input_type_ids = input_ids[:, 0::2] - n_rel                              # [B, ma]
        input_type_tmp = type_matrix[input_type_ids.reshape(-1)]                 # [B*ma, spars]
        h_sign = jnp.sign(input_type_tmp).astype(jnp.float32)[:, :, None]
        pos = h_sign
        gat_mask = 1e6 * (jnp.matmul(h_sign, jnp.swapaxes(h_sign, 1, 2)) - 1.0)  # [B*ma, spars, spars]
        input_type = node_emb[input_type_tmp]                                    # [B*ma, spars, E]

        type_attn_output = gat_attention(params['gat1'], input_type, gat_mask, pos)
        type_attn_output = type_attn_output.reshape(B, ma, E)

        rep = jnp.repeat(type_attn_output[:, None, :, :], ma, axis=1).reshape(B * ma, ma, E)
        l2 = jnp.tile(type_attn_l2_matrix[None, :, :], (B, 1, 1)).reshape(B * ma, ma - 1)
        gathered = rep[jnp.arange(B * ma)[:, None], l2, :]                        # [B*ma, ma-1, E]
        type_attn_output_tmp = jnp.abs(jnp.sum(gathered, axis=2))                 # [B*ma, ma-1]
        gat2_in = jnp.concatenate([input_type, gathered], axis=1)                 # [B*ma, spars+ma-1, E]
        sel2 = jnp.concatenate([input_type_tmp.astype(jnp.float32),
                                type_attn_output_tmp], axis=1)
        h_sign2 = jnp.sign(sel2).astype(jnp.float32)[:, :, None]
        pos2 = h_sign2
        gat_mask2 = 1e6 * (jnp.matmul(h_sign2, jnp.swapaxes(h_sign2, 1, 2)) - 1.0)

        type_attn_l2 = gat_attention(params['gat2'], gat2_in, gat_mask2, pos2).reshape(B, ma, E)

        emb_out = emb_out.at[:, 0::2, :].set(type_attn_l2)
        mask_matrix = jnp.where(mask_type == 1, 2, 1)
        emb_out = emb_out.at[jnp.arange(B), mask_pos, :].set(node_emb[mask_matrix])

        # ---- factored edge bias: only a [B, n_edge, S, S] masked one-hot is streamed ------
        edge_ids = jnp.arange(n_edge, dtype=edge_labels.dtype)
        edge_onehot = (edge_labels[:, None, :, :] ==
                       edge_ids[None, :, None, None]).astype(jnp.float32)
        edge_onehot = edge_onehot * jnp.sign(edge_labels).astype(jnp.float32)[:, None, :, :]

        im = input_mask.astype(jnp.float32)[:, :, None]
        attn_mask = 1e6 * (jnp.matmul(im, jnp.swapaxes(im, 1, 2)) - 1.0)          # [B, S, S]
        # mask is NOT repeated over heads; broadcast happens inside the fused kernel.

        enc_out = encoder_fwd(params, emb_out, attn_mask, edge_onehot)            # [B, S, E]

        h_masked = enc_out[jnp.arange(B), mask_pos, :]                            # [B, E]
        # torch.nn.GELU() default = exact erf GELU (kept in jitted glue for exactness)
        h_masked = 0.5 * h_masked * (1.0 + jax.lax.erf(h_masked * 0.7071067811865475))

        fc_cat = pallas_ln_linear(h_masked, params['ln2_g'], params['ln2_b'],
                                  params['w_head'], params['b_head'], eps=1e-7)
        fc_out2 = fc_cat[:, :n_rel]                                               # relation logits
        fc_out1 = fc_cat[:, n_rel:]                                               # type logits

        type_indicator = jnp.concatenate(
            [jnp.full((B, n_rel), -1.0, jnp.float32),
             jnp.full((B, n_type), 1.0, jnp.float32)], axis=1)
        type_indicator = jax.nn.relu(type_indicator * mask_type.astype(jnp.float32)[:, None])
        fc_out = fc_cat + 1e6 * (type_indicator - 1.0)

        # masked soft cross-entropy (jit-friendly replacement for the host index split)
        one_hot = ground_truth.astype(jnp.float32)
        r_lab = one_hot[:, :n_rel]
        t_lab = one_hot[:, n_rel:]
        r_lab = r_lab / jnp.maximum(jnp.sum(r_lab, axis=1, keepdims=True), 1e-9)
        t_lab = t_lab / jnp.maximum(jnp.sum(t_lab, axis=1, keepdims=True), 1e-9)
        ce_r = -jnp.sum(r_lab * jax.nn.log_softmax(fc_out2, axis=-1), axis=-1)
        ce_t = -jnp.sum(t_lab * jax.nn.log_softmax(fc_out1, axis=-1), axis=-1)
        is_rel = (mask_type == -1).astype(jnp.float32)
        is_type = (mask_type == 1).astype(jnp.float32)
        loss_r = jnp.sum(ce_r * is_rel) / jnp.maximum(jnp.sum(is_rel), 1.0)
        loss_t = jnp.sum(ce_t * is_type) / jnp.maximum(jnp.sum(is_type), 1.0)
        loss = loss_r + loss_t
        return loss, fc_out

    return fwd


# ----------------------------- driver -----------------------------------------------------

if __name__ == "__main__":
    cfg = dict(
        self_attention_layers=2, gat_layers=1, num_attention_heads=4,
        hidden_size=128, intermediate_size=256,
        hidden_dropout_prob=0.1, attention_dropout_prob=0.1,
        vocab_size=24, num_types=5, num_relations=6, num_edges=8,
        max_arity=3, sparsifier=4, device='tpu',
    )
    n_rel, n_type = cfg['num_relations'], cfg['num_types']
    num_entities = cfg['vocab_size'] - n_type - n_rel - 3          # 10
    seq_len = cfg['max_arity'] * 2 - 1                             # 5
    voc_size = cfg['vocab_size'] - n_type
    B, ma = 2, cfg['max_arity']

    key = jax.random.PRNGKey(0)
    pkey, dkey = jax.random.split(key)
    params = prepare_params(init_params(pkey, cfg), cfg)
    forward = make_helios_forward(cfg)

    k1, k2, k3, k4 = jax.random.split(dkey, 4)
    # vocab layout: [0,1,2 specials | 3..3+n_rel relations | entities | types at the end]
    ent_ids = jax.random.randint(k1, (B, ma), n_rel + 3, n_rel + 3 + num_entities)
    rel_ids = jax.random.randint(k2, (B, ma - 1), 3, 3 + n_rel)
    input_ids = jnp.zeros((B, seq_len), jnp.int32)
    input_ids = input_ids.at[:, 0::2].set(ent_ids).at[:, 1::2].set(rel_ids)

    input_mask = jnp.ones((B, seq_len), jnp.float32).at[1, seq_len - 1].set(0.0)
    edge_labels = jax.random.randint(k3, (B, seq_len, seq_len), 0, cfg['num_edges'])
    mask_pos = jnp.array([1, 2], jnp.int32)     # batch0 masks a relation slot, batch1 an entity slot
    mask_type = jnp.array([-1, 1], jnp.int32)
    mask_label = jnp.array([4, voc_size + 2], jnp.int32)

    # per-entity type id lists (column 0 is dropped by the forward); 0 = padding
    ent_types = jax.random.randint(k4, (num_entities, cfg['sparsifier'] + 1),
                                   voc_size, cfg['vocab_size']).astype(jnp.int32)
    ent_types = ent_types.at[:, -1].set(0)

    ground_truth = jnp.zeros((B, n_rel + n_type), jnp.float32)
    ground_truth = ground_truth.at[0, 2].set(1.0).at[1, n_rel + 3].set(1.0)

    type_attn_l2_matrix = jnp.array(
        [[j for j in range(ma) if j != i] for i in range(ma)], jnp.int32)   # [ma, ma-1]

    loss, fc_out = forward(params, input_ids, input_mask, edge_labels, mask_pos,
                           mask_label, mask_type, ent_types, ground_truth,
                           type_attn_l2_matrix)
    jax.block_until_ready((loss, fc_out))
    assert fc_out.shape == (B, n_rel + n_type)
    print("KERNEL_OK")
</pallas_src>

<mosaic_0001>
module attributes {stable_mosaic.version = 11 : i64} {
  func.func @_gat_layer_kernel(%arg0: i32, %arg1: memref<1x4x128xf32, #tpu.memory_space<vmem>>, %arg2: memref<1x4x4xf32, #tpu.memory_space<vmem>>, %arg3: memref<128x128xbf16, #tpu.memory_space<vmem>>, %arg4: memref<1x128xf32, #tpu.memory_space<vmem>>, %arg5: memref<128x1xbf16, #tpu.memory_space<vmem>>, %arg6: memref<1x128xbf16, #tpu.memory_space<vmem>>, %arg7: memref<1x4x128xf32, #tpu.memory_space<vmem>>) attributes {dimension_semantics = [#tpu.dimension_semantics<parallel>], iteration_bounds = array<i64: 6>, scalar_prefetch = 0 : i64, scratch_operands = 0 : i64, tpu.core_type = #tpu.core_type<tc>, window_params = [{transform_indices = @transform_0, window_bounds = array<i64: 1, 4, 128>}, {transform_indices = @transform_1, window_bounds = array<i64: 1, 4, 4>}, {pipeline_mode = #tpu.pipeline_mode<synchronous>, transform_indices = @transform_2, window_bounds = array<i64: 128, 128>}, {pipeline_mode = #tpu.pipeline_mode<synchronous>, transform_indices = @transform_3, window_bounds = array<i64: 1, 128>}, {pipeline_mode = #tpu.pipeline_mode<synchronous>, transform_indices = @transform_4, window_bounds = array<i64: 128, 1>}, {pipeline_mode = #tpu.pipeline_mode<synchronous>, transform_indices = @transform_5, window_bounds = array<i64: 1, 128>}, {transform_indices = @transform_6, window_bounds = array<i64: 1, 4, 128>}]} {
    %c0 = arith.constant 0 : index
    %c0_0 = arith.constant 0 : index
    %c0_1 = arith.constant 0 : index
    %0 = vector.load %arg1[%c0, %c0_0, %c0_1] : memref<1x4x128xf32, #tpu.memory_space<vmem>>, vector<1x4x128xf32>
    %1 = vector.shape_cast %0 : vector<1x4x128xf32> to vector<4x128xf32>
    %2 = arith.truncf %1 : vector<4x128xf32> to vector<4x128xbf16>
    %c0_2 = arith.constant 0 : index
    %c0_3 = arith.constant 0 : index
    %3 = vector.load %arg3[%c0_2, %c0_3] : memref<128x128xbf16, #tpu.memory_space<vmem>>, vector<128x128xbf16>
    %cst = arith.constant dense<0.000000e+00> : vector<4x128xf32>
    %4 = tpu.matmul %2, %3, %cst {dimension_numbers = #tpu.dot_dimension_numbers<[1], [0], [0], [1], [0, 0, 1, 1], [], []>} : vector<4x128xbf16>, vector<128x128xbf16>, vector<4x128xf32> -> vector<4x128xf32>
    %c0_4 = arith.constant 0 : index
    %c0_5 = arith.constant 0 : index
    %5 = vector.load %arg4[%c0_4, %c0_5] : memref<1x128xf32, #tpu.memory_space<vmem>>, vector<1x128xf32>
    %6 = vector.broadcast %5 : vector<1x128xf32> to vector<4x128xf32>
    %7 = arith.addf %4, %6 : vector<4x128xf32>
    %8 = arith.truncf %7 : vector<4x128xf32> to vector<4x128xbf16>
    %c0_6 = arith.constant 0 : index
    %c0_7 = arith.constant 0 : index
    %9 = vector.load %arg5[%c0_6, %c0_7] : memref<128x1xbf16, #tpu.memory_space<vmem>>, vector<128x1xbf16>
    %cst_8 = arith.constant dense<0.000000e+00> : vector<4x1xf32>
    %10 = tpu.matmul %8, %9, %cst_8 {dimension_numbers = #tpu.dot_dimension_numbers<[1], [0], [0], [1], [0, 0, 1, 1], [], []>} : vector<4x128xbf16>, vector<128x1xbf16>, vector<4x1xf32> -> vector<4x1xf32>
    %c0_9 = arith.constant 0 : index
    %c0_10 = arith.constant 0 : index
    %11 = vector.load %arg6[%c0_9, %c0_10] : memref<1x128xbf16, #tpu.memory_space<vmem>>, vector<1x128xbf16>
    "tpu.trace_start"() <{level = 10 : i32, message = "oe,se->os"}> : () -> ()
    %cst_11 = arith.constant dense<0.000000e+00> : vector<1x4xf32>
    %12 = tpu.matmul %11, %8, %cst_11 {dimension_numbers = #tpu.dot_dimension_numbers<[1], [1], [0], [0], [0, 0, 1, 0], [], []>} : vector<1x128xbf16>, vector<4x128xbf16>, vector<1x4xf32> -> vector<1x4xf32>
    "tpu.trace_stop"() : () -> ()
    %13 = vector.broadcast %10 : vector<4x1xf32> to vector<4x4xf32>
    %14 = vector.broadcast %12 : vector<1x4xf32> to vector<4x4xf32>
    %15 = arith.addf %13, %14 : vector<4x4xf32>
    %cst_12 = arith.constant 0.000000e+00 : f32
    %16 = vector.broadcast %cst_12 : f32 to vector<4x4xf32>
    %17 = arith.cmpf ogt, %15, %16 : vector<4x4xf32>
    %cst_13 = arith.constant 2.000000e-01 : f32
    %18 = vector.broadcast %cst_13 : f32 to vector<4x4xf32>
    %19 = arith.mulf %18, %15 : vector<4x4xf32>
    %20 = arith.select %17, %15, %19 : vector<4x4xi1>, vector<4x4xf32>
    %c0_14 = arith.constant 0 : index
    %c0_15 = arith.constant 0 : index
    %c0_16 = arith.constant 0 : index
    %21 = vector.load %arg2[%c0_14, %c0_15, %c0_16] : memref<1x4x4xf32, #tpu.memory_space<vmem>>, vector<1x4x4xf32>
    %22 = vector.shape_cast %21 : vector<1x4x4xf32> to vector<4x4xf32>
    %23 = arith.addf %20, %22 : vector<4x4xf32>
    %cst_17 = arith.constant dense<0xFF800000> : vector<4xf32>
    %24 = vector.multi_reduction <maximumf>, %23, %cst_17 [1] : vector<4x4xf32> to vector<4xf32>
    %25 = vector.shape_cast %24 : vector<4xf32> to vector<4x1xf32>
    %26 = vector.broadcast %25 : vector<4x1xf32> to vector<4x4xf32>
    %27 = arith.subf %23, %26 : vector<4x4xf32>
    %28 = math.exp %27 : vector<4x4xf32>
    %cst_18 = arith.constant dense<0.000000e+00> : vector<4xf32>
    %29 = vector.multi_reduction <add>, %28, %cst_18 [1] : vector<4x4xf32> to vector<4xf32>
    %30 = vector.shape_cast %29 : vector<4xf32> to vector<4x1xf32>
    %31 = tpu.reciprocal %30 {approx = true} : vector<4x1xf32> -> vector<4x1xf32>
    %32 = vector.broadcast %31 : vector<4x1xf32> to vector<4x4xf32>
    %33 = arith.mulf %28, %32 : vector<4x4xf32>
    %34 = arith.truncf %33 : vector<4x4xf32> to vector<4x4xbf16>
    %cst_19 = arith.constant dense<0.000000e+00> : vector<4x128xf32>
    %35 = tpu.matmul %34, %8, %cst_19 {dimension_numbers = #tpu.dot_dimension_numbers<[1], [0], [0], [1], [0, 0, 1, 1], [], []>} : vector<4x4xbf16>, vector<4x128xbf16>, vector<4x128xf32> -> vector<4x128xf32>
    %cst_20 = arith.constant 0.000000e+00 : f32
    %36 = vector.broadcast %cst_20 : f32 to vector<4x128xf32>
    %37 = arith.cmpf ogt, %35, %36 : vector<4x128xf32>
    %38 = math.exp %35 : vector<4x128xf32>
    %cst_21 = arith.constant 1.000000e+00 : f32
    %39 = vector.broadcast %cst_21 : f32 to vector<4x128xf32>
    %40 = arith.subf %38, %39 : vector<4x128xf32>
    %41 = arith.select %37, %35, %40 : vector<4x128xi1>, vector<4x128xf32>
    %c0_22 = arith.constant 0 : index
    %c0_23 = arith.constant 0 : index
    %c0_24 = arith.constant 0 : index
    %42 = vector.load %arg7[%c0_22, %c0_23, %c0_24] : memref<1x4x128xf32, #tpu.memory_space<vmem>>, vector<1x4x128xf32>
    %43 = vector.shape_cast %42 : vector<1x4x128xf32> to vector<4x128xf32>
    %44 = vector.shape_cast %41 : vector<4x128xf32> to vector<1x4x128xf32>
    tpu.vector_store %arg7[%c0_22, %c0_23, %c0_24], %44 {strides = array<i32>} : memref<1x4x128xf32, #tpu.memory_space<vmem>>, vector<1x4x128xf32>,
    return
  }
  func.func @transform_0(%arg0: i32) -> (i32, i32, i32) {
    %c0_i32 = arith.constant 0 : i32
    %c0_i32_0 = arith.constant 0 : i32
    %c0_i32_1 = arith.constant 0 : i32
    return %arg0, %c0_i32, %c0_i32_0 : i32, i32, i32
  }
  func.func @transform_1(%arg0: i32) -> (i32, i32, i32) {
    %c0_i32 = arith.constant 0 : i32
    %c0_i32_0 = arith.constant 0 : i32
    %c0_i32_1 = arith.constant 0 : i32
    return %arg0, %c0_i32, %c0_i32_0 : i32, i32, i32
  }
  func.func @transform_2(%arg0: i32) -> (i32, i32) {
    %c0_i32 = arith.constant 0 : i32
    %c0_i32_0 = arith.constant 0 : i32
    %c0_i32_1 = arith.constant 0 : i32
    return %c0_i32, %c0_i32_0 : i32, i32
  }
  func.func @transform_3(%arg0: i32) -> (i32, i32) {
    %c0_i32 = arith.constant 0 : i32
    %c0_i32_0 = arith.constant 0 : i32
    %c0_i32_1 = arith.constant 0 : i32
    return %c0_i32, %c0_i32_0 : i32, i32
  }
  func.func @transform_4(%arg0: i32) -> (i32, i32) {
    %c0_i32 = arith.constant 0 : i32
    %c0_i32_0 = arith.constant 0 : i32
    %c0_i32_1 = arith.constant 0 : i32
    return %c0_i32, %c0_i32_0 : i32, i32
  }
  func.func @transform_5(%arg0: i32) -> (i32, i32) {
    %c0_i32 = arith.constant 0 : i32
    %c0_i32_0 = arith.constant 0 : i32
    %c0_i32_1 = arith.constant 0 : i32
    return %c0_i32, %c0_i32_0 : i32, i32
  }
  func.func @transform_6(%arg0: i32) -> (i32, i32, i32) {
    %c0_i32 = arith.constant 0 : i32
    %c0_i32_0 = arith.constant 0 : i32
    %c0_i32_1 = arith.constant 0 : i32
    return %arg0, %c0_i32, %c0_i32_0 : i32, i32, i32
  }
}

module attributes {stable_mosaic.version = 11 : i64} {
  func.func @_gat_layer_kernel(%arg0: i32, %arg1: memref<1x6x128xf32, #tpu.memory_space<vmem>>, %arg2: memref<1x6x6xf32, #tpu.memory_space<vmem>>, %arg3: memref<128x128xbf16, #tpu.memory_space<vmem>>, %arg4: memref<1x128xf32, #tpu.memory_space<vmem>>, %arg5: memref<128x1xbf16, #tpu.memory_space<vmem>>, %arg6: memref<1x128xbf16, #tpu.memory_space<vmem>>, %arg7: memref<1x6x128xf32, #tpu.memory_space<vmem>>) attributes {dimension_semantics = [#tpu.dimension_semantics<parallel>], iteration_bounds = array<i64: 6>, scalar_prefetch = 0 : i64, scratch_operands = 0 : i64, tpu.core_type = #tpu.core_type<tc>, window_params = [{transform_indices = @transform_0, window_bounds = array<i64: 1, 6, 128>}, {transform_indices = @transform_1, window_bounds = array<i64: 1, 6, 6>}, {pipeline_mode = #tpu.pipeline_mode<synchronous>, transform_indices = @transform_2, window_bounds = array<i64: 128, 128>}, {pipeline_mode = #tpu.pipeline_mode<synchronous>, transform_indices = @transform_3, window_bounds = array<i64: 1, 128>}, {pipeline_mode = #tpu.pipeline_mode<synchronous>, transform_indices = @transform_4, window_bounds = array<i64: 128, 1>}, {pipeline_mode = #tpu.pipeline_mode<synchronous>, transform_indices = @transform_5, window_bounds = array<i64: 1, 128>}, {transform_indices = @transform_6, window_bounds = array<i64: 1, 6, 128>}]} {
    %c0 = arith.constant 0 : index
    %c0_0 = arith.constant 0 : index
    %c0_1 = arith.constant 0 : index
    %0 = vector.load %arg1[%c0, %c0_0, %c0_1] : memref<1x6x128xf32, #tpu.memory_space<vmem>>, vector<1x6x128xf32>
    %1 = vector.shape_cast %0 : vector<1x6x128xf32> to vector<6x128xf32>
    %2 = arith.truncf %1 : vector<6x128xf32> to vector<6x128xbf16>
    %c0_2 = arith.constant 0 : index
    %c0_3 = arith.constant 0 : index
    %3 = vector.load %arg3[%c0_2, %c0_3] : memref<128x128xbf16, #tpu.memory_space<vmem>>, vector<128x128xbf16>
    %cst = arith.constant dense<0.000000e+00> : vector<6x128xf32>
    %4 = tpu.matmul %2, %3, %cst {dimension_numbers = #tpu.dot_dimension_numbers<[1], [0], [0], [1], [0, 0, 1, 1], [], []>} : vector<6x128xbf16>, vector<128x128xbf16>, vector<6x128xf32> -> vector<6x128xf32>
    %c0_4 = arith.constant 0 : index
    %c0_5 = arith.constant 0 : index
    %5 = vector.load %arg4[%c0_4, %c0_5] : memref<1x128xf32, #tpu.memory_space<vmem>>, vector<1x128xf32>
    %6 = vector.broadcast %5 : vector<1x128xf32> to vector<6x128xf32>
    %7 = arith.addf %4, %6 : vector<6x128xf32>
    %8 = arith.truncf %7 : vector<6x128xf32> to vector<6x128xbf16>
    %c0_6 = arith.constant 0 : index
    %c0_7 = arith.constant 0 : index
    %9 = vector.load %arg5[%c0_6, %c0_7] : memref<128x1xbf16, #tpu.memory_space<vmem>>, vector<128x1xbf16>
    %cst_8 = arith.constant dense<0.000000e+00> : vector<6x1xf32>
    %10 = tpu.matmul %8, %9, %cst_8 {dimension_numbers = #tpu.dot_dimension_numbers<[1], [0], [0], [1], [0, 0, 1, 1], [], []>} : vector<6x128xbf16>, vector<128x1xbf16>, vector<6x1xf32> -> vector<6x1xf32>
    %c0_9 = arith.constant 0 : index
    %c0_10 = arith.constant 0 : index
    %11 = vector.load %arg6[%c0_9, %c0_10] : memref<1x128xbf16, #tpu.memory_space<vmem>>, vector<1x128xbf16>
    "tpu.trace_start"() <{level = 10 : i32, message = "oe,se->os"}> : () -> ()
    %cst_11 = arith.constant dense<0.000000e+00> : vector<1x6xf32>
    %12 = tpu.matmul %11, %8, %cst_11 {dimension_numbers = #tpu.dot_dimension_numbers<[1], [1], [0], [0], [0, 0, 1, 0], [], []>} : vector<1x128xbf16>, vector<6x128xbf16>, vector<1x6xf32> -> vector<1x6xf32>
    "tpu.trace_stop"() : () -> ()
    %13 = vector.broadcast %10 : vector<6x1xf32> to vector<6x6xf32>
    %14 = vector.broadcast %12 : vector<1x6xf32> to vector<6x6xf32>
    %15 = arith.addf %13, %14 : vector<6x6xf32>
    %cst_12 = arith.constant 0.000000e+00 : f32
    %16 = vector.broadcast %cst_12 : f32 to vector<6x6xf32>
    %17 = arith.cmpf ogt, %15, %16 : vector<6x6xf32>
    %cst_13 = arith.constant 2.000000e-01 : f32
    %18 = vector.broadcast %cst_13 : f32 to vector<6x6xf32>
    %19 = arith.mulf %18, %15 : vector<6x6xf32>
    %20 = arith.select %17, %15, %19 : vector<6x6xi1>, vector<6x6xf32>
    %c0_14 = arith.constant 0 : index
    %c0_15 = arith.constant 0 : index
    %c0_16 = arith.constant 0 : index
    %21 = vector.load %arg2[%c0_14, %c0_15, %c0_16] : memref<1x6x6xf32, #tpu.memory_space<vmem>>, vector<1x6x6xf32>
    %22 = vector.shape_cast %21 : vector<1x6x6xf32> to vector<6x6xf32>
    %23 = arith.addf %20, %22 : vector<6x6xf32>
    %cst_17 = arith.constant dense<0xFF800000> : vector<6xf32>
    %24 = vector.multi_reduction <maximumf>, %23, %cst_17 [1] : vector<6x6xf32> to vector<6xf32>
    %25 = vector.shape_cast %24 : vector<6xf32> to vector<6x1xf32>
    %26 = vector.broadcast %25 : vector<6x1xf32> to vector<6x6xf32>
    %27 = arith.subf %23, %26 : vector<6x6xf32>
    %28 = math.exp %27 : vector<6x6xf32>
    %cst_18 = arith.constant dense<0.000000e+00> : vector<6xf32>
    %29 = vector.multi_reduction <add>, %28, %cst_18 [1] : vector<6x6xf32> to vector<6xf32>
    %30 = vector.shape_cast %29 : vector<6xf32> to vector<6x1xf32>
    %31 = tpu.reciprocal %30 {approx = true} : vector<6x1xf32> -> vector<6x1xf32>
    %32 = vector.broadcast %31 : vector<6x1xf32> to vector<6x6xf32>
    %33 = arith.mulf %28, %32 : vector<6x6xf32>
    %34 = arith.truncf %33 : vector<6x6xf32> to vector<6x6xbf16>
    %cst_19 = arith.constant dense<0.000000e+00> : vector<6x128xf32>
    %35 = tpu.matmul %34, %8, %cst_19 {dimension_numbers = #tpu.dot_dimension_numbers<[1], [0], [0], [1], [0, 0, 1, 1], [], []>} : vector<6x6xbf16>, vector<6x128xbf16>, vector<6x128xf32> -> vector<6x128xf32>
    %cst_20 = arith.constant 0.000000e+00 : f32
    %36 = vector.broadcast %cst_20 : f32 to vector<6x128xf32>
    %37 = arith.cmpf ogt, %35, %36 : vector<6x128xf32>
    %38 = math.exp %35 : vector<6x128xf32>
    %cst_21 = arith.constant 1.000000e+00 : f32
    %39 = vector.broadcast %cst_21 : f32 to vector<6x128xf32>
    %40 = arith.subf %38, %39 : vector<6x128xf32>
    %41 = arith.select %37, %35, %40 : vector<6x128xi1>, vector<6x128xf32>
    %c0_22 = arith.constant 0 : index
    %c0_23 = arith.constant 0 : index
    %c0_24 = arith.constant 0 : index
    %42 = vector.load %arg7[%c0_22, %c0_23, %c0_24] : memref<1x6x128xf32, #tpu.memory_space<vmem>>, vector<1x6x128xf32>
    %43 = vector.shape_cast %42 : vector<1x6x128xf32> to vector<6x128xf32>
    %44 = vector.shape_cast %41 : vector<6x128xf32> to vector<1x6x128xf32>
    tpu.vector_store %arg7[%c0_22, %c0_23, %c0_24], %44 {strides = array<i32>} : memref<1x6x128xf32, #tpu.memory_space<vmem>>, vector<1x6x128xf32>,
    return
  }
  func.func @transform_0(%arg0: i32) -> (i32, i32, i32) {
    %c0_i32 = arith.constant 0 : i32
    %c0_i32_0 = arith.constant 0 : i32
    %c0_i32_1 = arith.constant 0 : i32
    return %arg0, %c0_i32, %c0_i32_0 : i32, i32, i32
  }
  func.func @transform_1(%arg0: i32) -> (i32, i32, i32) {
    %c0_i32 = arith.constant 0 : i32
    %c0_i32_0 = arith.constant 0 : i32
    %c0_i32_1 = arith.constant 0 : i32
    return %arg0, %c0_i32, %c0_i32_0 : i32, i32, i32
  }
  func.func @transform_2(%arg0: i32) -> (i32, i32) {
    %c0_i32 = arith.constant 0 : i32
    %c0_i32_0 = arith.constant 0 : i32
    %c0_i32_1 = arith.constant 0 : i32
    return %c0_i32, %c0_i32_0 : i32, i32
  }
  func.func @transform_3(%arg0: i32) -> (i32, i32) {
    %c0_i32 = arith.constant 0 : i32
    %c0_i32_0 = arith.constant 0 : i32
    %c0_i32_1 = arith.constant 0 : i32
    return %c0_i32, %c0_i32_0 : i32, i32
  }
  func.func @transform_4(%arg0: i32) -> (i32, i32) {
    %c0_i32 = arith.constant 0 : i32
    %c0_i32_0 = arith.constant 0 : i32
    %c0_i32_1 = arith.constant 0 : i32
    return %c0_i32, %c0_i32_0 : i32, i32
  }
  func.func @transform_5(%arg0: i32) -> (i32, i32) {
    %c0_i32 = arith.constant 0 : i32
    %c0_i32_0 = arith.constant 0 : i32
    %c0_i32_1 = arith.constant 0 : i32
    return %c0_i32, %c0_i32_0 : i32, i32
  }
  func.func @transform_6(%arg0: i32) -> (i32, i32, i32) {
    %c0_i32 = arith.constant 0 : i32
    %c0_i32_0 = arith.constant 0 : i32
    %c0_i32_1 = arith.constant 0 : i32
    return %arg0, %c0_i32, %c0_i32_0 : i32, i32, i32
  }
}

module attributes {stable_mosaic.version = 11 : i64} {
  func.func @_layernorm_kernel(%arg0: i32, %arg1: memref<10x128xf32, #tpu.memory_space<vmem>>, %arg2: memref<1x128xf32, #tpu.memory_space<vmem>>, %arg3: memref<1x128xf32, #tpu.memory_space<vmem>>, %arg4: memref<10x128xf32, #tpu.memory_space<vmem>>) attributes {dimension_semantics = [#tpu.dimension_semantics<parallel>], iteration_bounds = array<i64: 1>, scalar_prefetch = 0 : i64, scratch_operands = 0 : i64, tpu.core_type = #tpu.core_type<tc>, window_params = [{transform_indices = @transform_0, window_bounds = array<i64: 10, 128>}, {pipeline_mode = #tpu.pipeline_mode<synchronous>, transform_indices = @transform_1, window_bounds = array<i64: 1, 128>}, {pipeline_mode = #tpu.pipeline_mode<synchronous>, transform_indices = @transform_2, window_bounds = array<i64: 1, 128>}, {transform_indices = @transform_3, window_bounds = array<i64: 10, 128>}]} {
    %c0 = arith.constant 0 : index
    %c0_0 = arith.constant 0 : index
    %0 = vector.load %arg1[%c0, %c0_0] : memref<10x128xf32, #tpu.memory_space<vmem>>, vector<10x128xf32>
    %cst = arith.constant dense<0.000000e+00> : vector<10xf32>
    %1 = vector.multi_reduction <add>, %0, %cst [1] : vector<10x128xf32> to vector<10xf32>
    %2 = vector.shape_cast %1 : vector<10xf32> to vector<10x1xf32>
    %cst_1 = arith.constant 1.280000e+02 : f32
    %3 = vector.broadcast %cst_1 : f32 to vector<10x1xf32>
    %4 = arith.divf %2, %3 : vector<10x1xf32>
    %5 = vector.broadcast %4 : vector<10x1xf32> to vector<10x128xf32>
    %6 = arith.subf %0, %5 : vector<10x128xf32>
    %7 = arith.mulf %6, %6 : vector<10x128xf32>
    %cst_2 = arith.constant dense<0.000000e+00> : vector<10xf32>
    %8 = vector.multi_reduction <add>, %7, %cst_2 [1] : vector<10x128xf32> to vector<10xf32>
    %9 = vector.shape_cast %8 : vector<10xf32> to vector<10x1xf32>
    %cst_3 = arith.constant 1.280000e+02 : f32
    %10 = vector.broadcast %cst_3 : f32 to vector<10x1xf32>
    %11 = arith.divf %9, %10 : vector<10x1xf32>
    %12 = vector.broadcast %4 : vector<10x1xf32> to vector<10x128xf32>
    %13 = arith.subf %0, %12 : vector<10x128xf32>
    %cst_4 = arith.constant 9.99999996E-13 : f32
    %14 = vector.broadcast %cst_4 : f32 to vector<10x1xf32>
    %15 = arith.addf %11, %14 : vector<10x1xf32>
    %16 = math.rsqrt %15 : vector<10x1xf32>
    %17 = vector.broadcast %16 : vector<10x1xf32> to vector<10x128xf32>
    %18 = arith.mulf %13, %17 : vector<10x128xf32>
    %c0_5 = arith.constant 0 : index
    %c0_6 = arith.constant 0 : index
    %19 = vector.load %arg2[%c0_5, %c0_6] : memref<1x128xf32, #tpu.memory_space<vmem>>, vector<1x128xf32>
    %20 = vector.broadcast %19 : vector<1x128xf32> to vector<10x128xf32>
    %21 = arith.mulf %18, %20 : vector<10x128xf32>
    %c0_7 = arith.constant 0 : index
    %c0_8 = arith.constant 0 : index
    %22 = vector.load %arg3[%c0_7, %c0_8] : memref<1x128xf32, #tpu.memory_space<vmem>>, vector<1x128xf32>
    %23 = vector.broadcast %22 : vector<1x128xf32> to vector<10x128xf32>
    %24 = arith.addf %21, %23 : vector<10x128xf32>
    %c0_9 = arith.constant 0 : index
    %c0_10 = arith.constant 0 : index
    %25 = vector.load %arg4[%c0_9, %c0_10] : memref<10x128xf32, #tpu.memory_space<vmem>>, vector<10x128xf32>
    tpu.vector_store %arg4[%c0_9, %c0_10], %24 {strides = array<i32>} : memref<10x128xf32, #tpu.memory_space<vmem>>, vector<10x128xf32>,
    return
  }
  func.func @transform_0(%arg0: i32) -> (i32, i32) {
    %c0_i32 = arith.constant 0 : i32
    %c0_i32_0 = arith.constant 0 : i32
    return %arg0, %c0_i32 : i32, i32
  }
  func.func @transform_1(%arg0: i32) -> (i32, i32) {
    %c0_i32 = arith.constant 0 : i32
    %c0_i32_0 = arith.constant 0 : i32
    %c0_i32_1 = arith.constant 0 : i32
    return %c0_i32, %c0_i32_0 : i32, i32
  }
  func.func @transform_2(%arg0: i32) -> (i32, i32) {
    %c0_i32 = arith.constant 0 : i32
    %c0_i32_0 = arith.constant 0 : i32
    %c0_i32_1 = arith.constant 0 : i32
    return %c0_i32, %c0_i32_0 : i32, i32
  }
  func.func @transform_3(%arg0: i32) -> (i32, i32) {
    %c0_i32 = arith.constant 0 : i32
    %c0_i32_0 = arith.constant 0 : i32
    return %arg0, %c0_i32 : i32, i32
  }
}

module attributes {stable_mosaic.version = 11 : i64} {
  func.func @_encoder_layer_kernel(%arg0: i32, %arg1: i32, %arg2: memref<1x5x128xf32, #tpu.memory_space<vmem>>, %arg3: memref<1x5x5xf32, #tpu.memory_space<vmem>>, %arg4: memref<1x8x5x5xf32, #tpu.memory_space<vmem>>, %arg5: memref<1x1x128xf32, #tpu.memory_space<vmem>>, %arg6: memref<1x1x128xf32, #tpu.memory_space<vmem>>, %arg7: memref<1x128x384xbf16, #tpu.memory_space<vmem>>, %arg8: memref<1x1x384xf32, #tpu.memory_space<vmem>>, %arg9: memref<1x128x128xbf16, #tpu.memory_space<vmem>>, %arg10: memref<1x1x128xf32, #tpu.memory_space<vmem>>, %arg11: memref<1x1x128xf32, #tpu.memory_space<vmem>>, %arg12: memref<1x1x128xf32, #tpu.memory_space<vmem>>, %arg13: memref<1x128x256xbf16, #tpu.memory_space<vmem>>, %arg14: memref<1x1x256xf32, #tpu.memory_space<vmem>>, %arg15: memref<1x256x128xbf16, #tpu.memory_space<vmem>>, %arg16: memref<1x1x128xf32, #tpu.memory_space<vmem>>, %arg17: memref<128x32xbf16, #tpu.memory_space<vmem>>, %arg18: memref<32x128xbf16, #tpu.memory_space<vmem>>, %arg19: memref<1x128xf32, #tpu.memory_space<vmem>>, %arg20: memref<1x128xf32, #tpu.memory_space<vmem>>, %arg21: memref<1x5x128xf32, #tpu.memory_space<vmem>>, %arg22: memref<5x128xf32, #tpu.memory_space<vmem>>) attributes {dimension_semantics = [#tpu.dimension_semantics<parallel>, #tpu.dimension_semantics<arbitrary>], iteration_bounds = array<i64: 2, 2>, scalar_prefetch = 0 : i64, scratch_operands = 1 : i64, tpu.core_type = #tpu.core_type<tc>, window_params = [{transform_indices = @transform_0, window_bounds = array<i64: 1, 5, 128>}, {transform_indices = @transform_1, window_bounds = array<i64: 1, 5, 5>}, {transform_indices = @transform_2, window_bounds = array<i64: 1, 8, 5, 5>}, {transform_indices = @transform_3, window_bounds = array<i64: 1, 1, 128>}, {transform_indices = @transform_4, window_bounds = array<i64: 1, 1, 128>}, {transform_indices = @transform_5, window_bounds = array<i64: 1, 128, 384>}, {transform_indices = @transform_6, window_bounds = array<i64: 1, 1, 384>}, {transform_indices = @transform_7, window_bounds = array<i64: 1, 128, 128>}, {transform_indices = @transform_8, window_bounds = array<i64: 1, 1, 128>}, {transform_indices = @transform_9, window_bounds = array<i64: 1, 1, 128>}, {transform_indices = @transform_10, window_bounds = array<i64: 1, 1, 128>}, {transform_indices = @transform_11, window_bounds = array<i64: 1, 128, 256>}, {transform_indices = @transform_12, window_bounds = array<i64: 1, 1, 256>}, {transform_indices = @transform_13, window_bounds = array<i64: 1, 256, 128>}, {transform_indices = @transform_14, window_bounds = array<i64: 1, 1, 128>}, {pipeline_mode = #tpu.pipeline_mode<synchronous>, transform_indices = @transform_15, window_bounds = array<i64: 128, 32>}, {pipeline_mode = #tpu.pipeline_mode<synchronous>, transform_indices = @transform_16, window_bounds = array<i64: 32, 128>}, {pipeline_mode = #tpu.pipeline_mode<synchronous>, transform_indices = @transform_17, window_bounds = array<i64: 1, 128>}, {pipeline_mode = #tpu.pipeline_mode<synchronous>, transform_indices = @transform_18, window_bounds = array<i64: 1, 128>}, {transform_indices = @transform_19, window_bounds = array<i64: 1, 5, 128>}]} {
    %c0_i32 = arith.constant 0 : i32
    %0 = arith.cmpi eq, %arg1, %c0_i32 : i32
    %1 = arith.extui %0 : i1 to i32
    %c0_i32_0 = arith.constant 0 : i32
    %2 = arith.cmpi ne, %1, %c0_i32_0 : i32
    scf.if %2 {
      %c0_127 = arith.constant 0 : index
      %c0_128 = arith.constant 0 : index
      %c0_129 = arith.constant 0 : index
      %643 = vector.load %arg2[%c0_127, %c0_128, %c0_129] : memref<1x5x128xf32, #tpu.memory_space<vmem>>, vector<1x5x128xf32>
      %644 = vector.shape_cast %643 : vector<1x5x128xf32> to vector<5x128xf32>
      %c0_130 = arith.constant 0 : index
      %c0_131 = arith.constant 0 : index
      %645 = vector.load %arg22[%c0_130, %c0_131] : memref<5x128xf32, #tpu.memory_space<vmem>>, vector<5x128xf32>
      tpu.vector_store %arg22[%c0_130, %c0_131], %644 {strides = array<i32>} : memref<5x128xf32, #tpu.memory_space<vmem>>, vector<5x128xf32>,
    } else {
    }
    %c0 = arith.constant 0 : index
    %c0_1 = arith.constant 0 : index
    %3 = vector.load %arg22[%c0, %c0_1] : memref<5x128xf32, #tpu.memory_space<vmem>>, vector<5x128xf32>
    %cst = arith.constant dense<0.000000e+00> : vector<5xf32>
    %4 = vector.multi_reduction <add>, %3, %cst [1] : vector<5x128xf32> to vector<5xf32>
    %5 = vector.shape_cast %4 : vector<5xf32> to vector<5x1xf32>
    %cst_2 = arith.constant 1.280000e+02 : f32
    %6 = vector.broadcast %cst_2 : f32 to vector<5x1xf32>
    %7 = arith.divf %5, %6 : vector<5x1xf32>
    %8 = vector.broadcast %7 : vector<5x1xf32> to vector<5x128xf32>
    %9 = arith.subf %3, %8 : vector<5x128xf32>
    %10 = arith.mulf %9, %9 : vector<5x128xf32>
    %cst_3 = arith.constant dense<0.000000e+00> : vector<5xf32>
    %11 = vector.multi_reduction <add>, %10, %cst_3 [1] : vector<5x128xf32> to vector<5xf32>
    %12 = vector.shape_cast %11 : vector<5xf32> to vector<5x1xf32>
    %cst_4 = arith.constant 1.280000e+02 : f32
    %13 = vector.broadcast %cst_4 : f32 to vector<5x1xf32>
    %14 = arith.divf %12, %13 : vector<5x1xf32>
    %15 = vector.broadcast %7 : vector<5x1xf32> to vector<5x128xf32>
    %16 = arith.subf %3, %15 : vector<5x128xf32>
    %cst_5 = arith.constant 9.99999996E-13 : f32
    %17 = vector.broadcast %cst_5 : f32 to vector<5x1xf32>
    %18 = arith.addf %14, %17 : vector<5x1xf32>
    %19 = math.rsqrt %18 : vector<5x1xf32>
    %20 = vector.broadcast %19 : vector<5x1xf32> to vector<5x128xf32>
    %21 = arith.mulf %16, %20 : vector<5x128xf32>
    %c0_6 = arith.constant 0 : index
    %c0_7 = arith.constant 0 : index
    %c0_8 = arith.constant 0 : index
    %22 = vector.load %arg5[%c0_6, %c0_7, %c0_8] : memref<1x1x128xf32, #tpu.memory_space<vmem>>, vector<1x1x128xf32>
    %23 = vector.shape_cast %22 : vector<1x1x128xf32> to vector<1x128xf32>
    %24 = vector.broadcast %23 : vector<1x128xf32> to vector<5x128xf32>
    %25 = arith.mulf %21, %24 : vector<5x128xf32>
    %c0_9 = arith.constant 0 : index
    %c0_10 = arith.constant 0 : index
    %c0_11 = arith.constant 0 : index
    %26 = vector.load %arg6[%c0_9, %c0_10, %c0_11] : memref<1x1x128xf32, #tpu.memory_space<vmem>>, vector<1x1x128xf32>
    %27 = vector.shape_cast %26 : vector<1x1x128xf32> to vector<1x128xf32>
    %28 = vector.broadcast %27 : vector<1x128xf32> to vector<5x128xf32>
    %29 = arith.addf %25, %28 : vector<5x128xf32>
    %30 = arith.truncf %29 : vector<5x128xf32> to vector<5x128xbf16>
    %c0_12 = arith.constant 0 : index
    %c0_13 = arith.constant 0 : index
    %c0_14 = arith.constant 0 : index
    %31 = vector.load %arg7[%c0_12, %c0_13, %c0_14] : memref<1x128x384xbf16, #tpu.memory_space<vmem>>, vector<1x128x384xbf16>
    %32 = vector.shape_cast %31 : vector<1x128x384xbf16> to vector<128x384xbf16>
    %cst_15 = arith.constant dense<0.000000e+00> : vector<5x384xf32>
    %33 = tpu.matmul %30, %32, %cst_15 {dimension_numbers = #tpu.dot_dimension_numbers<[1], [0], [0], [1], [0, 0, 1, 1], [], []>} : vector<5x128xbf16>, vector<128x384xbf16>, vector<5x384xf32> -> vector<5x384xf32>
    %c0_16 = arith.constant 0 : index
    %c0_17 = arith.constant 0 : index
    %c0_18 = arith.constant 0 : index
    %34 = vector.load %arg8[%c0_16, %c0_17, %c0_18] : memref<1x1x384xf32, #tpu.memory_space<vmem>>, vector<1x1x384xf32>
    %35 = vector.shape_cast %34 : vector<1x1x384xf32> to vector<1x384xf32>
    %36 = vector.broadcast %35 : vector<1x384xf32> to vector<5x384xf32>
    %37 = arith.addf %33, %36 : vector<5x384xf32>
    %38 = vector.extract_strided_slice %37 {offsets = [0, 0], sizes = [5, 128], strides = [1, 1]} : vector<5x384xf32> to vector<5x128xf32>
    %39 = vector.extract_strided_slice %37 {offsets = [0, 128], sizes = [5, 128], strides = [1, 1]} : vector<5x384xf32> to vector<5x128xf32>
    %40 = vector.extract_strided_slice %37 {offsets = [0, 256], sizes = [5, 128], strides = [1, 1]} : vector<5x384xf32> to vector<5x128xf32>
    %41 = arith.truncf %38 : vector<5x128xf32> to vector<5x128xbf16>
    %c0_19 = arith.constant 0 : index
    %c0_20 = arith.constant 0 : index
    %42 = vector.load %arg17[%c0_19, %c0_20] : memref<128x32xbf16, #tpu.memory_space<vmem>>, vector<128x32xbf16>
    %cst_21 = arith.constant dense<0.000000e+00> : vector<5x32xf32>
    %43 = tpu.matmul %41, %42, %cst_21 {dimension_numbers = #tpu.dot_dimension_numbers<[1], [0], [0], [1], [0, 0, 1, 1], [], []>} : vector<5x128xbf16>, vector<128x32xbf16>, vector<5x32xf32> -> vector<5x32xf32>
    %c0_22 = arith.constant 0 : index
    %c0_23 = arith.constant 0 : index
    %c0_24 = arith.constant 0 : index
    %44 = vector.load %arg3[%c0_22, %c0_23, %c0_24] : memref<1x5x5xf32, #tpu.memory_space<vmem>>, vector<1x5x5xf32>
    %45 = vector.shape_cast %44 : vector<1x5x5xf32> to vector<5x5xf32>
    %c0_25 = arith.constant 0 : index
    %c0_26 = arith.constant 0 : index
    %c0_27 = arith.constant 0 : index
    %c0_28 = arith.constant 0 : index
    %46 = vector.load %arg4[%c0_25, %c0_26, %c0_27, %c0_28] : memref<1x8x5x5xf32, #tpu.memory_space<vmem>>, vector<1x8x5x5xf32>
    %47 = vector.shape_cast %46 : vector<1x8x5x5xf32> to vector<8x5x5xf32>
    %48 = vector.extract_strided_slice %38 {offsets = [0, 0], sizes = [5, 32], strides = [1, 1]} : vector<5x128xf32> to vector<5x32xf32>
    %49 = arith.truncf %48 : vector<5x32xf32> to vector<5x32xbf16>
    %50 = vector.extract_strided_slice %39 {offsets = [0, 0], sizes = [5, 32], strides = [1, 1]} : vector<5x128xf32> to vector<5x32xf32>
    %51 = arith.truncf %50 : vector<5x32xf32> to vector<5x32xbf16>
    %52 = vector.extract_strided_slice %40 {offsets = [0, 0], sizes = [5, 32], strides = [1, 1]} : vector<5x128xf32> to vector<5x32xf32>
    %53 = arith.truncf %52 : vector<5x32xf32> to vector<5x32xbf16>
    "tpu.trace_start"() <{level = 10 : i32, message = "sd,td->st"}> : () -> ()
    %cst_29 = arith.constant dense<0.000000e+00> : vector<5x5xf32>
    %54 = tpu.matmul %49, %51, %cst_29 {dimension_numbers = #tpu.dot_dimension_numbers<[1], [1], [0], [0], [0, 0, 1, 0], [], []>} : vector<5x32xbf16>, vector<5x32xbf16>, vector<5x5xf32> -> vector<5x5xf32>
    "tpu.trace_stop"() : () -> ()
    %55 = vector.extract_strided_slice %43 {offsets = [0, 0], sizes = [5, 8], strides = [1, 1]} : vector<5x32xf32> to vector<5x8xf32>
    %cst_30 = arith.constant 0.000000e+00 : f32
    %56 = vector.broadcast %cst_30 : f32 to vector<5x5xf32>
    %57 = vector.extract_strided_slice %47 {offsets = [0, 0, 0], sizes = [1, 5, 5], strides = [1, 1, 1]} : vector<8x5x5xf32> to vector<1x5x5xf32>
    %58 = vector.shape_cast %57 : vector<1x5x5xf32> to vector<5x5xf32>
    %59 = vector.extract_strided_slice %55 {offsets = [0, 0], sizes = [5, 1], strides = [1, 1]} : vector<5x8xf32> to vector<5x1xf32>
    %60 = vector.shape_cast %59 : vector<5x1xf32> to vector<5xf32>
    %61 = vector.shape_cast %60 : vector<5xf32> to vector<5x1xf32>
    %62 = vector.broadcast %61 : vector<5x1xf32> to vector<5x5xf32>
    %63 = arith.mulf %58, %62 : vector<5x5xf32>
    %64 = arith.addf %56, %63 : vector<5x5xf32>
    %65 = vector.extract_strided_slice %47 {offsets = [1, 0, 0], sizes = [1, 5, 5], strides = [1, 1, 1]} : vector<8x5x5xf32> to vector<1x5x5xf32>
    %66 = vector.shape_cast %65 : vector<1x5x5xf32> to vector<5x5xf32>
    %67 = vector.extract_strided_slice %55 {offsets = [0, 1], sizes = [5, 1], strides = [1, 1]} : vector<5x8xf32> to vector<5x1xf32>
    %68 = vector.shape_cast %67 : vector<5x1xf32> to vector<5xf32>
    %69 = vector.shape_cast %68 : vector<5xf32> to vector<5x1xf32>
    %70 = vector.broadcast %69 : vector<5x1xf32> to vector<5x5xf32>
    %71 = arith.mulf %66, %70 : vector<5x5xf32>
    %72 = arith.addf %64, %71 : vector<5x5xf32>
    %73 = vector.extract_strided_slice %47 {offsets = [2, 0, 0], sizes = [1, 5, 5], strides = [1, 1, 1]} : vector<8x5x5xf32> to vector<1x5x5xf32>
    %74 = vector.shape_cast %73 : vector<1x5x5xf32> to vector<5x5xf32>
    %75 = vector.extract_strided_slice %55 {offsets = [0, 2], sizes = [5, 1], strides = [1, 1]} : vector<5x8xf32> to vector<5x1xf32>
    %76 = vector.shape_cast %75 : vector<5x1xf32> to vector<5xf32>
    %77 = vector.shape_cast %76 : vector<5xf32> to vector<5x1xf32>
    %78 = vector.broadcast %77 : vector<5x1xf32> to vector<5x5xf32>
    %79 = arith.mulf %74, %78 : vector<5x5xf32>
    %80 = arith.addf %72, %79 : vector<5x5xf32>
    %81 = vector.extract_strided_slice %47 {offsets = [3, 0, 0], sizes = [1, 5, 5], strides = [1, 1, 1]} : vector<8x5x5xf32> to vector<1x5x5xf32>
    %82 = vector.shape_cast %81 : vector<1x5x5xf32> to vector<5x5xf32>
    %83 = vector.extract_strided_slice %55 {offsets = [0, 3], sizes = [5, 1], strides = [1, 1]} : vector<5x8xf32> to vector<5x1xf32>
    %84 = vector.shape_cast %83 : vector<5x1xf32> to vector<5xf32>
    %85 = vector.shape_cast %84 : vector<5xf32> to vector<5x1xf32>
    %86 = vector.broadcast %85 : vector<5x1xf32> to vector<5x5xf32>
    %87 = arith.mulf %82, %86 : vector<5x5xf32>
    %88 = arith.addf %80, %87 : vector<5x5xf32>
    %89 = vector.extract_strided_slice %47 {offsets = [4, 0, 0], sizes = [1, 5, 5], strides = [1, 1, 1]} : vector<8x5x5xf32> to vector<1x5x5xf32>
    %90 = vector.shape_cast %89 : vector<1x5x5xf32> to vector<5x5xf32>
    %91 = vector.extract_strided_slice %55 {offsets = [0, 4], sizes = [5, 1], strides = [1, 1]} : vector<5x8xf32> to vector<5x1xf32>
    %92 = vector.shape_cast %91 : vector<5x1xf32> to vector<5xf32>
    %93 = vector.shape_cast %92 : vector<5xf32> to vector<5x1xf32>
    %94 = vector.broadcast %93 : vector<5x1xf32> to vector<5x5xf32>
    %95 = arith.mulf %90, %94 : vector<5x5xf32>
    %96 = arith.addf %88, %95 : vector<5x5xf32>
    %97 = vector.extract_strided_slice %47 {offsets = [5, 0, 0], sizes = [1, 5, 5], strides = [1, 1, 1]} : vector<8x5x5xf32> to vector<1x5x5xf32>
    %98 = vector.shape_cast %97 : vector<1x5x5xf32> to vector<5x5xf32>
    %99 = vector.extract_strided_slice %55 {offsets = [0, 5], sizes = [5, 1], strides = [1, 1]} : vector<5x8xf32> to vector<5x1xf32>
    %100 = vector.shape_cast %99 : vector<5x1xf32> to vector<5xf32>
    %101 = vector.shape_cast %100 : vector<5xf32> to vector<5x1xf32>
    %102 = vector.broadcast %101 : vector<5x1xf32> to vector<5x5xf32>
    %103 = arith.mulf %98, %102 : vector<5x5xf32>
    %104 = arith.addf %96, %103 : vector<5x5xf32>
    %105 = vector.extract_strided_slice %47 {offsets = [6, 0, 0], sizes = [1, 5, 5], strides = [1, 1, 1]} : vector<8x5x5xf32> to vector<1x5x5xf32>
    %106 = vector.shape_cast %105 : vector<1x5x5xf32> to vector<5x5xf32>
    %107 = vector.extract_strided_slice %55 {offsets = [0, 6], sizes = [5, 1], strides = [1, 1]} : vector<5x8xf32> to vector<5x1xf32>
    %108 = vector.shape_cast %107 : vector<5x1xf32> to vector<5xf32>
    %109 = vector.shape_cast %108 : vector<5xf32> to vector<5x1xf32>
    %110 = vector.broadcast %109 : vector<5x1xf32> to vector<5x5xf32>
    %111 = arith.mulf %106, %110 : vector<5x5xf32>
    %112 = arith.addf %104, %111 : vector<5x5xf32>
    %113 = vector.extract_strided_slice %47 {offsets = [7, 0, 0], sizes = [1, 5, 5], strides = [1, 1, 1]} : vector<8x5x5xf32> to vector<1x5x5xf32>
    %114 = vector.shape_cast %113 : vector<1x5x5xf32> to vector<5x5xf32>
    %115 = vector.extract_strided_slice %55 {offsets = [0, 7], sizes = [5, 1], strides = [1, 1]} : vector<5x8xf32> to vector<5x1xf32>
    %116 = vector.shape_cast %115 : vector<5x1xf32> to vector<5xf32>
    %117 = vector.shape_cast %116 : vector<5xf32> to vector<5x1xf32>
    %118 = vector.broadcast %117 : vector<5x1xf32> to vector<5x5xf32>
    %119 = arith.mulf %114, %118 : vector<5x5xf32>
    %120 = arith.addf %112, %119 : vector<5x5xf32>
    %121 = arith.addf %54, %120 : vector<5x5xf32>
    %cst_31 = arith.constant 0.176776692 : f32
    %122 = vector.broadcast %cst_31 : f32 to vector<5x5xf32>
    %123 = arith.mulf %121, %122 : vector<5x5xf32>
    %124 = arith.addf %123, %45 : vector<5x5xf32>
    %cst_32 = arith.constant dense<0xFF800000> : vector<5xf32>
    %125 = vector.multi_reduction <maximumf>, %124, %cst_32 [1] : vector<5x5xf32> to vector<5xf32>
    %126 = vector.shape_cast %125 : vector<5xf32> to vector<5x1xf32>
    %127 = vector.broadcast %126 : vector<5x1xf32> to vector<5x5xf32>
    %128 = arith.subf %124, %127 : vector<5x5xf32>
    %129 = math.exp %128 : vector<5x5xf32>
    %cst_33 = arith.constant dense<0.000000e+00> : vector<5xf32>
    %130 = vector.multi_reduction <add>, %129, %cst_33 [1] : vector<5x5xf32> to vector<5xf32>
    %131 = vector.shape_cast %130 : vector<5xf32> to vector<5x1xf32>
    %132 = tpu.reciprocal %131 {approx = true} : vector<5x1xf32> -> vector<5x1xf32>
    %133 = vector.broadcast %132 : vector<5x1xf32> to vector<5x5xf32>
    %134 = arith.mulf %129, %133 : vector<5x5xf32>
    %135 = arith.truncf %134 : vector<5x5xf32> to vector<5x5xbf16>
    "tpu.trace_start"() <{level = 10 : i32, message = "st,td->sd"}> : () -> ()
    %cst_34 = arith.constant dense<0.000000e+00> : vector<5x32xf32>
    %136 = tpu.matmul %135, %53, %cst_34 {dimension_numbers = #tpu.dot_dimension_numbers<[1], [0], [0], [1], [0, 0, 1, 1], [], []>} : vector<5x5xbf16>, vector<5x32xbf16>, vector<5x32xf32> -> vector<5x32xf32>
    "tpu.trace_stop"() : () -> ()
    %137 = vector.extract_strided_slice %47 {offsets = [0, 0, 0], sizes = [1, 5, 5], strides = [1, 1, 1]} : vector<8x5x5xf32> to vector<1x5x5xf32>
    %138 = vector.shape_cast %137 : vector<1x5x5xf32> to vector<5x5xf32>
    %139 = arith.mulf %134, %138 : vector<5x5xf32>
    %cst_35 = arith.constant dense<0.000000e+00> : vector<5xf32>
    %140 = vector.multi_reduction <add>, %139, %cst_35 [1] : vector<5x5xf32> to vector<5xf32>
    %141 = vector.shape_cast %140 : vector<5xf32> to vector<5x1xf32>
    %142 = vector.extract_strided_slice %47 {offsets = [1, 0, 0], sizes = [1, 5, 5], strides = [1, 1, 1]} : vector<8x5x5xf32> to vector<1x5x5xf32>
    %143 = vector.shape_cast %142 : vector<1x5x5xf32> to vector<5x5xf32>
    %144 = arith.mulf %134, %143 : vector<5x5xf32>
    %cst_36 = arith.constant dense<0.000000e+00> : vector<5xf32>
    %145 = vector.multi_reduction <add>, %144, %cst_36 [1] : vector<5x5xf32> to vector<5xf32>
    %146 = vector.shape_cast %145 : vector<5xf32> to vector<5x1xf32>
    %147 = vector.extract_strided_slice %47 {offsets = [2, 0, 0], sizes = [1, 5, 5], strides = [1, 1, 1]} : vector<8x5x5xf32> to vector<1x5x5xf32>
    %148 = vector.shape_cast %147 : vector<1x5x5xf32> to vector<5x5xf32>
    %149 = arith.mulf %134, %148 : vector<5x5xf32>
    %cst_37 = arith.constant dense<0.000000e+00> : vector<5xf32>
    %150 = vector.multi_reduction <add>, %149, %cst_37 [1] : vector<5x5xf32> to vector<5xf32>
    %151 = vector.shape_cast %150 : vector<5xf32> to vector<5x1xf32>
    %152 = vector.extract_strided_slice %47 {offsets = [3, 0, 0], sizes = [1, 5, 5], strides = [1, 1, 1]} : vector<8x5x5xf32> to vector<1x5x5xf32>
    %153 = vector.shape_cast %152 : vector<1x5x5xf32> to vector<5x5xf32>
    %154 = arith.mulf %134, %153 : vector<5x5xf32>
    %cst_38 = arith.constant dense<0.000000e+00> : vector<5xf32>
    %155 = vector.multi_reduction <add>, %154, %cst_38 [1] : vector<5x5xf32> to vector<5xf32>
    %156 = vector.shape_cast %155 : vector<5xf32> to vector<5x1xf32>
    %157 = vector.extract_strided_slice %47 {offsets = [4, 0, 0], sizes = [1, 5, 5], strides = [1, 1, 1]} : vector<8x5x5xf32> to vector<1x5x5xf32>
    %158 = vector.shape_cast %157 : vector<1x5x5xf32> to vector<5x5xf32>
    %159 = arith.mulf %134, %158 : vector<5x5xf32>
    %cst_39 = arith.constant dense<0.000000e+00> : vector<5xf32>
    %160 = vector.multi_reduction <add>, %159, %cst_39 [1] : vector<5x5xf32> to vector<5xf32>
    %161 = vector.shape_cast %160 : vector<5xf32> to vector<5x1xf32>
    %162 = vector.extract_strided_slice %47 {offsets = [5, 0, 0], sizes = [1, 5, 5], strides = [1, 1, 1]} : vector<8x5x5xf32> to vector<1x5x5xf32>
    %163 = vector.shape_cast %162 : vector<1x5x5xf32> to vector<5x5xf32>
    %164 = arith.mulf %134, %163 : vector<5x5xf32>
    %cst_40 = arith.constant dense<0.000000e+00> : vector<5xf32>
    %165 = vector.multi_reduction <add>, %164, %cst_40 [1] : vector<5x5xf32> to vector<5xf32>
    %166 = vector.shape_cast %165 : vector<5xf32> to vector<5x1xf32>
    %167 = vector.extract_strided_slice %47 {offsets = [6, 0, 0], sizes = [1, 5, 5], strides = [1, 1, 1]} : vector<8x5x5xf32> to vector<1x5x5xf32>
    %168 = vector.shape_cast %167 : vector<1x5x5xf32> to vector<5x5xf32>
    %169 = arith.mulf %134, %168 : vector<5x5xf32>
    %cst_41 = arith.constant dense<0.000000e+00> : vector<5xf32>
    %170 = vector.multi_reduction <add>, %169, %cst_41 [1] : vector<5x5xf32> to vector<5xf32>
    %171 = vector.shape_cast %170 : vector<5xf32> to vector<5x1xf32>
    %172 = vector.extract_strided_slice %47 {offsets = [7, 0, 0], sizes = [1, 5, 5], strides = [1, 1, 1]} : vector<8x5x5xf32> to vector<1x5x5xf32>
    %173 = vector.shape_cast %172 : vector<1x5x5xf32> to vector<5x5xf32>
    %174 = arith.mulf %134, %173 : vector<5x5xf32>
    %cst_42 = arith.constant dense<0.000000e+00> : vector<5xf32>
    %175 = vector.multi_reduction <add>, %174, %cst_42 [1] : vector<5x5xf32> to vector<5xf32>
    %176 = vector.shape_cast %175 : vector<5xf32> to vector<5x1xf32>
    %177 = tpu.concatenate %141, %146, %151, %156, %161, %166, %171, %176 in 1 : vector<5x1xf32>, vector<5x1xf32>, vector<5x1xf32>, vector<5x1xf32>, vector<5x1xf32>, vector<5x1xf32>, vector<5x1xf32>, vector<5x1xf32> -> vector<5x8xf32>
    %178 = vector.extract_strided_slice %38 {offsets = [0, 32], sizes = [5, 32], strides = [1, 1]} : vector<5x128xf32> to vector<5x32xf32>
    %179 = arith.truncf %178 : vector<5x32xf32> to vector<5x32xbf16>
    %180 = vector.extract_strided_slice %39 {offsets = [0, 32], sizes = [5, 32], strides = [1, 1]} : vector<5x128xf32> to vector<5x32xf32>
    %181 = arith.truncf %180 : vector<5x32xf32> to vector<5x32xbf16>
    %182 = vector.extract_strided_slice %40 {offsets = [0, 32], sizes = [5, 32], strides = [1, 1]} : vector<5x128xf32> to vector<5x32xf32>
    %183 = arith.truncf %182 : vector<5x32xf32> to vector<5x32xbf16>
    "tpu.trace_start"() <{level = 10 : i32, message = "sd,td->st"}> : () -> ()
    %cst_43 = arith.constant dense<0.000000e+00> : vector<5x5xf32>
    %184 = tpu.matmul %179, %181, %cst_43 {dimension_numbers = #tpu.dot_dimension_numbers<[1], [1], [0], [0], [0, 0, 1, 0], [], []>} : vector<5x32xbf16>, vector<5x32xbf16>, vector<5x5xf32> -> vector<5x5xf32>
    "tpu.trace_stop"() : () -> ()
    %185 = vector.extract_strided_slice %43 {offsets = [0, 8], sizes = [5, 8], strides = [1, 1]} : vector<5x32xf32> to vector<5x8xf32>
    %cst_44 = arith.constant 0.000000e+00 : f32
    %186 = vector.broadcast %cst_44 : f32 to vector<5x5xf32>
    %187 = vector.extract_strided_slice %47 {offsets = [0, 0, 0], sizes = [1, 5, 5], strides = [1, 1, 1]} : vector<8x5x5xf32> to vector<1x5x5xf32>
    %188 = vector.shape_cast %187 : vector<1x5x5xf32> to vector<5x5xf32>
    %189 = vector.extract_strided_slice %185 {offsets = [0, 0], sizes = [5, 1], strides = [1, 1]} : vector<5x8xf32> to vector<5x1xf32>
    %190 = vector.shape_cast %189 : vector<5x1xf32> to vector<5xf32>
    %191 = vector.shape_cast %190 : vector<5xf32> to vector<5x1xf32>
    %192 = vector.broadcast %191 : vector<5x1xf32> to vector<5x5xf32>
    %193 = arith.mulf %188, %192 : vector<5x5xf32>
    %194 = arith.addf %186, %193 : vector<5x5xf32>
    %195 = vector.extract_strided_slice %47 {offsets = [1, 0, 0], sizes = [1, 5, 5], strides = [1, 1, 1]} : vector<8x5x5xf32> to vector<1x5x5xf32>
    %196 = vector.shape_cast %195 : vector<1x5x5xf32> to vector<5x5xf32>
    %197 = vector.extract_strided_slice %185 {offsets = [0, 1], sizes = [5, 1], strides = [1, 1]} : vector<5x8xf32> to vector<5x1xf32>
    %198 = vector.shape_cast %197 : vector<5x1xf32> to vector<5xf32>
    %199 = vector.shape_cast %198 : vector<5xf32> to vector<5x1xf32>
    %200 = vector.broadcast %199 : vector<5x1xf32> to vector<5x5xf32>
    %201 = arith.mulf %196, %200 : vector<5x5xf32>
    %202 = arith.addf %194, %201 : vector<5x5xf32>
    %203 = vector.extract_strided_slice %47 {offsets = [2, 0, 0], sizes = [1, 5, 5], strides = [1, 1, 1]} : vector<8x5x5xf32> to vector<1x5x5xf32>
    %204 = vector.shape_cast %203 : vector<1x5x5xf32> to vector<5x5xf32>
    %205 = vector.extract_strided_slice %185 {offsets = [0, 2], sizes = [5, 1], strides = [1, 1]} : vector<5x8xf32> to vector<5x1xf32>
    %206 = vector.shape_cast %205 : vector<5x1xf32> to vector<5xf32>
    %207 = vector.shape_cast %206 : vector<5xf32> to vector<5x1xf32>
    %208 = vector.broadcast %207 : vector<5x1xf32> to vector<5x5xf32>
    %209 = arith.mulf %204, %208 : vector<5x5xf32>
    %210 = arith.addf %202, %209 : vector<5x5xf32>
    %211 = vector.extract_strided_slice %47 {offsets = [3, 0, 0], sizes = [1, 5, 5], strides = [1, 1, 1]} : vector<8x5x5xf32> to vector<1x5x5xf32>
    %212 = vector.shape_cast %211 : vector<1x5x5xf32> to vector<5x5xf32>
    %213 = vector.extract_strided_slice %185 {offsets = [0, 3], sizes = [5, 1], strides = [1, 1]} : vector<5x8xf32> to vector<5x1xf32>
    %214 = vector.shape_cast %213 : vector<5x1xf32> to vector<5xf32>
    %215 = vector.shape_cast %214 : vector<5xf32> to vector<5x1xf32>
    %216 = vector.broadcast %215 : vector<5x1xf32> to vector<5x5xf32>
    %217 = arith.mulf %212, %216 : vector<5x5xf32>
    %218 = arith.addf %210, %217 : vector<5x5xf32>
    %219 = vector.extract_strided_slice %47 {offsets = [4, 0, 0], sizes = [1, 5, 5], strides = [1, 1, 1]} : vector<8x5x5xf32> to vector<1x5x5xf32>
    %220 = vector.shape_cast %219 : vector<1x5x5xf32> to vector<5x5xf32>
    %221 = vector.extract_strided_slice %185 {offsets = [0, 4], sizes = [5, 1], strides = [1, 1]} : vector<5x8xf32> to vector<5x1xf32>
    %222 = vector.shape_cast %221 : vector<5x1xf32> to vector<5xf32>
    %223 = vector.shape_cast %222 : vector<5xf32> to vector<5x1xf32>
    %224 = vector.broadcast %223 : vector<5x1xf32> to vector<5x5xf32>
    %225 = arith.mulf %220, %224 : vector<5x5xf32>
    %226 = arith.addf %218, %225 : vector<5x5xf32>
    %227 = vector.extract_strided_slice %47 {offsets = [5, 0, 0], sizes = [1, 5, 5], strides = [1, 1, 1]} : vector<8x5x5xf32> to vector<1x5x5xf32>
    %228 = vector.shape_cast %227 : vector<1x5x5xf32> to vector<5x5xf32>
    %229 = vector.extract_strided_slice %185 {offsets = [0, 5], sizes = [5, 1], strides = [1, 1]} : vector<5x8xf32> to vector<5x1xf32>
    %230 = vector.shape_cast %229 : vector<5x1xf32> to vector<5xf32>
    %231 = vector.shape_cast %230 : vector<5xf32> to vector<5x1xf32>
    %232 = vector.broadcast %231 : vector<5x1xf32> to vector<5x5xf32>
    %233 = arith.mulf %228, %232 : vector<5x5xf32>
    %234 = arith.addf %226, %233 : vector<5x5xf32>
    %235 = vector.extract_strided_slice %47 {offsets = [6, 0, 0], sizes = [1, 5, 5], strides = [1, 1, 1]} : vector<8x5x5xf32> to vector<1x5x5xf32>
    %236 = vector.shape_cast %235 : vector<1x5x5xf32> to vector<5x5xf32>
    %237 = vector.extract_strided_slice %185 {offsets = [0, 6], sizes = [5, 1], strides = [1, 1]} : vector<5x8xf32> to vector<5x1xf32>
    %238 = vector.shape_cast %237 : vector<5x1xf32> to vector<5xf32>
    %239 = vector.shape_cast %238 : vector<5xf32> to vector<5x1xf32>
    %240 = vector.broadcast %239 : vector<5x1xf32> to vector<5x5xf32>
    %241 = arith.mulf %236, %240 : vector<5x5xf32>
    %242 = arith.addf %234, %241 : vector<5x5xf32>
    %243 = vector.extract_strided_slice %47 {offsets = [7, 0, 0], sizes = [1, 5, 5], strides = [1, 1, 1]} : vector<8x5x5xf32> to vector<1x5x5xf32>
    %244 = vector.shape_cast %243 : vector<1x5x5xf32> to vector<5x5xf32>
    %245 = vector.extract_strided_slice %185 {offsets = [0, 7], sizes = [5, 1], strides = [1, 1]} : vector<5x8xf32> to vector<5x1xf32>
    %246 = vector.shape_cast %245 : vector<5x1xf32> to vector<5xf32>
    %247 = vector.shape_cast %246 : vector<5xf32> to vector<5x1xf32>
    %248 = vector.broadcast %247 : vector<5x1xf32> to vector<5x5xf32>
    %249 = arith.mulf %244, %248 : vector<5x5xf32>
    %250 = arith.addf %242, %249 : vector<5x5xf32>
    %251 = arith.addf %184, %250 : vector<5x5xf32>
    %cst_45 = arith.constant 0.176776692 : f32
    %252 = vector.broadcast %cst_45 : f32 to vector<5x5xf32>
    %253 = arith.mulf %251, %252 : vector<5x5xf32>
    %254 = arith.addf %253, %45 : vector<5x5xf32>
    %cst_46 = arith.constant dense<0xFF800000> : vector<5xf32>
    %255 = vector.multi_reduction <maximumf>, %254, %cst_46 [1] : vector<5x5xf32> to vector<5xf32>
    %256 = vector.shape_cast %255 : vector<5xf32> to vector<5x1xf32>
    %257 = vector.broadcast %256 : vector<5x1xf32> to vector<5x5xf32>
    %258 = arith.subf %254, %257 : vector<5x5xf32>
    %259 = math.exp %258 : vector<5x5xf32>
    %cst_47 = arith.constant dense<0.000000e+00> : vector<5xf32>
    %260 = vector.multi_reduction <add>, %259, %cst_47 [1] : vector<5x5xf32> to vector<5xf32>
    %261 = vector.shape_cast %260 : vector<5xf32> to vector<5x1xf32>
    %262 = tpu.reciprocal %261 {approx = true} : vector<5x1xf32> -> vector<5x1xf32>
    %263 = vector.broadcast %262 : vector<5x1xf32> to vector<5x5xf32>
    %264 = arith.mulf %259, %263 : vector<5x5xf32>
    %265 = arith.truncf %264 : vector<5x5xf32> to vector<5x5xbf16>
    "tpu.trace_start"() <{level = 10 : i32, message = "st,td->sd"}> : () -> ()
    %cst_48 = arith.constant dense<0.000000e+00> : vector<5x32xf32>
    %266 = tpu.matmul %265, %183, %cst_48 {dimension_numbers = #tpu.dot_dimension_numbers<[1], [0], [0], [1], [0, 0, 1, 1], [], []>} : vector<5x5xbf16>, vector<5x32xbf16>, vector<5x32xf32> -> vector<5x32xf32>
    "tpu.trace_stop"() : () -> ()
    %267 = vector.extract_strided_slice %47 {offsets = [0, 0, 0], sizes = [1, 5, 5], strides = [1, 1, 1]} : vector<8x5x5xf32> to vector<1x5x5xf32>
    %268 = vector.shape_cast %267 : vector<1x5x5xf32> to vector<5x5xf32>
    %269 = arith.mulf %264, %268 : vector<5x5xf32>
    %cst_49 = arith.constant dense<0.000000e+00> : vector<5xf32>
    %270 = vector.multi_reduction <add>, %269, %cst_49 [1] : vector<5x5xf32> to vector<5xf32>
    %271 = vector.shape_cast %270 : vector<5xf32> to vector<5x1xf32>
    %272 = vector.extract_strided_slice %47 {offsets = [1, 0, 0], sizes = [1, 5, 5], strides = [1, 1, 1]} : vector<8x5x5xf32> to vector<1x5x5xf32>
    %273 = vector.shape_cast %272 : vector<1x5x5xf32> to vector<5x5xf32>
    %274 = arith.mulf %264, %273 : vector<5x5xf32>
    %cst_50 = arith.constant dense<0.000000e+00> : vector<5xf32>
    %275 = vector.multi_reduction <add>, %274, %cst_50 [1] : vector<5x5xf32> to vector<5xf32>
    %276 = vector.shape_cast %275 : vector<5xf32> to vector<5x1xf32>
    %277 = vector.extract_strided_slice %47 {offsets = [2, 0, 0], sizes = [1, 5, 5], strides = [1, 1, 1]} : vector<8x5x5xf32> to vector<1x5x5xf32>
    %278 = vector.shape_cast %277 : vector<1x5x5xf32> to vector<5x5xf32>
    %279 = arith.mulf %264, %278 : vector<5x5xf32>
    %cst_51 = arith.constant dense<0.000000e+00> : vector<5xf32>
    %280 = vector.multi_reduction <add>, %279, %cst_51 [1] : vector<5x5xf32> to vector<5xf32>
    %281 = vector.shape_cast %280 : vector<5xf32> to vector<5x1xf32>
    %282 = vector.extract_strided_slice %47 {offsets = [3, 0, 0], sizes = [1, 5, 5], strides = [1, 1, 1]} : vector<8x5x5xf32> to vector<1x5x5xf32>
    %283 = vector.shape_cast %282 : vector<1x5x5xf32> to vector<5x5xf32>
    %284 = arith.mulf %264, %283 : vector<5x5xf32>
    %cst_52 = arith.constant dense<0.000000e+00> : vector<5xf32>
    %285 = vector.multi_reduction <add>, %284, %cst_52 [1] : vector<5x5xf32> to vector<5xf32>
    %286 = vector.shape_cast %285 : vector<5xf32> to vector<5x1xf32>
    %287 = vector.extract_strided_slice %47 {offsets = [4, 0, 0], sizes = [1, 5, 5], strides = [1, 1, 1]} : vector<8x5x5xf32> to vector<1x5x5xf32>
    %288 = vector.shape_cast %287 : vector<1x5x5xf32> to vector<5x5xf32>
    %289 = arith.mulf %264, %288 : vector<5x5xf32>
    %cst_53 = arith.constant dense<0.000000e+00> : vector<5xf32>
    %290 = vector.multi_reduction <add>, %289, %cst_53 [1] : vector<5x5xf32> to vector<5xf32>
    %291 = vector.shape_cast %290 : vector<5xf32> to vector<5x1xf32>
    %292 = vector.extract_strided_slice %47 {offsets = [5, 0, 0], sizes = [1, 5, 5], strides = [1, 1, 1]} : vector<8x5x5xf32> to vector<1x5x5xf32>
    %293 = vector.shape_cast %292 : vector<1x5x5xf32> to vector<5x5xf32>
    %294 = arith.mulf %264, %293 : vector<5x5xf32>
    %cst_54 = arith.constant dense<0.000000e+00> : vector<5xf32>
    %295 = vector.multi_reduction <add>, %294, %cst_54 [1] : vector<5x5xf32> to vector<5xf32>
    %296 = vector.shape_cast %295 : vector<5xf32> to vector<5x1xf32>
    %297 = vector.extract_strided_slice %47 {offsets = [6, 0, 0], sizes = [1, 5, 5], strides = [1, 1, 1]} : vector<8x5x5xf32> to vector<1x5x5xf32>
    %298 = vector.shape_cast %297 : vector<1x5x5xf32> to vector<5x5xf32>
    %299 = arith.mulf %264, %298 : vector<5x5xf32>
    %cst_55 = arith.constant dense<0.000000e+00> : vector<5xf32>
    %300 = vector.multi_reduction <add>, %299, %cst_55 [1] : vector<5x5xf32> to vector<5xf32>
    %301 = vector.shape_cast %300 : vector<5xf32> to vector<5x1xf32>
    %302 = vector.extract_strided_slice %47 {offsets = [7, 0, 0], sizes = [1, 5, 5], strides = [1, 1, 1]} : vector<8x5x5xf32> to vector<1x5x5xf32>
    %303 = vector.shape_cast %302 : vector<1x5x5xf32> to vector<5x5xf32>
    %304 = arith.mulf %264, %303 : vector<5x5xf32>
    %cst_56 = arith.constant dense<0.000000e+00> : vector<5xf32>
    %305 = vector.multi_reduction <add>, %304, %cst_56 [1] : vector<5x5xf32> to vector<5xf32>
    %306 = vector.shape_cast %305 : vector<5xf32> to vector<5x1xf32>
    %307 = tpu.concatenate %271, %276, %281, %286, %291, %296, %301, %306 in 1 : vector<5x1xf32>, vector<5x1xf32>, vector<5x1xf32>, vector<5x1xf32>, vector<5x1xf32>, vector<5x1xf32>, vector<5x1xf32>, vector<5x1xf32> -> vector<5x8xf32>
    %308 = vector.extract_strided_slice %38 {offsets = [0, 64], sizes = [5, 32], strides = [1, 1]} : vector<5x128xf32> to vector<5x32xf32>
    %309 = arith.truncf %308 : vector<5x32xf32> to vector<5x32xbf16>
    %310 = vector.extract_strided_slice %39 {offsets = [0, 64], sizes = [5, 32], strides = [1, 1]} : vector<5x128xf32> to vector<5x32xf32>
    %311 = arith.truncf %310 : vector<5x32xf32> to vector<5x32xbf16>
    %312 = vector.extract_strided_slice %40 {offsets = [0, 64], sizes = [5, 32], strides = [1, 1]} : vector<5x128xf32> to vector<5x32xf32>
    %313 = arith.truncf %312 : vector<5x32xf32> to vector<5x32xbf16>
    "tpu.trace_start"() <{level = 10 : i32, message = "sd,td->st"}> : () -> ()
    %cst_57 = arith.constant dense<0.000000e+00> : vector<5x5xf32>
    %314 = tpu.matmul %309, %311, %cst_57 {dimension_numbers = #tpu.dot_dimension_numbers<[1], [1], [0], [0], [0, 0, 1, 0], [], []>} : vector<5x32xbf16>, vector<5x32xbf16>, vector<5x5xf32> -> vector<5x5xf32>
    "tpu.trace_stop"() : () -> ()
    %315 = vector.extract_strided_slice %43 {offsets = [0, 16], sizes = [5, 8], strides = [1, 1]} : vector<5x32xf32> to vector<5x8xf32>
    %cst_58 = arith.constant 0.000000e+00 : f32
    %316 = vector.broadcast %cst_58 : f32 to vector<5x5xf32>
    %317 = vector.extract_strided_slice %47 {offsets = [0, 0, 0], sizes = [1, 5, 5], strides = [1, 1, 1]} : vector<8x5x5xf32> to vector<1x5x5xf32>
    %318 = vector.shape_cast %317 : vector<1x5x5xf32> to vector<5x5xf32>
    %319 = vector.extract_strided_slice %315 {offsets = [0, 0], sizes = [5, 1], strides = [1, 1]} : vector<5x8xf32> to vector<5x1xf32>
    %320 = vector.shape_cast %319 : vector<5x1xf32> to vector<5xf32>
    %321 = vector.shape_cast %320 : vector<5xf32> to vector<5x1xf32>
    %322 = vector.broadcast %321 : vector<5x1xf32> to vector<5x5xf32>
    %323 = arith.mulf %318, %322 : vector<5x5xf32>
    %324 = arith.addf %316, %323 : vector<5x5xf32>
    %325 = vector.extract_strided_slice %47 {offsets = [1, 0, 0], sizes = [1, 5, 5], strides = [1, 1, 1]} : vector<8x5x5xf32> to vector<1x5x5xf32>
    %326 = vector.shape_cast %325 : vector<1x5x5xf32> to vector<5x5xf32>
    %327 = vector.extract_strided_slice %315 {offsets = [0, 1], sizes = [5, 1], strides = [1, 1]} : vector<5x8xf32> to vector<5x1xf32>
    %328 = vector.shape_cast %327 : vector<5x1xf32> to vector<5xf32>
    %329 = vector.shape_cast %328 : vector<5xf32> to vector<5x1xf32>
    %330 = vector.broadcast %329 : vector<5x1xf32> to vector<5x5xf32>
    %331 = arith.mulf %326, %330 : vector<5x5xf32>
    %332 = arith.addf %324, %331 : vector<5x5xf32>
    %333 = vector.extract_strided_slice %47 {offsets = [2, 0, 0], sizes = [1, 5, 5], strides = [1, 1, 1]} : vector<8x5x5xf32> to vector<1x5x5xf32>
    %334 = vector.shape_cast %333 : vector<1x5x5xf32> to vector<5x5xf32>
    %335 = vector.extract_strided_slice %315 {offsets = [0, 2], sizes = [5, 1], strides = [1, 1]} : vector<5x8xf32> to vector<5x1xf32>
    %336 = vector.shape_cast %335 : vector<5x1xf32> to vector<5xf32>
    %337 = vector.shape_cast %336 : vector<5xf32> to vector<5x1xf32>
    %338 = vector.broadcast %337 : vector<5x1xf32> to vector<5x5xf32>
    %339 = arith.mulf %334, %338 : vector<5x5xf32>
    %340 = arith.addf %332, %339 : vector<5x5xf32>
    %341 = vector.extract_strided_slice %47 {offsets = [3, 0, 0], sizes = [1, 5, 5], strides = [1, 1, 1]} : vector<8x5x5xf32> to vector<1x5x5xf32>
    %342 = vector.shape_cast %341 : vector<1x5x5xf32> to vector<5x5xf32>
    %343 = vector.extract_strided_slice %315 {offsets = [0, 3], sizes = [5, 1], strides = [1, 1]} : vector<5x8xf32> to vector<5x1xf32>
    %344 = vector.shape_cast %343 : vector<5x1xf32> to vector<5xf32>
    %345 = vector.shape_cast %344 : vector<5xf32> to vector<5x1xf32>
    %346 = vector.broadcast %345 : vector<5x1xf32> to vector<5x5xf32>
    %347 = arith.mulf %342, %346 : vector<5x5xf32>
    %348 = arith.addf %340, %347 : vector<5x5xf32>
    %349 = vector.extract_strided_slice %47 {offsets = [4, 0, 0], sizes = [1, 5, 5], strides = [1, 1, 1]} : vector<8x5x5xf32> to vector<1x5x5xf32>
    %350 = vector.shape_cast %349 : vector<1x5x5xf32> to vector<5x5xf32>
    %351 = vector.extract_strided_slice %315 {offsets = [0, 4], sizes = [5, 1], strides = [1, 1]} : vector<5x8xf32> to vector<5x1xf32>
    %352 = vector.shape_cast %351 : vector<5x1xf32> to vector<5xf32>
    %353 = vector.shape_cast %352 : vector<5xf32> to vector<5x1xf32>
    %354 = vector.broadcast %353 : vector<5x1xf32> to vector<5x5xf32>
    %355 = arith.mulf %350, %354 : vector<5x5xf32>
    %356 = arith.addf %348, %355 : vector<5x5xf32>
    %357 = vector.extract_strided_slice %47 {offsets = [5, 0, 0], sizes = [1, 5, 5], strides = [1, 1, 1]} : vector<8x5x5xf32> to vector<1x5x5xf32>
    %358 = vector.shape_cast %357 : vector<1x5x5xf32> to vector<5x5xf32>
    %359 = vector.extract_strided_slice %315 {offsets = [0, 5], sizes = [5, 1], strides = [1, 1]} : vector<5x8xf32> to vector<5x1xf32>
    %360 = vector.shape_cast %359 : vector<5x1xf32> to vector<5xf32>
    %361 = vector.shape_cast %360 : vector<5xf32> to vector<5x1xf32>
    %362 = vector.broadcast %361 : vector<5x1xf32> to vector<5x5xf32>
    %363 = arith.mulf %358, %362 : vector<5x5xf32>
    %364 = arith.addf %356, %363 : vector<5x5xf32>
    %365 = vector.extract_strided_slice %47 {offsets = [6, 0, 0], sizes = [1, 5, 5], strides = [1, 1, 1]} : vector<8x5x5xf32> to vector<1x5x5xf32>
    %366 = vector.shape_cast %365 : vector<1x5x5xf32> to vector<5x5xf32>
    %367 = vector.extract_strided_slice %315 {offsets = [0, 6], sizes = [5, 1], strides = [1, 1]} : vector<5x8xf32> to vector<5x1xf32>
    %368 = vector.shape_cast %367 : vector<5x1xf32> to vector<5xf32>
    %369 = vector.shape_cast %368 : vector<5xf32> to vector<5x1xf32>
    %370 = vector.broadcast %369 : vector<5x1xf32> to vector<5x5xf32>
    %371 = arith.mulf %366, %370 : vector<5x5xf32>
    %372 = arith.addf %364, %371 : vector<5x5xf32>
    %373 = vector.extract_strided_slice %47 {offsets = [7, 0, 0], sizes = [1, 5, 5], strides = [1, 1, 1]} : vector<8x5x5xf32> to vector<1x5x5xf32>
    %374 = vector.shape_cast %373 : vector<1x5x5xf32> to vector<5x5xf32>
    %375 = vector.extract_strided_slice %315 {offsets = [0, 7], sizes = [5, 1], strides = [1, 1]} : vector<5x8xf32> to vector<5x1xf32>
    %376 = vector.shape_cast %375 : vector<5x1xf32> to vector<5xf32>
    %377 = vector.shape_cast %376 : vector<5xf32> to vector<5x1xf32>
    %378 = vector.broadcast %377 : vector<5x1xf32> to vector<5x5xf32>
    %379 = arith.mulf %374, %378 : vector<5x5xf32>
    %380 = arith.addf %372, %379 : vector<5x5xf32>
    %381 = arith.addf %314, %380 : vector<5x5xf32>
    %cst_59 = arith.constant 0.176776692 : f32
    %382 = vector.broadcast %cst_59 : f32 to vector<5x5xf32>
    %383 = arith.mulf %381, %382 : vector<5x5xf32>
    %384 = arith.addf %383, %45 : vector<5x5xf32>
    %cst_60 = arith.constant dense<0xFF800000> : vector<5xf32>
    %385 = vector.multi_reduction <maximumf>, %384, %cst_60 [1] : vector<5x5xf32> to vector<5xf32>
    %386 = vector.shape_cast %385 : vector<5xf32> to vector<5x1xf32>
    %387 = vector.broadcast %386 : vector<5x1xf32> to vector<5x5xf32>
    %388 = arith.subf %384, %387 : vector<5x5xf32>
    %389 = math.exp %388 : vector<5x5xf32>
    %cst_61 = arith.constant dense<0.000000e+00> : vector<5xf32>
    %390 = vector.multi_reduction <add>, %389, %cst_61 [1] : vector<5x5xf32> to vector<5xf32>
    %391 = vector.shape_cast %390 : vector<5xf32> to vector<5x1xf32>
    %392 = tpu.reciprocal %391 {approx = true} : vector<5x1xf32> -> vector<5x1xf32>
    %393 = vector.broadcast %392 : vector<5x1xf32> to vector<5x5xf32>
    %394 = arith.mulf %389, %393 : vector<5x5xf32>
    %395 = arith.truncf %394 : vector<5x5xf32> to vector<5x5xbf16>
    "tpu.trace_start"() <{level = 10 : i32, message = "st,td->sd"}> : () -> ()
    %cst_62 = arith.constant dense<0.000000e+00> : vector<5x32xf32>
    %396 = tpu.matmul %395, %313, %cst_62 {dimension_numbers = #tpu.dot_dimension_numbers<[1], [0], [0], [1], [0, 0, 1, 1], [], []>} : vector<5x5xbf16>, vector<5x32xbf16>, vector<5x32xf32> -> vector<5x32xf32>
    "tpu.trace_stop"() : () -> ()
    %397 = vector.extract_strided_slice %47 {offsets = [0, 0, 0], sizes = [1, 5, 5], strides = [1, 1, 1]} : vector<8x5x5xf32> to vector<1x5x5xf32>
    %398 = vector.shape_cast %397 : vector<1x5x5xf32> to vector<5x5xf32>
    %399 = arith.mulf %394, %398 : vector<5x5xf32>
    %cst_63 = arith.constant dense<0.000000e+00> : vector<5xf32>
    %400 = vector.multi_reduction <add>, %399, %cst_63 [1] : vector<5x5xf32> to vector<5xf32>
    %401 = vector.shape_cast %400 : vector<5xf32> to vector<5x1xf32>
    %402 = vector.extract_strided_slice %47 {offsets = [1, 0, 0], sizes = [1, 5, 5], strides = [1, 1, 1]} : vector<8x5x5xf32> to vector<1x5x5xf32>
    %403 = vector.shape_cast %402 : vector<1x5x5xf32> to vector<5x5xf32>
    %404 = arith.mulf %394, %403 : vector<5x5xf32>
    %cst_64 = arith.constant dense<0.000000e+00> : vector<5xf32>
    %405 = vector.multi_reduction <add>, %404, %cst_64 [1] : vector<5x5xf32> to vector<5xf32>
    %406 = vector.shape_cast %405 : vector<5xf32> to vector<5x1xf32>
    %407 = vector.extract_strided_slice %47 {offsets = [2, 0, 0], sizes = [1, 5, 5], strides = [1, 1, 1]} : vector<8x5x5xf32> to vector<1x5x5xf32>
    %408 = vector.shape_cast %407 : vector<1x5x5xf32> to vector<5x5xf32>
    %409 = arith.mulf %394, %408 : vector<5x5xf32>
    %cst_65 = arith.constant dense<0.000000e+00> : vector<5xf32>
    %410 = vector.multi_reduction <add>, %409, %cst_65 [1] : vector<5x5xf32> to vector<5xf32>
    %411 = vector.shape_cast %410 : vector<5xf32> to vector<5x1xf32>
    %412 = vector.extract_strided_slice %47 {offsets = [3, 0, 0], sizes = [1, 5, 5], strides = [1, 1, 1]} : vector<8x5x5xf32> to vector<1x5x5xf32>
    %413 = vector.shape_cast %412 : vector<1x5x5xf32> to vector<5x5xf32>
    %414 = arith.mulf %394, %413 : vector<5x5xf32>
    %cst_66 = arith.constant dense<0.000000e+00> : vector<5xf32>
    %415 = vector.multi_reduction <add>, %414, %cst_66 [1] : vector<5x5xf32> to vector<5xf32>
    %416 = vector.shape_cast %415 : vector<5xf32> to vector<5x1xf32>
    %417 = vector.extract_strided_slice %47 {offsets = [4, 0, 0], sizes = [1, 5, 5], strides = [1, 1, 1]} : vector<8x5x5xf32> to vector<1x5x5xf32>
    %418 = vector.shape_cast %417 : vector<1x5x5xf32> to vector<5x5xf32>
    %419 = arith.mulf %394, %418 : vector<5x5xf32>
    %cst_67 = arith.constant dense<0.000000e+00> : vector<5xf32>
    %420 = vector.multi_reduction <add>, %419, %cst_67 [1] : vector<5x5xf32> to vector<5xf32>
    %421 = vector.shape_cast %420 : vector<5xf32> to vector<5x1xf32>
    %422 = vector.extract_strided_slice %47 {offsets = [5, 0, 0], sizes = [1, 5, 5], strides = [1, 1, 1]} : vector<8x5x5xf32> to vector<1x5x5xf32>
    %423 = vector.shape_cast %422 : vector<1x5x5xf32> to vector<5x5xf32>
    %424 = arith.mulf %394, %423 : vector<5x5xf32>
    %cst_68 = arith.constant dense<0.000000e+00> : vector<5xf32>
    %425 = vector.multi_reduction <add>, %424, %cst_68 [1] : vector<5x5xf32> to vector<5xf32>
    %426 = vector.shape_cast %425 : vector<5xf32> to vector<5x1xf32>
    %427 = vector.extract_strided_slice %47 {offsets = [6, 0, 0], sizes = [1, 5, 5], strides = [1, 1, 1]} : vector<8x5x5xf32> to vector<1x5x5xf32>
    %428 = vector.shape_cast %427 : vector<1x5x5xf32> to vector<5x5xf32>
    %429 = arith.mulf %394, %428 : vector<5x5xf32>
    %cst_69 = arith.constant dense<0.000000e+00> : vector<5xf32>
    %430 = vector.multi_reduction <add>, %429, %cst_69 [1] : vector<5x5xf32> to vector<5xf32>
    %431 = vector.shape_cast %430 : vector<5xf32> to vector<5x1xf32>
    %432 = vector.extract_strided_slice %47 {offsets = [7, 0, 0], sizes = [1, 5, 5], strides = [1, 1, 1]} : vector<8x5x5xf32> to vector<1x5x5xf32>
    %433 = vector.shape_cast %432 : vector<1x5x5xf32> to vector<5x5xf32>
    %434 = arith.mulf %394, %433 : vector<5x5xf32>
    %cst_70 = arith.constant dense<0.000000e+00> : vector<5xf32>
    %435 = vector.multi_reduction <add>, %434, %cst_70 [1] : vector<5x5xf32> to vector<5xf32>
    %436 = vector.shape_cast %435 : vector<5xf32> to vector<5x1xf32>
    %437 = tpu.concatenate %401, %406, %411, %416, %421, %426, %431, %436 in 1 : vector<5x1xf32>, vector<5x1xf32>, vector<5x1xf32>, vector<5x1xf32>, vector<5x1xf32>, vector<5x1xf32>, vector<5x1xf32>, vector<5x1xf32> -> vector<5x8xf32>
    %438 = vector.extract_strided_slice %38 {offsets = [0, 96], sizes = [5, 32], strides = [1, 1]} : vector<5x128xf32> to vector<5x32xf32>
    %439 = arith.truncf %438 : vector<5x32xf32> to vector<5x32xbf16>
    %440 = vector.extract_strided_slice %39 {offsets = [0, 96], sizes = [5, 32], strides = [1, 1]} : vector<5x128xf32> to vector<5x32xf32>
    %441 = arith.truncf %440 : vector<5x32xf32> to vector<5x32xbf16>
    %442 = vector.extract_strided_slice %40 {offsets = [0, 96], sizes = [5, 32], strides = [1, 1]} : vector<5x128xf32> to vector<5x32xf32>
    %443 = arith.truncf %442 : vector<5x32xf32> to vector<5x32xbf16>
    "tpu.trace_start"() <{level = 10 : i32, message = "sd,td->st"}> : () -> ()
    %cst_71 = arith.constant dense<0.000000e+00> : vector<5x5xf32>
    %444 = tpu.matmul %439, %441, %cst_71 {dimension_numbers = #tpu.dot_dimension_numbers<[1], [1], [0], [0], [0, 0, 1, 0], [], []>} : vector<5x32xbf16>, vector<5x32xbf16>, vector<5x5xf32> -> vector<5x5xf32>
    "tpu.trace_stop"() : () -> ()
    %445 = vector.extract_strided_slice %43 {offsets = [0, 24], sizes = [5, 8], strides = [1, 1]} : vector<5x32xf32> to vector<5x8xf32>
    %cst_72 = arith.constant 0.000000e+00 : f32
    %446 = vector.broadcast %cst_72 : f32 to vector<5x5xf32>
    %447 = vector.extract_strided_slice %47 {offsets = [0, 0, 0], sizes = [1, 5, 5], strides = [1, 1, 1]} : vector<8x5x5xf32> to vector<1x5x5xf32>
    %448 = vector.shape_cast %447 : vector<1x5x5xf32> to vector<5x5xf32>
    %449 = vector.extract_strided_slice %445 {offsets = [0, 0], sizes = [5, 1], strides = [1, 1]} : vector<5x8xf32> to vector<5x1xf32>
    %450 = vector.shape_cast %449 : vector<5x1xf32> to vector<5xf32>
    %451 = vector.shape_cast %450 : vector<5xf32> to vector<5x1xf32>
    %452 = vector.broadcast %451 : vector<5x1xf32> to vector<5x5xf32>
    %453 = arith.mulf %448, %452 : vector<5x5xf32>
    %454 = arith.addf %446, %453 : vector<5x5xf32>
    %455 = vector.extract_strided_slice %47 {offsets = [1, 0, 0], sizes = [1, 5, 5], strides = [1, 1, 1]} : vector<8x5x5xf32> to vector<1x5x5xf32>
    %456 = vector.shape_cast %455 : vector<1x5x5xf32> to vector<5x5xf32>
    %457 = vector.extract_strided_slice %445 {offsets = [0, 1], sizes = [5, 1], strides = [1, 1]} : vector<5x8xf32> to vector<5x1xf32>
    %458 = vector.shape_cast %457 : vector<5x1xf32> to vector<5xf32>
    %459 = vector.shape_cast %458 : vector<5xf32> to vector<5x1xf32>
    %460 = vector.broadcast %459 : vector<5x1xf32> to vector<5x5xf32>
    %461 = arith.mulf %456, %460 : vector<5x5xf32>
    %462 = arith.addf %454, %461 : vector<5x5xf32>
    %463 = vector.extract_strided_slice %47 {offsets = [2, 0, 0], sizes = [1, 5, 5], strides = [1, 1, 1]} : vector<8x5x5xf32> to vector<1x5x5xf32>
    %464 = vector.shape_cast %463 : vector<1x5x5xf32> to vector<5x5xf32>
    %465 = vector.extract_strided_slice %445 {offsets = [0, 2], sizes = [5, 1], strides = [1, 1]} : vector<5x8xf32> to vector<5x1xf32>
    %466 = vector.shape_cast %465 : vector<5x1xf32> to vector<5xf32>
    %467 = vector.shape_cast %466 : vector<5xf32> to vector<5x1xf32>
    %468 = vector.broadcast %467 : vector<5x1xf32> to vector<5x5xf32>
    %469 = arith.mulf %464, %468 : vector<5x5xf32>
    %470 = arith.addf %462, %469 : vector<5x5xf32>
    %471 = vector.extract_strided_slice %47 {offsets = [3, 0, 0], sizes = [1, 5, 5], strides = [1, 1, 1]} : vector<8x5x5xf32> to vector<1x5x5xf32>
    %472 = vector.shape_cast %471 : vector<1x5x5xf32> to vector<5x5xf32>
    %473 = vector.extract_strided_slice %445 {offsets = [0, 3], sizes = [5, 1], strides = [1, 1]} : vector<5x8xf32> to vector<5x1xf32>
    %474 = vector.shape_cast %473 : vector<5x1xf32> to vector<5xf32>
    %475 = vector.shape_cast %474 : vector<5xf32> to vector<5x1xf32>
    %476 = vector.broadcast %475 : vector<5x1xf32> to vector<5x5xf32>
    %477 = arith.mulf %472, %476 : vector<5x5xf32>
    %478 = arith.addf %470, %477 : vector<5x5xf32>
    %479 = vector.extract_strided_slice %47 {offsets = [4, 0, 0], sizes = [1, 5, 5], strides = [1, 1, 1]} : vector<8x5x5xf32> to vector<1x5x5xf32>
    %480 = vector.shape_cast %479 : vector<1x5x5xf32> to vector<5x5xf32>
    %481 = vector.extract_strided_slice %445 {offsets = [0, 4], sizes = [5, 1], strides = [1, 1]} : vector<5x8xf32> to vector<5x1xf32>
    %482 = vector.shape_cast %481 : vector<5x1xf32> to vector<5xf32>
    %483 = vector.shape_cast %482 : vector<5xf32> to vector<5x1xf32>
    %484 = vector.broadcast %483 : vector<5x1xf32> to vector<5x5xf32>
    %485 = arith.mulf %480, %484 : vector<5x5xf32>
    %486 = arith.addf %478, %485 : vector<5x5xf32>
    %487 = vector.extract_strided_slice %47 {offsets = [5, 0, 0], sizes = [1, 5, 5], strides = [1, 1, 1]} : vector<8x5x5xf32> to vector<1x5x5xf32>
    %488 = vector.shape_cast %487 : vector<1x5x5xf32> to vector<5x5xf32>
    %489 = vector.extract_strided_slice %445 {offsets = [0, 5], sizes = [5, 1], strides = [1, 1]} : vector<5x8xf32> to vector<5x1xf32>
    %490 = vector.shape_cast %489 : vector<5x1xf32> to vector<5xf32>
    %491 = vector.shape_cast %490 : vector<5xf32> to vector<5x1xf32>
    %492 = vector.broadcast %491 : vector<5x1xf32> to vector<5x5xf32>
    %493 = arith.mulf %488, %492 : vector<5x5xf32>
    %494 = arith.addf %486, %493 : vector<5x5xf32>
    %495 = vector.extract_strided_slice %47 {offsets = [6, 0, 0], sizes = [1, 5, 5], strides = [1, 1, 1]} : vector<8x5x5xf32> to vector<1x5x5xf32>
    %496 = vector.shape_cast %495 : vector<1x5x5xf32> to vector<5x5xf32>
    %497 = vector.extract_strided_slice %445 {offsets = [0, 6], sizes = [5, 1], strides = [1, 1]} : vector<5x8xf32> to vector<5x1xf32>
    %498 = vector.shape_cast %497 : vector<5x1xf32> to vector<5xf32>
    %499 = vector.shape_cast %498 : vector<5xf32> to vector<5x1xf32>
    %500 = vector.broadcast %499 : vector<5x1xf32> to vector<5x5xf32>
    %501 = arith.mulf %496, %500 : vector<5x5xf32>
    %502 = arith.addf %494, %501 : vector<5x5xf32>
    %503 = vector.extract_strided_slice %47 {offsets = [7, 0, 0], sizes = [1, 5, 5], strides = [1, 1, 1]} : vector<8x5x5xf32> to vector<1x5x5xf32>
    %504 = vector.shape_cast %503 : vector<1x5x5xf32> to vector<5x5xf32>
    %505 = vector.extract_strided_slice %445 {offsets = [0, 7], sizes = [5, 1], strides = [1, 1]} : vector<5x8xf32> to vector<5x1xf32>
    %506 = vector.shape_cast %505 : vector<5x1xf32> to vector<5xf32>
    %507 = vector.shape_cast %506 : vector<5xf32> to vector<5x1xf32>
    %508 = vector.broadcast %507 : vector<5x1xf32> to vector<5x5xf32>
    %509 = arith.mulf %504, %508 : vector<5x5xf32>
    %510 = arith.addf %502, %509 : vector<5x5xf32>
    %511 = arith.addf %444, %510 : vector<5x5xf32>
    %cst_73 = arith.constant 0.176776692 : f32
    %512 = vector.broadcast %cst_73 : f32 to vector<5x5xf32>
    %513 = arith.mulf %511, %512 : vector<5x5xf32>
    %514 = arith.addf %513, %45 : vector<5x5xf32>
    %cst_74 = arith.constant dense<0xFF800000> : vector<5xf32>
    %515 = vector.multi_reduction <maximumf>, %514, %cst_74 [1] : vector<5x5xf32> to vector<5xf32>
    %516 = vector.shape_cast %515 : vector<5xf32> to vector<5x1xf32>
    %517 = vector.broadcast %516 : vector<5x1xf32> to vector<5x5xf32>
    %518 = arith.subf %514, %517 : vector<5x5xf32>
    %519 = math.exp %518 : vector<5x5xf32>
    %cst_75 = arith.constant dense<0.000000e+00> : vector<5xf32>
    %520 = vector.multi_reduction <add>, %519, %cst_75 [1] : vector<5x5xf32> to vector<5xf32>
    %521 = vector.shape_cast %520 : vector<5xf32> to vector<5x1xf32>
    %522 = tpu.reciprocal %521 {approx = true} : vector<5x1xf32> -> vector<5x1xf32>
    %523 = vector.broadcast %522 : vector<5x1xf32> to vector<5x5xf32>
    %524 = arith.mulf %519, %523 : vector<5x5xf32>
    %525 = arith.truncf %524 : vector<5x5xf32> to vector<5x5xbf16>
    "tpu.trace_start"() <{level = 10 : i32, message = "st,td->sd"}> : () -> ()
    %cst_76 = arith.constant dense<0.000000e+00> : vector<5x32xf32>
    %526 = tpu.matmul %525, %443, %cst_76 {dimension_numbers = #tpu.dot_dimension_numbers<[1], [0], [0], [1], [0, 0, 1, 1], [], []>} : vector<5x5xbf16>, vector<5x32xbf16>, vector<5x32xf32> -> vector<5x32xf32>
    "tpu.trace_stop"() : () -> ()
    %527 = vector.extract_strided_slice %47 {offsets = [0, 0, 0], sizes = [1, 5, 5], strides = [1, 1, 1]} : vector<8x5x5xf32> to vector<1x5x5xf32>
    %528 = vector.shape_cast %527 : vector<1x5x5xf32> to vector<5x5xf32>
    %529 = arith.mulf %524, %528 : vector<5x5xf32>
    %cst_77 = arith.constant dense<0.000000e+00> : vector<5xf32>
    %530 = vector.multi_reduction <add>, %529, %cst_77 [1] : vector<5x5xf32> to vector<5xf32>
    %531 = vector.shape_cast %530 : vector<5xf32> to vector<5x1xf32>
    %532 = vector.extract_strided_slice %47 {offsets = [1, 0, 0], sizes = [1, 5, 5], strides = [1, 1, 1]} : vector<8x5x5xf32> to vector<1x5x5xf32>
    %533 = vector.shape_cast %532 : vector<1x5x5xf32> to vector<5x5xf32>
    %534 = arith.mulf %524, %533 : vector<5x5xf32>
    %cst_78 = arith.constant dense<0.000000e+00> : vector<5xf32>
    %535 = vector.multi_reduction <add>, %534, %cst_78 [1] : vector<5x5xf32> to vector<5xf32>
    %536 = vector.shape_cast %535 : vector<5xf32> to vector<5x1xf32>
    %537 = vector.extract_strided_slice %47 {offsets = [2, 0, 0], sizes = [1, 5, 5], strides = [1, 1, 1]} : vector<8x5x5xf32> to vector<1x5x5xf32>
    %538 = vector.shape_cast %537 : vector<1x5x5xf32> to vector<5x5xf32>
    %539 = arith.mulf %524, %538 : vector<5x5xf32>
    %cst_79 = arith.constant dense<0.000000e+00> : vector<5xf32>
    %540 = vector.multi_reduction <add>, %539, %cst_79 [1] : vector<5x5xf32> to vector<5xf32>
    %541 = vector.shape_cast %540 : vector<5xf32> to vector<5x1xf32>
    %542 = vector.extract_strided_slice %47 {offsets = [3, 0, 0], sizes = [1, 5, 5], strides = [1, 1, 1]} : vector<8x5x5xf32> to vector<1x5x5xf32>
    %543 = vector.shape_cast %542 : vector<1x5x5xf32> to vector<5x5xf32>
    %544 = arith.mulf %524, %543 : vector<5x5xf32>
    %cst_80 = arith.constant dense<0.000000e+00> : vector<5xf32>
    %545 = vector.multi_reduction <add>, %544, %cst_80 [1] : vector<5x5xf32> to vector<5xf32>
    %546 = vector.shape_cast %545 : vector<5xf32> to vector<5x1xf32>
    %547 = vector.extract_strided_slice %47 {offsets = [4, 0, 0], sizes = [1, 5, 5], strides = [1, 1, 1]} : vector<8x5x5xf32> to vector<1x5x5xf32>
    %548 = vector.shape_cast %547 : vector<1x5x5xf32> to vector<5x5xf32>
    %549 = arith.mulf %524, %548 : vector<5x5xf32>
    %cst_81 = arith.constant dense<0.000000e+00> : vector<5xf32>
    %550 = vector.multi_reduction <add>, %549, %cst_81 [1] : vector<5x5xf32> to vector<5xf32>
    %551 = vector.shape_cast %550 : vector<5xf32> to vector<5x1xf32>
    %552 = vector.extract_strided_slice %47 {offsets = [5, 0, 0], sizes = [1, 5, 5], strides = [1, 1, 1]} : vector<8x5x5xf32> to vector<1x5x5xf32>
    %553 = vector.shape_cast %552 : vector<1x5x5xf32> to vector<5x5xf32>
    %554 = arith.mulf %524, %553 : vector<5x5xf32>
    %cst_82 = arith.constant dense<0.000000e+00> : vector<5xf32>
    %555 = vector.multi_reduction <add>, %554, %cst_82 [1] : vector<5x5xf32> to vector<5xf32>
    %556 = vector.shape_cast %555 : vector<5xf32> to vector<5x1xf32>
    %557 = vector.extract_strided_slice %47 {offsets = [6, 0, 0], sizes = [1, 5, 5], strides = [1, 1, 1]} : vector<8x5x5xf32> to vector<1x5x5xf32>
    %558 = vector.shape_cast %557 : vector<1x5x5xf32> to vector<5x5xf32>
    %559 = arith.mulf %524, %558 : vector<5x5xf32>
    %cst_83 = arith.constant dense<0.000000e+00> : vector<5xf32>
    %560 = vector.multi_reduction <add>, %559, %cst_83 [1] : vector<5x5xf32> to vector<5xf32>
    %561 = vector.shape_cast %560 : vector<5xf32> to vector<5x1xf32>
    %562 = vector.extract_strided_slice %47 {offsets = [7, 0, 0], sizes = [1, 5, 5], strides = [1, 1, 1]} : vector<8x5x5xf32> to vector<1x5x5xf32>
    %563 = vector.shape_cast %562 : vector<1x5x5xf32> to vector<5x5xf32>
    %564 = arith.mulf %524, %563 : vector<5x5xf32>
    %cst_84 = arith.constant dense<0.000000e+00> : vector<5xf32>
    %565 = vector.multi_reduction <add>, %564, %cst_84 [1] : vector<5x5xf32> to vector<5xf32>
    %566 = vector.shape_cast %565 : vector<5xf32> to vector<5x1xf32>
    %567 = tpu.concatenate %531, %536, %541, %546, %551, %556, %561, %566 in 1 : vector<5x1xf32>, vector<5x1xf32>, vector<5x1xf32>, vector<5x1xf32>, vector<5x1xf32>, vector<5x1xf32>, vector<5x1xf32>, vector<5x1xf32> -> vector<5x8xf32>
    %568 = tpu.concatenate %136, %266, %396, %526 in 1 : vector<5x32xf32>, vector<5x32xf32>, vector<5x32xf32>, vector<5x32xf32> -> vector<5x128xf32>
    %569 = tpu.concatenate %177, %307, %437, %567 in 1 : vector<5x8xf32>, vector<5x8xf32>, vector<5x8xf32>, vector<5x8xf32> -> vector<5x32xf32>
    %570 = arith.truncf %569 : vector<5x32xf32> to vector<5x32xbf16>
    %c0_85 = arith.constant 0 : index
    %c0_86 = arith.constant 0 : index
    %571 = vector.load %arg18[%c0_85, %c0_86] : memref<32x128xbf16, #tpu.memory_space<vmem>>, vector<32x128xbf16>
    %cst_87 = arith.constant dense<0.000000e+00> : vector<5x128xf32>
    %572 = tpu.matmul %570, %571, %cst_87 {dimension_numbers = #tpu.dot_dimension_numbers<[1], [0], [0], [1], [0, 0, 1, 1], [], []>} : vector<5x32xbf16>, vector<32x128xbf16>, vector<5x128xf32> -> vector<5x128xf32>
    %573 = arith.addf %568, %572 : vector<5x128xf32>
    %574 = arith.truncf %573 : vector<5x128xf32> to vector<5x128xbf16>
    %c0_88 = arith.constant 0 : index
    %c0_89 = arith.constant 0 : index
    %c0_90 = arith.constant 0 : index
    %575 = vector.load %arg9[%c0_88, %c0_89, %c0_90] : memref<1x128x128xbf16, #tpu.memory_space<vmem>>, vector<1x128x128xbf16>
    %576 = vector.shape_cast %575 : vector<1x128x128xbf16> to vector<128x128xbf16>
    %cst_91 = arith.constant dense<0.000000e+00> : vector<5x128xf32>
    %577 = tpu.matmul %574, %576, %cst_91 {dimension_numbers = #tpu.dot_dimension_numbers<[1], [0], [0], [1], [0, 0, 1, 1], [], []>} : vector<5x128xbf16>, vector<128x128xbf16>, vector<5x128xf32> -> vector<5x128xf32>
    %578 = arith.addf %3, %577 : vector<5x128xf32>
    %c0_92 = arith.constant 0 : index
    %c0_93 = arith.constant 0 : index
    %c0_94 = arith.constant 0 : index
    %579 = vector.load %arg10[%c0_92, %c0_93, %c0_94] : memref<1x1x128xf32, #tpu.memory_space<vmem>>, vector<1x1x128xf32>
    %580 = vector.shape_cast %579 : vector<1x1x128xf32> to vector<1x128xf32>
    %581 = vector.broadcast %580 : vector<1x128xf32> to vector<5x128xf32>
    %582 = arith.addf %578, %581 : vector<5x128xf32>
    %cst_95 = arith.constant dense<0.000000e+00> : vector<5xf32>
    %583 = vector.multi_reduction <add>, %582, %cst_95 [1] : vector<5x128xf32> to vector<5xf32>
    %584 = vector.shape_cast %583 : vector<5xf32> to vector<5x1xf32>
    %cst_96 = arith.constant 1.280000e+02 : f32
    %585 = vector.broadcast %cst_96 : f32 to vector<5x1xf32>
    %586 = arith.divf %584, %585 : vector<5x1xf32>
    %587 = vector.broadcast %586 : vector<5x1xf32> to vector<5x128xf32>
    %588 = arith.subf %582, %587 : vector<5x128xf32>
    %589 = arith.mulf %588, %588 : vector<5x128xf32>
    %cst_97 = arith.constant dense<0.000000e+00> : vector<5xf32>
    %590 = vector.multi_reduction <add>, %589, %cst_97 [1] : vector<5x128xf32> to vector<5xf32>
    %591 = vector.shape_cast %590 : vector<5xf32> to vector<5x1xf32>
    %cst_98 = arith.constant 1.280000e+02 : f32
    %592 = vector.broadcast %cst_98 : f32 to vector<5x1xf32>
    %593 = arith.divf %591, %592 : vector<5x1xf32>
    %594 = vector.broadcast %586 : vector<5x1xf32> to vector<5x128xf32>
    %595 = arith.subf %582, %594 : vector<5x128xf32>
    %cst_99 = arith.constant 9.99999996E-13 : f32
    %596 = vector.broadcast %cst_99 : f32 to vector<5x1xf32>
    %597 = arith.addf %593, %596 : vector<5x1xf32>
    %598 = math.rsqrt %597 : vector<5x1xf32>
    %599 = vector.broadcast %598 : vector<5x1xf32> to vector<5x128xf32>
    %600 = arith.mulf %595, %599 : vector<5x128xf32>
    %c0_100 = arith.constant 0 : index
    %c0_101 = arith.constant 0 : index
    %c0_102 = arith.constant 0 : index
    %601 = vector.load %arg11[%c0_100, %c0_101, %c0_102] : memref<1x1x128xf32, #tpu.memory_space<vmem>>, vector<1x1x128xf32>
    %602 = vector.shape_cast %601 : vector<1x1x128xf32> to vector<1x128xf32>
    %603 = vector.broadcast %602 : vector<1x128xf32> to vector<5x128xf32>
    %604 = arith.mulf %600, %603 : vector<5x128xf32>
    %c0_103 = arith.constant 0 : index
    %c0_104 = arith.constant 0 : index
    %c0_105 = arith.constant 0 : index
    %605 = vector.load %arg12[%c0_103, %c0_104, %c0_105] : memref<1x1x128xf32, #tpu.memory_space<vmem>>, vector<1x1x128xf32>
    %606 = vector.shape_cast %605 : vector<1x1x128xf32> to vector<1x128xf32>
    %607 = vector.broadcast %606 : vector<1x128xf32> to vector<5x128xf32>
    %608 = arith.addf %604, %607 : vector<5x128xf32>
    %609 = arith.truncf %608 : vector<5x128xf32> to vector<5x128xbf16>
    %c0_106 = arith.constant 0 : index
    %c0_107 = arith.constant 0 : index
    %c0_108 = arith.constant 0 : index
    %610 = vector.load %arg13[%c0_106, %c0_107, %c0_108] : memref<1x128x256xbf16, #tpu.memory_space<vmem>>, vector<1x128x256xbf16>
    %611 = vector.shape_cast %610 : vector<1x128x256xbf16> to vector<128x256xbf16>
    %cst_109 = arith.constant dense<0.000000e+00> : vector<5x256xf32>
    %612 = tpu.matmul %609, %611, %cst_109 {dimension_numbers = #tpu.dot_dimension_numbers<[1], [0], [0], [1], [0, 0, 1, 1], [], []>} : vector<5x128xbf16>, vector<128x256xbf16>, vector<5x256xf32> -> vector<5x256xf32>
    %c0_110 = arith.constant 0 : index
    %c0_111 = arith.constant 0 : index
    %c0_112 = arith.constant 0 : index
    %613 = vector.load %arg14[%c0_110, %c0_111, %c0_112] : memref<1x1x256xf32, #tpu.memory_space<vmem>>, vector<1x1x256xf32>
    %614 = vector.shape_cast %613 : vector<1x1x256xf32> to vector<1x256xf32>
    %615 = vector.broadcast %614 : vector<1x256xf32> to vector<5x256xf32>
    %616 = arith.addf %612, %615 : vector<5x256xf32>
    %cst_113 = arith.constant 5.000000e-01 : f32
    %617 = vector.broadcast %cst_113 : f32 to vector<5x256xf32>
    %618 = arith.mulf %617, %616 : vector<5x256xf32>
    %cst_114 = arith.constant 4.471500e-02 : f32
    %619 = vector.broadcast %cst_114 : f32 to vector<5x256xf32>
    %620 = arith.mulf %619, %616 : vector<5x256xf32>
    %621 = arith.mulf %620, %616 : vector<5x256xf32>
    %622 = arith.mulf %621, %616 : vector<5x256xf32>
    %623 = arith.addf %616, %622 : vector<5x256xf32>
    %cst_115 = arith.constant 0.797884583 : f32
    %624 = vector.broadcast %cst_115 : f32 to vector<5x256xf32>
    %625 = arith.mulf %624, %623 : vector<5x256xf32>
    %626 = math.tanh %625 : vector<5x256xf32>
    %cst_116 = arith.constant 1.000000e+00 : f32
    %627 = vector.broadcast %cst_116 : f32 to vector<5x256xf32>
    %628 = arith.addf %627, %626 : vector<5x256xf32>
    %629 = arith.mulf %618, %628 : vector<5x256xf32>
    %630 = arith.truncf %629 : vector<5x256xf32> to vector<5x256xbf16>
    %c0_117 = arith.constant 0 : index
    %c0_118 = arith.constant 0 : index
    %c0_119 = arith.constant 0 : index
    %631 = vector.load %arg15[%c0_117, %c0_118, %c0_119] : memref<1x256x128xbf16, #tpu.memory_space<vmem>>, vector<1x256x128xbf16>
    %632 = vector.shape_cast %631 : vector<1x256x128xbf16> to vector<256x128xbf16>
    %cst_120 = arith.constant dense<0.000000e+00> : vector<5x128xf32>
    %633 = tpu.matmul %630, %632, %cst_120 {dimension_numbers = #tpu.dot_dimension_numbers<[1], [0], [0], [1], [0, 0, 1, 1], [], []>} : vector<5x256xbf16>, vector<256x128xbf16>, vector<5x128xf32> -> vector<5x128xf32>
    %634 = arith.addf %582, %633 : vector<5x128xf32>
    %c0_121 = arith.constant 0 : index
    %c0_122 = arith.constant 0 : index
    %c0_123 = arith.constant 0 : index
    %635 = vector.load %arg16[%c0_121, %c0_122, %c0_123] : memref<1x1x128xf32, #tpu.memory_space<vmem>>, vector<1x1x128xf32>
    %636 = vector.shape_cast %635 : vector<1x1x128xf32> to vector<1x128xf32>
    %637 = vector.broadcast %636 : vector<1x128xf32> to vector<5x128xf32>
    %638 = arith.addf %634, %637 : vector<5x128xf32>
    %c0_124 = arith.constant 0 : index
    %c0_125 = arith.constant 0 : index
    %639 = vector.load %arg22[%c0_124, %c0_125] : memref<5x128xf32, #tpu.memory_space<vmem>>, vector<5x128xf32>
    tpu.vector_store %arg22[%c0_124, %c0_125], %638 {strides = array<i32>} : memref<5x128xf32, #tpu.memory_space<vmem>>, vector<5x128xf32>,
    %c1_i32 = arith.constant 1 : i32
    %640 = arith.cmpi eq, %arg1, %c1_i32 : i32
    %641 = arith.extui %640 : i1 to i32
    %c0_i32_126 = arith.constant 0 : i32
    %642 = arith.cmpi ne, %641, %c0_i32_126 : i32
    scf.if %642 {
      %cst_127 = arith.constant dense<0.000000e+00> : vector<5xf32>
      %643 = vector.multi_reduction <add>, %638, %cst_127 [1] : vector<5x128xf32> to vector<5xf32>
      %644 = vector.shape_cast %643 : vector<5xf32> to vector<5x1xf32>
      %cst_128 = arith.constant 1.280000e+02 : f32
      %645 = vector.broadcast %cst_128 : f32 to vector<5x1xf32>
      %646 = arith.divf %644, %645 : vector<5x1xf32>
      %647 = vector.broadcast %646 : vector<5x1xf32> to vector<5x128xf32>
      %648 = arith.subf %638, %647 : vector<5x128xf32>
      %649 = arith.mulf %648, %648 : vector<5x128xf32>
      %cst_129 = arith.constant dense<0.000000e+00> : vector<5xf32>
      %650 = vector.multi_reduction <add>, %649, %cst_129 [1] : vector<5x128xf32> to vector<5xf32>
      %651 = vector.shape_cast %650 : vector<5xf32> to vector<5x1xf32>
      %cst_130 = arith.constant 1.280000e+02 : f32
      %652 = vector.broadcast %cst_130 : f32 to vector<5x1xf32>
      %653 = arith.divf %651, %652 : vector<5x1xf32>
      %654 = vector.broadcast %646 : vector<5x1xf32> to vector<5x128xf32>
      %655 = arith.subf %638, %654 : vector<5x128xf32>
      %cst_131 = arith.constant 9.99999996E-13 : f32
      %656 = vector.broadcast %cst_131 : f32 to vector<5x1xf32>
      %657 = arith.addf %653, %656 : vector<5x1xf32>
      %658 = math.rsqrt %657 : vector<5x1xf32>
      %659 = vector.broadcast %658 : vector<5x1xf32> to vector<5x128xf32>
      %660 = arith.mulf %655, %659 : vector<5x128xf32>
      %c0_132 = arith.constant 0 : index
      %c0_133 = arith.constant 0 : index
      %661 = vector.load %arg19[%c0_132, %c0_133] : memref<1x128xf32, #tpu.memory_space<vmem>>, vector<1x128xf32>
      %662 = vector.broadcast %661 : vector<1x128xf32> to vector<5x128xf32>
      %663 = arith.mulf %660, %662 : vector<5x128xf32>
      %c0_134 = arith.constant 0 : index
      %c0_135 = arith.constant 0 : index
      %664 = vector.load %arg20[%c0_134, %c0_135] : memref<1x128xf32, #tpu.memory_space<vmem>>, vector<1x128xf32>
      %665 = vector.broadcast %664 : vector<1x128xf32> to vector<5x128xf32>
      %666 = arith.addf %663, %665 : vector<5x128xf32>
      %c0_136 = arith.constant 0 : index
      %c0_137 = arith.constant 0 : index
      %c0_138 = arith.constant 0 : index
      %667 = vector.load %arg21[%c0_136, %c0_137, %c0_138] : memref<1x5x128xf32, #tpu.memory_space<vmem>>, vector<1x5x128xf32>
      %668 = vector.shape_cast %667 : vector<1x5x128xf32> to vector<5x128xf32>
      %669 = vector.shape_cast %666 : vector<5x128xf32> to vector<1x5x128xf32>
      tpu.vector_store %arg21[%c0_136, %c0_137, %c0_138], %669 {strides = array<i32>} : memref<1x5x128xf32, #tpu.memory_space<vmem>>, vector<1x5x128xf32>,
    } else {
    }
    return
  }
  func.func @transform_0(%arg0: i32, %arg1: i32) -> (i32, i32, i32) {
    %c0_i32 = arith.constant 0 : i32
    %c0_i32_0 = arith.constant 0 : i32
    %c0_i32_1 = arith.constant 0 : i32
    return %arg0, %c0_i32, %c0_i32_0 : i32, i32, i32
  }
  func.func @transform_1(%arg0: i32, %arg1: i32) -> (i32, i32, i32) {
    %c0_i32 = arith.constant 0 : i32
    %c0_i32_0 = arith.constant 0 : i32
    %c0_i32_1 = arith.constant 0 : i32
    return %arg0, %c0_i32, %c0_i32_0 : i32, i32, i32
  }
  func.func @transform_2(%arg0: i32, %arg1: i32) -> (i32, i32, i32, i32) {
    %c0_i32 = arith.constant 0 : i32
    %c0_i32_0 = arith.constant 0 : i32
    %c0_i32_1 = arith.constant 0 : i32
    %c0_i32_2 = arith.constant 0 : i32
    return %arg0, %c0_i32, %c0_i32_0, %c0_i32_1 : i32, i32, i32, i32
  }
  func.func @transform_3(%arg0: i32, %arg1: i32) -> (i32, i32, i32) {
    %c0_i32 = arith.constant 0 : i32
    %c0_i32_0 = arith.constant 0 : i32
    %c0_i32_1 = arith.constant 0 : i32
    return %arg1, %c0_i32, %c0_i32_0 : i32, i32, i32
  }
  func.func @transform_4(%arg0: i32, %arg1: i32) -> (i32, i32, i32) {
    %c0_i32 = arith.constant 0 : i32
    %c0_i32_0 = arith.constant 0 : i32
    %c0_i32_1 = arith.constant 0 : i32
    return %arg1, %c0_i32, %c0_i32_0 : i32, i32, i32
  }
  func.func @transform_5(%arg0: i32, %arg1: i32) -> (i32, i32, i32) {
    %c0_i32 = arith.constant 0 : i32
    %c0_i32_0 = arith.constant 0 : i32
    %c0_i32_1 = arith.constant 0 : i32
    return %arg1, %c0_i32, %c0_i32_0 : i32, i32, i32
  }
  func.func @transform_6(%arg0: i32, %arg1: i32) -> (i32, i32, i32) {
    %c0_i32 = arith.constant 0 : i32
    %c0_i32_0 = arith.constant 0 : i32
    %c0_i32_1 = arith.constant 0 : i32
    return %arg1, %c0_i32, %c0_i32_0 : i32, i32, i32
  }
  func.func @transform_7(%arg0: i32, %arg1: i32) -> (i32, i32, i32) {
    %c0_i32 = arith.constant 0 : i32
    %c0_i32_0 = arith.constant 0 : i32
    %c0_i32_1 = arith.constant 0 : i32
    return %arg1, %c0_i32, %c0_i32_0 : i32, i32, i32
  }
  func.func @transform_8(%arg0: i32, %arg1: i32) -> (i32, i32, i32) {
    %c0_i32 = arith.constant 0 : i32
    %c0_i32_0 = arith.constant 0 : i32
    %c0_i32_1 = arith.constant 0 : i32
    return %arg1, %c0_i32, %c0_i32_0 : i32, i32, i32
  }
  func.func @transform_9(%arg0: i32, %arg1: i32) -> (i32, i32, i32) {
    %c0_i32 = arith.constant 0 : i32
    %c0_i32_0 = arith.constant 0 : i32
    %c0_i32_1 = arith.constant 0 : i32
    return %arg1, %c0_i32, %c0_i32_0 : i32, i32, i32
  }
  func.func @transform_10(%arg0: i32, %arg1: i32) -> (i32, i32, i32) {
    %c0_i32 = arith.constant 0 : i32
    %c0_i32_0 = arith.constant 0 : i32
    %c0_i32_1 = arith.constant 0 : i32
    return %arg1, %c0_i32, %c0_i32_0 : i32, i32, i32
  }
  func.func @transform_11(%arg0: i32, %arg1: i32) -> (i32, i32, i32) {
    %c0_i32 = arith.constant 0 : i32
    %c0_i32_0 = arith.constant 0 : i32
    %c0_i32_1 = arith.constant 0 : i32
    return %arg1, %c0_i32, %c0_i32_0 : i32, i32, i32
  }
  func.func @transform_12(%arg0: i32, %arg1: i32) -> (i32, i32, i32) {
    %c0_i32 = arith.constant 0 : i32
    %c0_i32_0 = arith.constant 0 : i32
    %c0_i32_1 = arith.constant 0 : i32
    return %arg1, %c0_i32, %c0_i32_0 : i32, i32, i32
  }
  func.func @transform_13(%arg0: i32, %arg1: i32) -> (i32, i32, i32) {
    %c0_i32 = arith.constant 0 : i32
    %c0_i32_0 = arith.constant 0 : i32
    %c0_i32_1 = arith.constant 0 : i32
    return %arg1, %c0_i32, %c0_i32_0 : i32, i32, i32
  }
  func.func @transform_14(%arg0: i32, %arg1: i32) -> (i32, i32, i32) {
    %c0_i32 = arith.constant 0 : i32
    %c0_i32_0 = arith.constant 0 : i32
    %c0_i32_1 = arith.constant 0 : i32
    return %arg1, %c0_i32, %c0_i32_0 : i32, i32, i32
  }
  func.func @transform_15(%arg0: i32, %arg1: i32) -> (i32, i32) {
    %c0_i32 = arith.constant 0 : i32
    %c0_i32_0 = arith.constant 0 : i32
    %c0_i32_1 = arith.constant 0 : i32
    return %c0_i32, %c0_i32_0 : i32, i32
  }
  func.func @transform_16(%arg0: i32, %arg1: i32) -> (i32, i32) {
    %c0_i32 = arith.constant 0 : i32
    %c0_i32_0 = arith.constant 0 : i32
    %c0_i32_1 = arith.constant 0 : i32
    return %c0_i32, %c0_i32_0 : i32, i32
  }
  func.func @transform_17(%arg0: i32, %arg1: i32) -> (i32, i32) {
    %c0_i32 = arith.constant 0 : i32
    %c0_i32_0 = arith.constant 0 : i32
    %c0_i32_1 = arith.constant 0 : i32
    return %c0_i32, %c0_i32_0 : i32, i32
  }
  func.func @transform_18(%arg0: i32, %arg1: i32) -> (i32, i32) {
    %c0_i32 = arith.constant 0 : i32
    %c0_i32_0 = arith.constant 0 : i32
    %c0_i32_1 = arith.constant 0 : i32
    return %c0_i32, %c0_i32_0 : i32, i32
  }
  func.func @transform_19(%arg0: i32, %arg1: i32) -> (i32, i32, i32) {
    %c0_i32 = arith.constant 0 : i32
    %c0_i32_0 = arith.constant 0 : i32
    %c0_i32_1 = arith.constant 0 : i32
    return %arg0, %c0_i32, %c0_i32_0 : i32, i32, i32
  }
}

module attributes {stable_mosaic.version = 11 : i64} {
  func.func @_ln_linear_kernel(%arg0: i32, %arg1: memref<2x128xf32, #tpu.memory_space<vmem>>, %arg2: memref<1x128xf32, #tpu.memory_space<vmem>>, %arg3: memref<1x128xf32, #tpu.memory_space<vmem>>, %arg4: memref<128x11xbf16, #tpu.memory_space<vmem>>, %arg5: memref<1x11xf32, #tpu.memory_space<vmem>>, %arg6: memref<2x11xf32, #tpu.memory_space<vmem>>) attributes {dimension_semantics = [#tpu.dimension_semantics<parallel>], iteration_bounds = array<i64: 1>, scalar_prefetch = 0 : i64, scratch_operands = 0 : i64, tpu.core_type = #tpu.core_type<tc>, window_params = [{transform_indices = @transform_0, window_bounds = array<i64: 2, 128>}, {pipeline_mode = #tpu.pipeline_mode<synchronous>, transform_indices = @transform_1, window_bounds = array<i64: 1, 128>}, {pipeline_mode = #tpu.pipeline_mode<synchronous>, transform_indices = @transform_2, window_bounds = array<i64: 1, 128>}, {pipeline_mode = #tpu.pipeline_mode<synchronous>, transform_indices = @transform_3, window_bounds = array<i64: 128, 11>}, {pipeline_mode = #tpu.pipeline_mode<synchronous>, transform_indices = @transform_4, window_bounds = array<i64: 1, 11>}, {transform_indices = @transform_5, window_bounds = array<i64: 2, 11>}]} {
    %c0 = arith.constant 0 : index
    %c0_0 = arith.constant 0 : index
    %0 = vector.load %arg1[%c0, %c0_0] : memref<2x128xf32, #tpu.memory_space<vmem>>, vector<2x128xf32>
    %cst = arith.constant dense<0.000000e+00> : vector<2xf32>
    %1 = vector.multi_reduction <add>, %0, %cst [1] : vector<2x128xf32> to vector<2xf32>
    %2 = vector.shape_cast %1 : vector<2xf32> to vector<2x1xf32>
    %cst_1 = arith.constant 1.280000e+02 : f32
    %3 = vector.broadcast %cst_1 : f32 to vector<2x1xf32>
    %4 = arith.divf %2, %3 : vector<2x1xf32>
    %5 = vector.broadcast %4 : vector<2x1xf32> to vector<2x128xf32>
    %6 = arith.subf %0, %5 : vector<2x128xf32>
    %7 = arith.mulf %6, %6 : vector<2x128xf32>
    %cst_2 = arith.constant dense<0.000000e+00> : vector<2xf32>
    %8 = vector.multi_reduction <add>, %7, %cst_2 [1] : vector<2x128xf32> to vector<2xf32>
    %9 = vector.shape_cast %8 : vector<2xf32> to vector<2x1xf32>
    %cst_3 = arith.constant 1.280000e+02 : f32
    %10 = vector.broadcast %cst_3 : f32 to vector<2x1xf32>
    %11 = arith.divf %9, %10 : vector<2x1xf32>
    %12 = vector.broadcast %4 : vector<2x1xf32> to vector<2x128xf32>
    %13 = arith.subf %0, %12 : vector<2x128xf32>
    %cst_4 = arith.constant 1.000000e-07 : f32
    %14 = vector.broadcast %cst_4 : f32 to vector<2x1xf32>
    %15 = arith.addf %11, %14 : vector<2x1xf32>
    %16 = math.rsqrt %15 : vector<2x1xf32>
    %17 = vector.broadcast %16 : vector<2x1xf32> to vector<2x128xf32>
    %18 = arith.mulf %13, %17 : vector<2x128xf32>
    %c0_5 = arith.constant 0 : index
    %c0_6 = arith.constant 0 : index
    %19 = vector.load %arg2[%c0_5, %c0_6] : memref<1x128xf32, #tpu.memory_space<vmem>>, vector<1x128xf32>
    %20 = vector.broadcast %19 : vector<1x128xf32> to vector<2x128xf32>
    %21 = arith.mulf %18, %20 : vector<2x128xf32>
    %c0_7 = arith.constant 0 : index
    %c0_8 = arith.constant 0 : index
    %22 = vector.load %arg3[%c0_7, %c0_8] : memref<1x128xf32, #tpu.memory_space<vmem>>, vector<1x128xf32>
    %23 = vector.broadcast %22 : vector<1x128xf32> to vector<2x128xf32>
    %24 = arith.addf %21, %23 : vector<2x128xf32>
    %25 = arith.truncf %24 : vector<2x128xf32> to vector<2x128xbf16>
    %c0_9 = arith.constant 0 : index
    %c0_10 = arith.constant 0 : index
    %26 = vector.load %arg4[%c0_9, %c0_10] : memref<128x11xbf16, #tpu.memory_space<vmem>>, vector<128x11xbf16>
    %cst_11 = arith.constant dense<0.000000e+00> : vector<2x11xf32>
    %27 = tpu.matmul %25, %26, %cst_11 {dimension_numbers = #tpu.dot_dimension_numbers<[1], [0], [0], [1], [0, 0, 1, 1], [], []>} : vector<2x128xbf16>, vector<128x11xbf16>, vector<2x11xf32> -> vector<2x11xf32>
    %c0_12 = arith.constant 0 : index
    %c0_13 = arith.constant 0 : index
    %28 = vector.load %arg5[%c0_12, %c0_13] : memref<1x11xf32, #tpu.memory_space<vmem>>, vector<1x11xf32>
    %29 = vector.broadcast %28 : vector<1x11xf32> to vector<2x11xf32>
    %30 = arith.addf %27, %29 : vector<2x11xf32>
    %c0_14 = arith.constant 0 : index
    %c0_15 = arith.constant 0 : index
    %31 = vector.load %arg6[%c0_14, %c0_15] : memref<2x11xf32, #tpu.memory_space<vmem>>, vector<2x11xf32>
    tpu.vector_store %arg6[%c0_14, %c0_15], %30 {strides = array<i32>} : memref<2x11xf32, #tpu.memory_space<vmem>>, vector<2x11xf32>,
    return
  }
  func.func @transform_0(%arg0: i32) -> (i32, i32) {
    %c0_i32 = arith.constant 0 : i32
    %c0_i32_0 = arith.constant 0 : i32
    return %arg0, %c0_i32 : i32, i32
  }
  func.func @transform_1(%arg0: i32) -> (i32, i32) {
    %c0_i32 = arith.constant 0 : i32
    %c0_i32_0 = arith.constant 0 : i32
    %c0_i32_1 = arith.constant 0 : i32
    return %c0_i32, %c0_i32_0 : i32, i32
  }
  func.func @transform_2(%arg0: i32) -> (i32, i32) {
    %c0_i32 = arith.constant 0 : i32
    %c0_i32_0 = arith.constant 0 : i32
    %c0_i32_1 = arith.constant 0 : i32
    return %c0_i32, %c0_i32_0 : i32, i32
  }
  func.func @transform_3(%arg0: i32) -> (i32, i32) {
    %c0_i32 = arith.constant 0 : i32
    %c0_i32_0 = arith.constant 0 : i32
    %c0_i32_1 = arith.constant 0 : i32
    return %c0_i32, %c0_i32_0 : i32, i32
  }
  func.func @transform_4(%arg0: i32) -> (i32, i32) {
    %c0_i32 = arith.constant 0 : i32
    %c0_i32_0 = arith.constant 0 : i32
    %c0_i32_1 = arith.constant 0 : i32
    return %c0_i32, %c0_i32_0 : i32, i32
  }
  func.func @transform_5(%arg0: i32) -> (i32, i32) {
    %c0_i32 = arith.constant 0 : i32
    %c0_i32_0 = arith.constant 0 : i32
    return %arg0, %c0_i32 : i32, i32
  }
}

</mosaic_0001>

<llo_original>
// kernel: fwd.7
$region0: #{fwd.7}
  #allocation0 [shape = 'u32[]', space=smem, size = 0x4, offset = 0x4, fixed_abs, tag = 'smem constant byte address 0x4 - core index']
  #allocation1 [shape = 'u32[144,128]{1,0:T(1,128)}', space=vmem, size = 0x12000, scoped, tag = 'internal scratch']
  %s0 = inlined_call_operand.vmem [shape: f32[6,6,128], index: 0, kind: input, shape index: {}]
  %s1 = inlined_call_operand.vmem [shape: f32[6,6,6], index: 1, kind: input, shape index: {}]
  %s2 = inlined_call_operand.vmem [shape: bf16[128,128], index: 2, kind: input, shape index: {}]
  %s3 = inlined_call_operand.vmem [shape: f32[1,128], index: 3, kind: input, shape index: {}]
  %s4 = inlined_call_operand.vmem [shape: bf16[128,1], index: 4, kind: input, shape index: {}]
  %s5 = inlined_call_operand.vmem [shape: bf16[1,128], index: 5, kind: input, shape index: {}]
  %s6 = inlined_call_operand.vmem [shape: f32[6,6,128], index: 6, kind: output, shape index: {}]
  %s7 = sld [smem:[#allocation0]]
  $region57: #{fwd.7} parent=0
    _
  %s9 = ssub.s32 1, %s7
  %s10 = scalar_select 0, %s9, %s7
  loop: start=0, step=1, limit=8
  $region2: #{fwd.7} parent=0 // loop_pre_header
    _
  $region3: #{fwd.7} parent=0 // loop_header
    %s12 = sphi 0, %s16
    %p13 = scmp.ge.s32.totalorder %s12, 8
    %s22 = sphi 0, %s24
    %s25 = sphi 0, %s22
    %s26 = sphi 0, %s25
    %s42 = sphi 0, %s26
    %s48 = sphi 0, %s50
    %s51 = sphi 0, %s48
    %s52 = sphi 0, %s51
    %s68 = sphi 0, %s52
    %s72 = sphi 0, %s72
    %s74 = sphi 0, %s72
    %s75 = sphi 0, %s74
    %s89 = sphi 0, %s75
    %s93 = sphi 0, %s93
    %s95 = sphi 0, %s93
    %s96 = sphi 0, %s95
    %s110 = sphi 0, %s96
    %s114 = sphi 0, %s114
    %s116 = sphi 0, %s114
    %s117 = sphi 0, %s116
    %s131 = sphi 0, %s117
    %s135 = sphi 0, %s135
    %s137 = sphi 0, %s135
    %s138 = sphi 0, %s137
    %s152 = sphi 0, %s138
    %s158 = sphi 0, %s160
    %s161 = sphi 0, %s158
    %s162 = sphi 0, %s161
    %s178 = sphi 0, %s162
  $region4: #{fwd.7} parent=0 // loop_header_branch
    %15 = sbr.rel (%p13) target = $region8
  $region5: #{fwd.7} parent=0 // loop_body
    %s17 = ssub.s32 %s12, 1
    %s18 = ssub.s32 %s12, 2
    %s19 = sadd.s32 %s12, 1
    %s20 = ssub.s32 %s12, %s19
    %p21 = scmp.eq.s32.totalorder %s20, 0
    %s23 = sadd.s32 %s22, 1
    %s24 = scalar_select %p21, %s22, %s23
    %p27 = pneg %p21
    %p28 = scmp.eq.s32.totalorder %s12, 5
    %p29 = por %p27, %p28
    %p30 = scmp.ne.s32.totalorder %s22, %s25
    %p31 = scmp.eq.s32.totalorder %s12, 0
    %p32 = por %p30, %p31
    %p33 = scmp.ne.s32.totalorder %s22, %s25
    %p34 = scmp.eq.s32.totalorder %s17, 5
    %p35 = por %p33, %p34
    %p36 = scmp.ne.s32.totalorder %s25, %s26
    %p37 = scmp.eq.s32.totalorder %s17, 0
    %p38 = por %p36, %p37
    %p39 = scmp.ne.s32.totalorder %s25, %s26
    %p40 = scmp.eq.s32.totalorder %s18, 5
    %p41 = por %p39, %p40
    %p43 = scmp.ne.s32.totalorder %s26, %s42
    %p44 = scmp.eq.s32.totalorder %s18, 0
    %p45 = por %p43, %p44
    %s46 = ssub.s32 %s12, %s19
    %p47 = scmp.eq.s32.totalorder %s46, 0
    %s49 = sadd.s32 %s48, 1
    %s50 = scalar_select %p47, %s48, %s49
    %p53 = pneg %p47
    %p54 = scmp.eq.s32.totalorder %s12, 5
    %p55 = por %p53, %p54
    %p56 = scmp.ne.s32.totalorder %s48, %s51
    %p57 = scmp.eq.s32.totalorder %s12, 0
    %p58 = por %p56, %p57
    %p59 = scmp.ne.s32.totalorder %s48, %s51
    %p60 = scmp.eq.s32.totalorder %s17, 5
    %p61 = por %p59, %p60
    %p62 = scmp.ne.s32.totalorder %s51, %s52
    %p63 = scmp.eq.s32.totalorder %s17, 0
    %p64 = por %p62, %p63
    %p65 = scmp.ne.s32.totalorder %s51, %s52
    %p66 = scmp.eq.s32.totalorder %s18, 5
    %p67 = por %p65, %p66
    %p69 = scmp.ne.s32.totalorder %s52, %s68
    %p70 = scmp.eq.s32.totalorder %s18, 0
    %p71 = por %p69, %p70
    %s73 = sadd.s32 %s72, 1
    %p76 = scmp.eq.s32.totalorder %s12, 5
    %p77 = scmp.ne.s32.totalorder %s72, %s74
    %p78 = scmp.eq.s32.totalorder %s12, 0
    %p79 = por %p77, %p78
    %p80 = scmp.ne.s32.totalorder %s72, %s74
    %p81 = scmp.eq.s32.totalorder %s17, 5
    %p82 = por %p80, %p81
    %p83 = scmp.ne.s32.totalorder %s74, %s75
    %p84 = scmp.eq.s32.totalorder %s17, 0
    %p85 = por %p83, %p84
    %p86 = scmp.ne.s32.totalorder %s74, %s75
    %p87 = scmp.eq.s32.totalorder %s18, 5
    %p88 = por %p86, %p87
    %p90 = scmp.ne.s32.totalorder %s75, %s89
    %p91 = scmp.eq.s32.totalorder %s18, 0
    %p92 = por %p90, %p91
    %s94 = sadd.s32 %s93, 1
    %p97 = scmp.eq.s32.totalorder %s12, 5
    %p98 = scmp.ne.s32.totalorder %s93, %s95
    %p99 = scmp.eq.s32.totalorder %s12, 0
    %p100 = por %p98, %p99
    %p101 = scmp.ne.s32.totalorder %s93, %s95
    %p102 = scmp.eq.s32.totalorder %s17, 5
    %p103 = por %p101, %p102
    %p104 = scmp.ne.s32.totalorder %s95, %s96
    %p105 = scmp.eq.s32.totalorder %s17, 0
    %p106 = por %p104, %p105
    %p107 = scmp.ne.s32.totalorder %s95, %s96
    %p108 = scmp.eq.s32.totalorder %s18, 5
    %p109 = por %p107, %p108
    %p111 = scmp.ne.s32.totalorder %s96, %s110
    %p112 = scmp.eq.s32.totalorder %s18, 0
    %p113 = por %p111, %p112
    %s115 = sadd.s32 %s114, 1
    %p118 = scmp.eq.s32.totalorder %s12, 5
    %p119 = scmp.ne.s32.totalorder %s114, %s116
    %p120 = scmp.eq.s32.totalorder %s12, 0
    %p121 = por %p119, %p120
    %p122 = scmp.ne.s32.totalorder %s114, %s116
    %p123 = scmp.eq.s32.totalorder %s17, 5
    %p124 = por %p122, %p123
    %p125 = scmp.ne.s32.totalorder %s116, %s117
    %p126 = scmp.eq.s32.totalorder %s17, 0
    %p127 = por %p125, %p126
    %p128 = scmp.ne.s32.totalorder %s116, %s117
    %p129 = scmp.eq.s32.totalorder %s18, 5
    %p130 = por %p128, %p129
    %p132 = scmp.ne.s32.totalorder %s117, %s131
    %p133 = scmp.eq.s32.totalorder %s18, 0
    %p134 = por %p132, %p133
    %s136 = sadd.s32 %s135, 1
    %p139 = scmp.eq.s32.totalorder %s12, 5
    %p140 = scmp.ne.s32.totalorder %s135, %s137
    %p141 = scmp.eq.s32.totalorder %s12, 0
    %p142 = por %p140, %p141
    %p143 = scmp.ne.s32.totalorder %s135, %s137
    %p144 = scmp.eq.s32.totalorder %s17, 5
    %p145 = por %p143, %p144
    %p146 = scmp.ne.s32.totalorder %s137, %s138
    %p147 = scmp.eq.s32.totalorder %s17, 0
    %p148 = por %p146, %p147
    %p149 = scmp.ne.s32.totalorder %s137, %s138
    %p150 = scmp.eq.s32.totalorder %s18, 5
    %p151 = por %p149, %p150
    %p153 = scmp.ne.s32.totalorder %s138, %s152
    %p154 = scmp.eq.s32.totalorder %s18, 0
    %p155 = por %p153, %p154
    %s156 = ssub.s32 %s12, %s19
    %p157 = scmp.eq.s32.totalorder %s156, 0
    %s159 = sadd.s32 %s158, 1
    %s160 = scalar_select %p157, %s158, %s159
    %p163 = pneg %p157
    %p164 = scmp.eq.s32.totalorder %s12, 5
    %p165 = por %p163, %p164
    %p166 = scmp.ne.s32.totalorder %s158, %s161
    %p167 = scmp.eq.s32.totalorder %s12, 0
    %p168 = por %p166, %p167
    %p169 = scmp.ne.s32.totalorder %s158, %s161
    %p170 = scmp.eq.s32.totalorder %s17, 5
    %p171 = por %p169, %p170
    %p172 = scmp.ne.s32.totalorder %s161, %s162
    %p173 = scmp.eq.s32.totalorder %s17, 0
    %p174 = por %p172, %p173
    %p175 = scmp.ne.s32.totalorder %s161, %s162
    %p176 = scmp.eq.s32.totalorder %s18, 5
    %p177 = por %p175, %p176
    %p179 = scmp.ne.s32.totalorder %s162, %s178
    %p180 = scmp.eq.s32.totalorder %s18, 0
    %p181 = por %p179, %p180
    %p182 = scmp.le.s32.totalorder 1, %s12
    %p183 = scmp.lt.s32.totalorder %s12, 7
    %p184 = pnand %p182, %p183
    %p185 = pneg %p184
    // Predicated region
    $region9: #{fwd.7} parent=5 // pred_check
      _
    $region10: #{fwd.7} parent=5 // pred_check_branch
      %187 = sbr.rel (%p184) target = $region12
    $region11: #{fwd.7} parent=5 // pred_region
      %s188 = ssub.s32 %s12, 1
      // Predicated region
      $region13: #{fwd.7} parent=11 // pred_check
        %p189 = pneg %p85
      $region14: #{fwd.7} parent=11 // pred_check_branch
        %191 = sbr.rel (%p189) target = $region16
      $region15: #{fwd.7} parent=11 // pred_region
        _
      $region16: #{fwd.7} parent=11 // pred_fallthru
        _
      // Predicated region
      $region17: #{fwd.7} parent=11 // pred_check
        %p192 = pneg %p106
      $region18: #{fwd.7} parent=11 // pred_check_branch
        %194 = sbr.rel (%p192) target = $region20
      $region19: #{fwd.7} parent=11 // pred_region
        _
      $region20: #{fwd.7} parent=11 // pred_fallthru
        _
      // Predicated region
      $region21: #{fwd.7} parent=11 // pred_check
        %p195 = pneg %p127
      $region22: #{fwd.7} parent=11 // pred_check_branch
        %197 = sbr.rel (%p195) target = $region24
      $region23: #{fwd.7} parent=11 // pred_region
        _
      $region24: #{fwd.7} parent=11 // pred_fallthru
        _
      // Predicated region
      $region25: #{fwd.7} parent=11 // pred_check
        %p198 = pneg %p148
      $region26: #{fwd.7} parent=11 // pred_check_branch
        %200 = sbr.rel (%p198) target = $region28
      $region27: #{fwd.7} parent=11 // pred_region
        _
      $region28: #{fwd.7} parent=11 // pred_fallthru
        _
    $region12: #{fwd.7} parent=5 // pred_fallthru
      _
    %p201 = scmp.lt.s32.totalorder %s12, 6
    // Predicated region
    $region29: #{fwd.7} parent=5 // pred_check
      %p202 = pneg %p201
    $region30: #{fwd.7} parent=5 // pred_check_branch
      %204 = sbr.rel (%p202) target = $region32
    $region31: #{fwd.7} parent=5 // pred_region
      // Predicated region
      $region33: #{fwd.7} parent=31 // pred_check
        %p205 = pneg %p32
      $region34: #{fwd.7} parent=31 // pred_check_branch
        %207 = sbr.rel (%p205) target = $region36
      $region35: #{fwd.7} parent=31 // pred_region
        %p208 = scmp.lt.s32.totalorder %s12, 5
        %s209 = scalar_select %p208, %s12, 5
        %s210 = smul.addr %s209, 8
        %s211 = scalar_lea.vmem %s0, %s210
      $region36: #{fwd.7} parent=31 // pred_fallthru
        _
      // Predicated region
      $region37: #{fwd.7} parent=31 // pred_check
        %p212 = pneg %p58
      $region38: #{fwd.7} parent=31 // pred_check_branch
        %214 = sbr.rel (%p212) target = $region40
      $region39: #{fwd.7} parent=31 // pred_region
        %p215 = scmp.lt.s32.totalorder %s12, 5
        %s216 = scalar_select %p215, %s12, 5
        %s217 = smul.addr %s216, 8
        %s218 = scalar_lea.vmem %s1, %s217
      $region40: #{fwd.7} parent=31 // pred_fallthru
        _
    $region32: #{fwd.7} parent=5 // pred_fallthru
      _
    %p219 = scmp.le.s32.totalorder 1, %s12
    %p220 = scmp.lt.s32.totalorder %s12, 7
    %p221 = pnand %p219, %p220
    %p222 = pneg %p221
    // Predicated region
    $region41: #{fwd.7} parent=5 // pred_check
      _
    $region42: #{fwd.7} parent=5 // pred_check_branch
      %224 = sbr.rel (%p221) target = $region44
    $region43: #{fwd.7} parent=5 // pred_region
      %s225 = ssub.s32 %s12, 1
      %p226 = scmp.lt.s32.totalorder %s17, 5
      %s227 = scalar_select %p226, %s17, 5
      %s228 = smul.addr %s227, 8
      %s229 = scalar_lea.vmem %s0, %s228
      %p230 = pneg %p38
      %p231 = pneg %p35
      %p232 = scmp.lt.s32.totalorder %s17, 5
      %s233 = scalar_select %p232, %s17, 5
      %s234 = smul.addr %s233, 8
      %s235 = scalar_lea.vmem %s1, %s234
      %p236 = pneg %p64
      %p237 = pneg %p61
      %p238 = pneg %p85
      %p239 = pneg %p82
      %p240 = pneg %p106
      %p241 = pneg %p103
      %p242 = pneg %p127
      %p243 = pneg %p124
      %p244 = pneg %p148
      %p245 = pneg %p145
      %p246 = pneg %p174
      %p247 = pneg %p171
      %p248 = scmp.lt.s32.totalorder %s17, 5
      %s249 = scalar_select %p248, %s17, 5
      %s250 = smul.addr %s249, 8
      %s251 = scalar_lea.vmem %s6, %s250
      %p252 = scmp.lt.s32.totalorder %s17, 5
      %s253 = scalar_select %p252, %s17, 5
      %s254 = smul.addr %s253, 8
      %s255 = scalar_lea.vmem %s0, %s254
      %p256 = scmp.lt.s32.totalorder %s17, 5
      %s257 = scalar_select %p256, %s17, 5
      %s258 = smul.addr %s257, 8
      %s259 = scalar_lea.vmem %s1, %s258
      %p260 = scmp.lt.s32.totalorder %s17, 5
      %s261 = scalar_select %p260, %s17, 5
      %s262 = smul.addr %s261, 8
      %s263 = scalar_lea.vmem %s6, %s262
      %v265 = vld [vmem:[%s255] sm:$0x3f]
      %v266 = vpack.c.bf16 %v265, %v265
      %v267 = vld [vmem:[%s2] sm:$0xf]
      %v268 = vld [vmem:[%s2 + $0x4] sm:$0xf]
      %v269 = vld [vmem:[%s2 + $0x8] sm:$0xf]
      %v270 = vld [vmem:[%s2 + $0xc] sm:$0xf]
      %v271 = vld [vmem:[%s2 + $0x10] sm:$0xf]
      %v272 = vld [vmem:[%s2 + $0x14] sm:$0xf]
      %v273 = vld [vmem:[%s2 + $0x18] sm:$0xf]
      %v274 = vld [vmem:[%s2 + $0x1c] sm:$0xf]
      %v275 = vld [vmem:[%s2 + $0x20] sm:$0xf]
      %v276 = vld [vmem:[%s2 + $0x24] sm:$0xf]
      %v277 = vld [vmem:[%s2 + $0x28] sm:$0xf]
      %v278 = vld [vmem:[%s2 + $0x2c] sm:$0xf]
      %v279 = vld [vmem:[%s2 + $0x30] sm:$0xf]
      %v280 = vld [vmem:[%s2 + $0x34] sm:$0xf]
      %v281 = vld [vmem:[%s2 + $0x38] sm:$0xf]
      %v282 = vld [vmem:[%s2 + $0x3c] sm:$0xf]
      %v283 = vld [vmem:[%s3] sm:$0x1]
      %v285 = vlaneseq
      %v286 = vshrl.u32 %v285, 7
      %v287 = vsub.s32 0, %v286
      %v288 = vrot.slane %v283, %v287
      %v306 = vunpack.c.l.b16 %v267
      %v307 = vunpack.c.l.b16 %v268
      %v308 = vunpack.c.l.b16 %v269
      %v309 = vunpack.c.l.b16 %v270
      %v310 = vunpack.c.l.b16 %v271
      %v311 = vunpack.c.l.b16 %v272
      %v312 = vunpack.c.l.b16 %v273
      %v313 = vunpack.c.l.b16 %v274
      %v314 = vunpack.c.l.b16 %v275
      %v315 = vunpack.c.l.b16 %v276
      %v316 = vunpack.c.l.b16 %v277
      %v317 = vunpack.c.l.b16 %v278
      %v318 = vunpack.c.l.b16 %v279
      %v319 = vunpack.c.l.b16 %v280
      %v320 = vunpack.c.l.b16 %v281
      %v321 = vunpack.c.l.b16 %v282
      %v322 = vpack.c.b16 %v307, %v306
      %v323 = vpack.c.b16 %v309, %v308
      %v324 = vpack.c.b16 %v311, %v310
      %v325 = vpack.c.b16 %v313, %v312
      %v326 = vpack.c.b16 %v315, %v314
      %v327 = vpack.c.b16 %v317, %v316
      %v328 = vpack.c.b16 %v319, %v318
      %v329 = vpack.c.b16 %v321, %v320
      %338 = vmatprep.subr.bf16.mxu0 0
      %339 = vmatpush1.bf16.msra.mxu0 %v329
      %340 = vmatprep.subr.bf16.mxu0 0
      %341 = vmatpush1.bf16.msra.mxu0 %v328
      %342 = vmatprep.subr.bf16.mxu0 0
      %343 = vmatpush1.bf16.msra.mxu0 %v327
      %344 = vmatprep.subr.bf16.mxu0 0
      %345 = vmatpush1.bf16.msra.mxu0 %v326
      %346 = vmatprep.subr.bf16.mxu0 0
      %347 = vmatpush1.bf16.msra.mxu0 %v325
      %348 = vmatprep.subr.bf16.mxu0 0
      %349 = vmatpush1.bf16.msra.mxu0 %v324
      %350 = vmatprep.subr.bf16.mxu0 0
      %351 = vmatpush1.bf16.msra.mxu0 %v323
      %352 = vmatprep.subr.bf16.mxu0 0
      %353 = vmatpush1.bf16.msra.mxu0 %v322
      %354 = vmatprep.subr.bf16.mxu0 0
      %355 = vmatpush2.bf16.msra.mxu0 0
      %356 = vmatprep.subr.bf16.mxu0 0
      %357 = vmatpush2.bf16.msra.mxu0 0
      %358 = vmatprep.subr.bf16.mxu0 0
      %359 = vmatpush2.bf16.msra.mxu0 0
      %360 = vmatprep.subr.bf16.mxu0 0
      %361 = vmatpush2.bf16.msra.mxu0 0
      %362 = vmatprep.subr.bf16.mxu0 0
      %363 = vmatpush2.bf16.msra.mxu0 0
      %364 = vmatprep.subr.bf16.mxu0 0
      %365 = vmatpush2.bf16.msra.mxu0 0
      %366 = vmatprep.subr.bf16.mxu0 0
      %367 = vmatpush2.bf16.msra.mxu0 0
      %368 = vmatprep.subr.bf16.mxu0 0
      %369 = vmatpush2.bf16.msra.mxu0 0
      %370 = vmatprep.mubr.bf16.mxu0 0
      %371 = vmatmul.mubr.bf16.gmra.mxu0 %v266
      %v372 = vpop.f32.mrf.mxu0
      %v373 = vadd.f32 %v288, %v372
      %v374 = vpop.f32.mrf.mxu0
      %v375 = vpop.f32.mrf.mxu0
      %v376 = vpop.f32.mrf.mxu0
      %377 = vdwg.mxu0
      %v378 = vpack.c.bf16 %v373, %v373
      %v379 = vld [vmem:[%s4] sm:$0xf]
      %v380 = vld [vmem:[%s4 + $0x4] sm:$0xf]
      %v381 = vld [vmem:[%s4 + $0x8] sm:$0xf]
      %v382 = vld [vmem:[%s4 + $0xc] sm:$0xf]
      %v383 = vld [vmem:[%s4 + $0x10] sm:$0xf]
      %v384 = vld [vmem:[%s4 + $0x14] sm:$0xf]
      %v385 = vld [vmem:[%s4 + $0x18] sm:$0xf]
      %v386 = vld [vmem:[%s4 + $0x1c] sm:$0xf]
      %v387 = vld [vmem:[%s4 + $0x20] sm:$0xf]
      %v388 = vld [vmem:[%s4 + $0x24] sm:$0xf]
      %v389 = vld [vmem:[%s4 + $0x28] sm:$0xf]
      %v390 = vld [vmem:[%s4 + $0x2c] sm:$0xf]
      %v391 = vld [vmem:[%s4 + $0x30] sm:$0xf]
      %v392 = vld [vmem:[%s4 + $0x34] sm:$0xf]
      %v393 = vld [vmem:[%s4 + $0x38] sm:$0xf]
      %v394 = vld [vmem:[%s4 + $0x3c] sm:$0xf]
      %v411 = vunpack.c.l.b16 %v379
      %v412 = vunpack.c.l.b16 %v380
      %v413 = vunpack.c.l.b16 %v381
      %v414 = vunpack.c.l.b16 %v382
      %v415 = vunpack.c.l.b16 %v383
      %v416 = vunpack.c.l.b16 %v384
      %v417 = vunpack.c.l.b16 %v385
      %v418 = vunpack.c.l.b16 %v386
      %v419 = vunpack.c.l.b16 %v387
      %v420 = vunpack.c.l.b16 %v388
      %v421 = vunpack.c.l.b16 %v389
      %v422 = vunpack.c.l.b16 %v390
      %v423 = vunpack.c.l.b16 %v391
      %v424 = vunpack.c.l.b16 %v392
      %v425 = vunpack.c.l.b16 %v393
      %v426 = vunpack.c.l.b16 %v394
      %v427 = vpack.c.b16 %v412, %v411
      %v428 = vpack.c.b16 %v414, %v413
      %v429 = vpack.c.b16 %v416, %v415
      %v430 = vpack.c.b16 %v418, %v417
      %v431 = vpack.c.b16 %v420, %v419
      %v432 = vpack.c.b16 %v422, %v421
      %v433 = vpack.c.b16 %v424, %v423
      %v434 = vpack.c.b16 %v426, %v425
      %443 = vmatprep.subr.bf16.mxu0 0
      %444 = vmatpush1.bf16.msra.mxu0 %v434
      %445 = vmatprep.subr.bf16.mxu0 0
      %446 = vmatpush1.bf16.msra.mxu0 %v433
      %447 = vmatprep.subr.bf16.mxu0 0
      %448 = vmatpush1.bf16.msra.mxu0 %v432
      %449 = vmatprep.subr.bf16.mxu0 0
      %450 = vmatpush1.bf16.msra.mxu0 %v431
      %451 = vmatprep.subr.bf16.mxu0 0
      %452 = vmatpush1.bf16.msra.mxu0 %v430
      %453 = vmatprep.subr.bf16.mxu0 0
      %454 = vmatpush1.bf16.msra.mxu0 %v429
      %455 = vmatprep.subr.bf16.mxu0 0
      %456 = vmatpush1.bf16.msra.mxu0 %v428
      %457 = vmatprep.subr.bf16.mxu0 0
      %458 = vmatpush1.bf16.msra.mxu0 %v427
      %459 = vmatprep.subr.bf16.mxu0 0
      %460 = vmatpush2.bf16.msra.mxu0 0
      %461 = vmatprep.subr.bf16.mxu0 0
      %462 = vmatpush2.bf16.msra.mxu0 0
      %463 = vmatprep.subr.bf16.mxu0 0
      %464 = vmatpush2.bf16.msra.mxu0 0
      %465 = vmatprep.subr.bf16.mxu0 0
      %466 = vmatpush2.bf16.msra.mxu0 0
      %467 = vmatprep.subr.bf16.mxu0 0
      %468 = vmatpush2.bf16.msra.mxu0 0
      %469 = vmatprep.subr.bf16.mxu0 0
      %470 = vmatpush2.bf16.msra.mxu0 0
      %471 = vmatprep.subr.bf16.mxu0 0
      %472 = vmatpush2.bf16.msra.mxu0 0
      %473 = vmatprep.subr.bf16.mxu0 0
      %474 = vmatpush2.bf16.msra.mxu0 0
      %475 = vmatprep.mubr.bf16.mxu0 0
      %476 = vmatmul.mubr.bf16.gmra.mxu0 %v378
      %v477 = vpop.f32.mrf.mxu0
      %v478 = vadd.f32 0.0, %v477
      %v479 = vpop.f32.mrf.mxu0
      %v480 = vpop.f32.mrf.mxu0
      %v481 = vpop.f32.mrf.mxu0
      %482 = vdwg.mxu0
      %v483 = vld [vmem:[%s5] sm:$0x1]
      %484 = vmatprep.subr.bf16.mxu0 0
      %485 = vmatpush1.bf16.xpose.msra.mxu0 0
      %486 = vmatprep.subr.bf16.mxu0 0
      %487 = vmatpush1.bf16.xpose.msra.mxu0 0
      %488 = vmatprep.subr.bf16.mxu0 0
      %489 = vmatpush1.bf16.xpose.msra.mxu0 0
      %490 = vmatprep.subr.bf16.mxu0 0
      %491 = vmatpush1.bf16.xpose.msra.mxu0 0
      %492 = vmatprep.subr.bf16.mxu0 0
      %493 = vmatpush1.bf16.xpose.msra.mxu0 0
      %494 = vmatprep.subr.bf16.mxu0 0
      %495 = vmatpush1.bf16.xpose.msra.mxu0 0
      %496 = vmatprep.subr.bf16.mxu0 0
      %497 = vmatpush1.bf16.xpose.msra.mxu0 0
      %498 = vmatprep.subr.bf16.mxu0 0
      %499 = vmatpush1.bf16.xpose.msra.mxu0 %v378
      %500 = vmatprep.subr.bf16.mxu0 0
      %501 = vmatpush2.bf16.xpose.msra.mxu0 0
      %502 = vmatprep.subr.bf16.mxu0 0
      %503 = vmatpush2.bf16.xpose.msra.mxu0 0
      %504 = vmatprep.subr.bf16.mxu0 0
      %505 = vmatpush2.bf16.xpose.msra.mxu0 0
      %506 = vmatprep.subr.bf16.mxu0 0
      %507 = vmatpush2.bf16.xpose.msra.mxu0 0
      %508 = vmatprep.subr.bf16.mxu0 0
      %509 = vmatpush2.bf16.xpose.msra.mxu0 0
      %510 = vmatprep.subr.bf16.mxu0 0
      %511 = vmatpush2.bf16.xpose.msra.mxu0 0
      %512 = vmatprep.subr.bf16.mxu0 0
      %513 = vmatpush2.bf16.xpose.msra.mxu0 0
      %514 = vmatprep.subr.bf16.mxu0 0
      %515 = vmatpush2.bf16.xpose.msra.mxu0 0
      %516 = vmatprep.mubr.bf16.mxu0 0
      %517 = vmatmul.mubr.bf16.gmra.mxu0 %v483
      %v518 = vpop.f32.mrf.mxu0
      %v519 = vadd.f32 0.0, %v518
      %v520 = vpop.f32.mrf.mxu0
      %v521 = vpop.f32.mrf.mxu0
      %v522 = vpop.f32.mrf.mxu0
      %523 = vdwg.mxu0
      %525 = vset.pattern.permute.xlu0 0
      %526 = vperm.xlu0 %525, %v478
      %v527 = vpop.permute.xlu0 %526
      %v529 = vlaneseq
      %v530 = vshrl.u32 %v529, 7
      %v531 = vsub.s32 0, %v530
      %v532 = vrot.slane %v519, %v531
      %v533 = vadd.f32 %v527, %v532
      %vm534 = vcmp.gt.f32.partialorder %v533, 0.0
      %v535 = vmul.f32 %v533, 0.2
      %v536 = vsel %vm534, %v533, %v535
      %v537 = vld [vmem:[%s259] sm:$0x3f]
      %v538 = vadd.f32 %v536, %v537
      %vm539 = vcmask 46080
      %v540 = vsel %vm539, %v538, -inf
      %541 = vmax.xlane.f32.xlu0 %v540
      %v542 = vpop.xlane.xlu0 %541
      %v543 = vsub.f32 %v538, %v542
      %v544 = vmul.f32 %v543, 1.442695
      %v545 = vpow.pop %v544
      %v546 = vsel %vm539, %v545, 0.0
      %547 = vadd.xlane.f32.xlu0 %v546
      %v548 = vpop.xlane.xlu0 %547
      %v549 = vrcp.pop %v548
      %v550 = vmul.f32 %v545, %v549
      %v551 = vpack.c.bf16 %v550, %v550
      %vm552 = vcmask 48128
      %v554 = vsel %vm552, %v551, 0
      %vm556 = vcmask 1042432
      %v558 = vsel %vm556, %v378, 0
      %560 = vmatprep.subr.bf16.mxu0 0
      %561 = vmatpush1.bf16.msra.mxu0 0
      %562 = vmatprep.subr.bf16.mxu0 0
      %563 = vmatpush1.bf16.msra.mxu0 0
      %564 = vmatprep.subr.bf16.mxu0 0
      %565 = vmatpush1.bf16.msra.mxu0 0
      %566 = vmatprep.subr.bf16.mxu0 0
      %567 = vmatpush1.bf16.msra.mxu0 0
      %568 = vmatprep.subr.bf16.mxu0 0
      %569 = vmatpush1.bf16.msra.mxu0 0
      %570 = vmatprep.subr.bf16.mxu0 0
      %571 = vmatpush1.bf16.msra.mxu0 0
      %572 = vmatprep.subr.bf16.mxu0 0
      %573 = vmatpush1.bf16.msra.mxu0 0
      %574 = vmatprep.subr.bf16.mxu0 0
      %575 = vmatpush1.bf16.msra.mxu0 %v558
      %576 = vmatprep.subr.bf16.mxu0 0
      %577 = vmatpush2.bf16.msra.mxu0 0
      %578 = vmatprep.subr.bf16.mxu0 0
      %579 = vmatpush2.bf16.msra.mxu0 0
      %580 = vmatprep.subr.bf16.mxu0 0
      %581 = vmatpush2.bf16.msra.mxu0 0
      %582 = vmatprep.subr.bf16.mxu0 0
      %583 = vmatpush2.bf16.msra.mxu0 0
      %584 = vmatprep.subr.bf16.mxu0 0
      %585 = vmatpush2.bf16.msra.mxu0 0
      %586 = vmatprep.subr.bf16.mxu0 0
      %587 = vmatpush2.bf16.msra.mxu0 0
      %588 = vmatprep.subr.bf16.mxu0 0
      %589 = vmatpush2.bf16.msra.mxu0 0
      %590 = vmatprep.subr.bf16.mxu0 0
      %591 = vmatpush2.bf16.msra.mxu0 0
      %592 = vmatprep.mubr.bf16.mxu0 0
      %593 = vmatmul.mubr.bf16.gmra.mxu0 %v554
      %v594 = vpop.f32.mrf.mxu0
      %v595 = vadd.f32 0.0, %v594
      %v596 = vpop.f32.mrf.mxu0
      %v597 = vpop.f32.mrf.mxu0
      %v598 = vpop.f32.mrf.mxu0
      %599 = vdwg.mxu0
      %vm600 = vcmp.gt.f32.partialorder %v595, 0.0
      %v601 = vmul.f32 %v595, 1.442695
      %v602 = vpow.pop %v601
      %v603 = vsub.f32 %v602, 1.0
      %v604 = vsel %vm600, %v595, %v603
      %605 = vst [vmem:[%s263] sm:$0x3f] %v604
      %p606 = scmp.lt.s32.totalorder %s17, 5
      %s607 = scalar_select %p606, %s17, 5
      %s608 = smul.addr %s607, 8
      %s609 = scalar_lea.vmem %s6, %s608
      // Predicated region
      $region45: #{fwd.7} parent=43 // pred_check
        %p610 = pneg %p171
      $region46: #{fwd.7} parent=43 // pred_check_branch
        %612 = sbr.rel (%p610) target = $region48
      $region47: #{fwd.7} parent=43 // pred_region
        _
      $region48: #{fwd.7} parent=43 // pred_fallthru
        _
    $region44: #{fwd.7} parent=5 // pred_fallthru
      _
    %p613 = scmp.le.s32.totalorder 2, %s12
    // Predicated region
    $region49: #{fwd.7} parent=5 // pred_check
      %p614 = pneg %p613
    $region50: #{fwd.7} parent=5 // pred_check_branch
      %616 = sbr.rel (%p614) target = $region52
    $region51: #{fwd.7} parent=5 // pred_region
      %s617 = ssub.s32 %s12, 2
      // Predicated region
      $region53: #{fwd.7} parent=51 // pred_check
        %p618 = pneg %p177
      $region54: #{fwd.7} parent=51 // pred_check_branch
        %620 = sbr.rel (%p618) target = $region56
      $region55: #{fwd.7} parent=51 // pred_region
        %p621 = scmp.lt.s32.totalorder %s18, 5
        %s622 = scalar_select %p621, %s18, 5
        %s623 = smul.addr %s622, 8
        %s624 = scalar_lea.vmem %s6, %s623
      $region56: #{fwd.7} parent=51 // pred_fallthru
        _
    $region52: #{fwd.7} parent=5 // pred_fallthru
      _
  $region6: #{fwd.7} parent=0 // loop_footer
    %s16 = sadd.s32 1, %s12
  $region7: #{fwd.7} parent=0 // loop_footer_branch
    %11 = sbr.rel target = $region3
  $region8: #{fwd.7} parent=0 // loop_exit
    _

// kernel: fwd.6
$region0: #{fwd.6}
  #allocation0 [shape = 'u32[]', space=smem, size = 0x4, offset = 0x4, fixed_abs, tag = 'smem constant byte address 0x4 - core index']
  #allocation1 [shape = 'u32[144,128]{1,0:T(1,128)}', space=vmem, size = 0x12000, scoped, tag = 'internal scratch']
  %s0 = inlined_call_operand.vmem [shape: f32[6,4,128], index: 0, kind: input, shape index: {}]
  %s1 = inlined_call_operand.vmem [shape: f32[6,4,4], index: 1, kind: input, shape index: {}]
  %s2 = inlined_call_operand.vmem [shape: bf16[128,128], index: 2, kind: input, shape index: {}]
  %s3 = inlined_call_operand.vmem [shape: f32[1,128], index: 3, kind: input, shape index: {}]
  %s4 = inlined_call_operand.vmem [shape: bf16[128,1], index: 4, kind: input, shape index: {}]
  %s5 = inlined_call_operand.vmem [shape: bf16[1,128], index: 5, kind: input, shape index: {}]
  %s6 = inlined_call_operand.vmem [shape: f32[6,4,128], index: 6, kind: output, shape index: {}]
  %s7 = sld [smem:[#allocation0]]
  $region57: #{fwd.6} parent=0
    _
  %s9 = ssub.s32 1, %s7
  %s10 = scalar_select 0, %s9, %s7
  loop: start=0, step=1, limit=8
  $region2: #{fwd.6} parent=0 // loop_pre_header
    _
  $region3: #{fwd.6} parent=0 // loop_header
    %s12 = sphi 0, %s16
    %p13 = scmp.ge.s32.totalorder %s12, 8
    %s22 = sphi 0, %s24
    %s25 = sphi 0, %s22
    %s26 = sphi 0, %s25
    %s42 = sphi 0, %s26
    %s48 = sphi 0, %s50
    %s51 = sphi 0, %s48
    %s52 = sphi 0, %s51
    %s68 = sphi 0, %s52
    %s72 = sphi 0, %s72
    %s74 = sphi 0, %s72
    %s75 = sphi 0, %s74
    %s89 = sphi 0, %s75
    %s93 = sphi 0, %s93
    %s95 = sphi 0, %s93
    %s96 = sphi 0, %s95
    %s110 = sphi 0, %s96
    %s114 = sphi 0, %s114
    %s116 = sphi 0, %s114
    %s117 = sphi 0, %s116
    %s131 = sphi 0, %s117
    %s135 = sphi 0, %s135
    %s137 = sphi 0, %s135
    %s138 = sphi 0, %s137
    %s152 = sphi 0, %s138
    %s158 = sphi 0, %s160
    %s161 = sphi 0, %s158
    %s162 = sphi 0, %s161
    %s178 = sphi 0, %s162
  $region4: #{fwd.6} parent=0 // loop_header_branch
    %15 = sbr.rel (%p13) target = $region8
  $region5: #{fwd.6} parent=0 // loop_body
    %s17 = ssub.s32 %s12, 1
    %s18 = ssub.s32 %s12, 2
    %s19 = sadd.s32 %s12, 1
    %s20 = ssub.s32 %s12, %s19
    %p21 = scmp.eq.s32.totalorder %s20, 0
    %s23 = sadd.s32 %s22, 1
    %s24 = scalar_select %p21, %s22, %s23
    %p27 = pneg %p21
    %p28 = scmp.eq.s32.totalorder %s12, 5
    %p29 = por %p27, %p28
    %p30 = scmp.ne.s32.totalorder %s22, %s25
    %p31 = scmp.eq.s32.totalorder %s12, 0
    %p32 = por %p30, %p31
    %p33 = scmp.ne.s32.totalorder %s22, %s25
    %p34 = scmp.eq.s32.totalorder %s17, 5
    %p35 = por %p33, %p34
    %p36 = scmp.ne.s32.totalorder %s25, %s26
    %p37 = scmp.eq.s32.totalorder %s17, 0
    %p38 = por %p36, %p37
    %p39 = scmp.ne.s32.totalorder %s25, %s26
    %p40 = scmp.eq.s32.totalorder %s18, 5
    %p41 = por %p39, %p40
    %p43 = scmp.ne.s32.totalorder %s26, %s42
    %p44 = scmp.eq.s32.totalorder %s18, 0
    %p45 = por %p43, %p44
    %s46 = ssub.s32 %s12, %s19
    %p47 = scmp.eq.s32.totalorder %s46, 0
    %s49 = sadd.s32 %s48, 1
    %s50 = scalar_select %p47, %s48, %s49
    %p53 = pneg %p47
    %p54 = scmp.eq.s32.totalorder %s12, 5
    %p55 = por %p53, %p54
    %p56 = scmp.ne.s32.totalorder %s48, %s51
    %p57 = scmp.eq.s32.totalorder %s12, 0
    %p58 = por %p56, %p57
    %p59 = scmp.ne.s32.totalorder %s48, %s51
    %p60 = scmp.eq.s32.totalorder %s17, 5
    %p61 = por %p59, %p60
    %p62 = scmp.ne.s32.totalorder %s51, %s52
    %p63 = scmp.eq.s32.totalorder %s17, 0
    %p64 = por %p62, %p63
    %p65 = scmp.ne.s32.totalorder %s51, %s52
    %p66 = scmp.eq.s32.totalorder %s18, 5
    %p67 = por %p65, %p66
    %p69 = scmp.ne.s32.totalorder %s52, %s68
    %p70 = scmp.eq.s32.totalorder %s18, 0
    %p71 = por %p69, %p70
    %s73 = sadd.s32 %s72, 1
    %p76 = scmp.eq.s32.totalorder %s12, 5
    %p77 = scmp.ne.s32.totalorder %s72, %s74
    %p78 = scmp.eq.s32.totalorder %s12, 0
    %p79 = por %p77, %p78
    %p80 = scmp.ne.s32.totalorder %s72, %s74
    %p81 = scmp.eq.s32.totalorder %s17, 5
    %p82 = por %p80, %p81
    %p83 = scmp.ne.s32.totalorder %s74, %s75
    %p84 = scmp.eq.s32.totalorder %s17, 0
    %p85 = por %p83, %p84
    %p86 = scmp.ne.s32.totalorder %s74, %s75
    %p87 = scmp.eq.s32.totalorder %s18, 5
    %p88 = por %p86, %p87
    %p90 = scmp.ne.s32.totalorder %s75, %s89
    %p91 = scmp.eq.s32.totalorder %s18, 0
    %p92 = por %p90, %p91
    %s94 = sadd.s32 %s93, 1
    %p97 = scmp.eq.s32.totalorder %s12, 5
    %p98 = scmp.ne.s32.totalorder %s93, %s95
    %p99 = scmp.eq.s32.totalorder %s12, 0
    %p100 = por %p98, %p99
    %p101 = scmp.ne.s32.totalorder %s93, %s95
    %p102 = scmp.eq.s32.totalorder %s17, 5
    %p103 = por %p101, %p102
    %p104 = scmp.ne.s32.totalorder %s95, %s96
    %p105 = scmp.eq.s32.totalorder %s17, 0
    %p106 = por %p104, %p105
    %p107 = scmp.ne.s32.totalorder %s95, %s96
    %p108 = scmp.eq.s32.totalorder %s18, 5
    %p109 = por %p107, %p108
    %p111 = scmp.ne.s32.totalorder %s96, %s110
    %p112 = scmp.eq.s32.totalorder %s18, 0
    %p113 = por %p111, %p112
    %s115 = sadd.s32 %s114, 1
    %p118 = scmp.eq.s32.totalorder %s12, 5
    %p119 = scmp.ne.s32.totalorder %s114, %s116
    %p120 = scmp.eq.s32.totalorder %s12, 0
    %p121 = por %p119, %p120
    %p122 = scmp.ne.s32.totalorder %s114, %s116
    %p123 = scmp.eq.s32.totalorder %s17, 5
    %p124 = por %p122, %p123
    %p125 = scmp.ne.s32.totalorder %s116, %s117
    %p126 = scmp.eq.s32.totalorder %s17, 0
    %p127 = por %p125, %p126
    %p128 = scmp.ne.s32.totalorder %s116, %s117
    %p129 = scmp.eq.s32.totalorder %s18, 5
    %p130 = por %p128, %p129
    %p132 = scmp.ne.s32.totalorder %s117, %s131
    %p133 = scmp.eq.s32.totalorder %s18, 0
    %p134 = por %p132, %p133
    %s136 = sadd.s32 %s135, 1
    %p139 = scmp.eq.s32.totalorder %s12, 5
    %p140 = scmp.ne.s32.totalorder %s135, %s137
    %p141 = scmp.eq.s32.totalorder %s12, 0
    %p142 = por %p140, %p141
    %p143 = scmp.ne.s32.totalorder %s135, %s137
    %p144 = scmp.eq.s32.totalorder %s17, 5
    %p145 = por %p143, %p144
    %p146 = scmp.ne.s32.totalorder %s137, %s138
    %p147 = scmp.eq.s32.totalorder %s17, 0
    %p148 = por %p146, %p147
    %p149 = scmp.ne.s32.totalorder %s137, %s138
    %p150 = scmp.eq.s32.totalorder %s18, 5
    %p151 = por %p149, %p150
    %p153 = scmp.ne.s32.totalorder %s138, %s152
    %p154 = scmp.eq.s32.totalorder %s18, 0
    %p155 = por %p153, %p154
    %s156 = ssub.s32 %s12, %s19
    %p157 = scmp.eq.s32.totalorder %s156, 0
    %s159 = sadd.s32 %s158, 1
    %s160 = scalar_select %p157, %s158, %s159
    %p163 = pneg %p157
    %p164 = scmp.eq.s32.totalorder %s12, 5
    %p165 = por %p163, %p164
    %p166 = scmp.ne.s32.totalorder %s158, %s161
    %p167 = scmp.eq.s32.totalorder %s12, 0
    %p168 = por %p166, %p167
    %p169 = scmp.ne.s32.totalorder %s158, %s161
    %p170 = scmp.eq.s32.totalorder %s17, 5
    %p171 = por %p169, %p170
    %p172 = scmp.ne.s32.totalorder %s161, %s162
    %p173 = scmp.eq.s32.totalorder %s17, 0
    %p174 = por %p172, %p173
    %p175 = scmp.ne.s32.totalorder %s161, %s162
    %p176 = scmp.eq.s32.totalorder %s18, 5
    %p177 = por %p175, %p176
    %p179 = scmp.ne.s32.totalorder %s162, %s178
    %p180 = scmp.eq.s32.totalorder %s18, 0
    %p181 = por %p179, %p180
    %p182 = scmp.le.s32.totalorder 1, %s12
    %p183 = scmp.lt.s32.totalorder %s12, 7
    %p184 = pnand %p182, %p183
    %p185 = pneg %p184
    // Predicated region
    $region9: #{fwd.6} parent=5 // pred_check
      _
    $region10: #{fwd.6} parent=5 // pred_check_branch
      %187 = sbr.rel (%p184) target = $region12
    $region11: #{fwd.6} parent=5 // pred_region
      %s188 = ssub.s32 %s12, 1
      // Predicated region
      $region13: #{fwd.6} parent=11 // pred_check
        %p189 = pneg %p85
      $region14: #{fwd.6} parent=11 // pred_check_branch
        %191 = sbr.rel (%p189) target = $region16
      $region15: #{fwd.6} parent=11 // pred_region
        _
      $region16: #{fwd.6} parent=11 // pred_fallthru
        _
      // Predicated region
      $region17: #{fwd.6} parent=11 // pred_check
        %p192 = pneg %p106
      $region18: #{fwd.6} parent=11 // pred_check_branch
        %194 = sbr.rel (%p192) target = $region20
      $region19: #{fwd.6} parent=11 // pred_region
        _
      $region20: #{fwd.6} parent=11 // pred_fallthru
        _
      // Predicated region
      $region21: #{fwd.6} parent=11 // pred_check
        %p195 = pneg %p127
      $region22: #{fwd.6} parent=11 // pred_check_branch
        %197 = sbr.rel (%p195) target = $region24
      $region23: #{fwd.6} parent=11 // pred_region
        _
      $region24: #{fwd.6} parent=11 // pred_fallthru
        _
      // Predicated region
      $region25: #{fwd.6} parent=11 // pred_check
        %p198 = pneg %p148
      $region26: #{fwd.6} parent=11 // pred_check_branch
        %200 = sbr.rel (%p198) target = $region28
      $region27: #{fwd.6} parent=11 // pred_region
        _
      $region28: #{fwd.6} parent=11 // pred_fallthru
        _
    $region12: #{fwd.6} parent=5 // pred_fallthru
      _
    %p201 = scmp.lt.s32.totalorder %s12, 6
    // Predicated region
    $region29: #{fwd.6} parent=5 // pred_check
      %p202 = pneg %p201
    $region30: #{fwd.6} parent=5 // pred_check_branch
      %204 = sbr.rel (%p202) target = $region32
    $region31: #{fwd.6} parent=5 // pred_region
      // Predicated region
      $region33: #{fwd.6} parent=31 // pred_check
        %p205 = pneg %p32
      $region34: #{fwd.6} parent=31 // pred_check_branch
        %207 = sbr.rel (%p205) target = $region36
      $region35: #{fwd.6} parent=31 // pred_region
        %p208 = scmp.lt.s32.totalorder %s12, 5
        %s209 = scalar_select %p208, %s12, 5
        %s210 = smul.addr %s209, 4
        %s211 = scalar_lea.vmem %s0, %s210
      $region36: #{fwd.6} parent=31 // pred_fallthru
        _
      // Predicated region
      $region37: #{fwd.6} parent=31 // pred_check
        %p212 = pneg %p58
      $region38: #{fwd.6} parent=31 // pred_check_branch
        %214 = sbr.rel (%p212) target = $region40
      $region39: #{fwd.6} parent=31 // pred_region
        %p215 = scmp.lt.s32.totalorder %s12, 5
        %s216 = scalar_select %p215, %s12, 5
        %s217 = smul.addr %s216, 4
        %s218 = scalar_lea.vmem %s1, %s217
      $region40: #{fwd.6} parent=31 // pred_fallthru
        _
    $region32: #{fwd.6} parent=5 // pred_fallthru
      _
    %p219 = scmp.le.s32.totalorder 1, %s12
    %p220 = scmp.lt.s32.totalorder %s12, 7
    %p221 = pnand %p219, %p220
    %p222 = pneg %p221
    // Predicated region
    $region41: #{fwd.6} parent=5 // pred_check
      _
    $region42: #{fwd.6} parent=5 // pred_check_branch
      %224 = sbr.rel (%p221) target = $region44
    $region43: #{fwd.6} parent=5 // pred_region
      %s225 = ssub.s32 %s12, 1
      %p226 = scmp.lt.s32.totalorder %s17, 5
      %s227 = scalar_select %p226, %s17, 5
      %s228 = smul.addr %s227, 4
      %s229 = scalar_lea.vmem %s0, %s228
      %p230 = pneg %p38
      %p231 = pneg %p35
      %p232 = scmp.lt.s32.totalorder %s17, 5
      %s233 = scalar_select %p232, %s17, 5
      %s234 = smul.addr %s233, 4
      %s235 = scalar_lea.vmem %s1, %s234
      %p236 = pneg %p64
      %p237 = pneg %p61
      %p238 = pneg %p85
      %p239 = pneg %p82
      %p240 = pneg %p106
      %p241 = pneg %p103
      %p242 = pneg %p127
      %p243 = pneg %p124
      %p244 = pneg %p148
      %p245 = pneg %p145
      %p246 = pneg %p174
      %p247 = pneg %p171
      %p248 = scmp.lt.s32.totalorder %s17, 5
      %s249 = scalar_select %p248, %s17, 5
      %s250 = smul.addr %s249, 4
      %s251 = scalar_lea.vmem %s6, %s250
      %p252 = scmp.lt.s32.totalorder %s17, 5
      %s253 = scalar_select %p252, %s17, 5
      %s254 = smul.addr %s253, 4
      %s255 = scalar_lea.vmem %s0, %s254
      %p256 = scmp.lt.s32.totalorder %s17, 5
      %s257 = scalar_select %p256, %s17, 5
      %s258 = smul.addr %s257, 4
      %s259 = scalar_lea.vmem %s1, %s258
      %p260 = scmp.lt.s32.totalorder %s17, 5
      %s261 = scalar_select %p260, %s17, 5
      %s262 = smul.addr %s261, 4
      %s263 = scalar_lea.vmem %s6, %s262
      %v265 = vld [vmem:[%s255] sm:$0xf]
      %v266 = vpack.c.bf16 %v265, %v265
      %v267 = vld [vmem:[%s2] sm:$0xf]
      %v268 = vld [vmem:[%s2 + $0x4] sm:$0xf]
      %v269 = vld [vmem:[%s2 + $0x8] sm:$0xf]
      %v270 = vld [vmem:[%s2 + $0xc] sm:$0xf]
      %v271 = vld [vmem:[%s2 + $0x10] sm:$0xf]
      %v272 = vld [vmem:[%s2 + $0x14] sm:$0xf]
      %v273 = vld [vmem:[%s2 + $0x18] sm:$0xf]
      %v274 = vld [vmem:[%s2 + $0x1c] sm:$0xf]
      %v275 = vld [vmem:[%s2 + $0x20] sm:$0xf]
      %v276 = vld [vmem:[%s2 + $0x24] sm:$0xf]
      %v277 = vld [vmem:[%s2 + $0x28] sm:$0xf]
      %v278 = vld [vmem:[%s2 + $0x2c] sm:$0xf]
      %v279 = vld [vmem:[%s2 + $0x30] sm:$0xf]
      %v280 = vld [vmem:[%s2 + $0x34] sm:$0xf]
      %v281 = vld [vmem:[%s2 + $0x38] sm:$0xf]
      %v282 = vld [vmem:[%s2 + $0x3c] sm:$0xf]
      %v283 = vld [vmem:[%s3] sm:$0x1]
      %v285 = vlaneseq
      %v286 = vshrl.u32 %v285, 7
      %v287 = vsub.s32 0, %v286
      %v288 = vrot.slane %v283, %v287
      %v306 = vunpack.c.l.b16 %v267
      %v307 = vunpack.c.l.b16 %v268
      %v308 = vunpack.c.l.b16 %v269
      %v309 = vunpack.c.l.b16 %v270
      %v310 = vunpack.c.l.b16 %v271
      %v311 = vunpack.c.l.b16 %v272
      %v312 = vunpack.c.l.b16 %v273
      %v313 = vunpack.c.l.b16 %v274
      %v314 = vunpack.c.l.b16 %v275
      %v315 = vunpack.c.l.b16 %v276
      %v316 = vunpack.c.l.b16 %v277
      %v317 = vunpack.c.l.b16 %v278
      %v318 = vunpack.c.l.b16 %v279
      %v319 = vunpack.c.l.b16 %v280
      %v320 = vunpack.c.l.b16 %v281
      %v321 = vunpack.c.l.b16 %v282
      %v322 = vpack.c.b16 %v307, %v306
      %v323 = vpack.c.b16 %v309, %v308
      %v324 = vpack.c.b16 %v311, %v310
      %v325 = vpack.c.b16 %v313, %v312
      %v326 = vpack.c.b16 %v315, %v314
      %v327 = vpack.c.b16 %v317, %v316
      %v328 = vpack.c.b16 %v319, %v318
      %v329 = vpack.c.b16 %v321, %v320
      %338 = vmatprep.subr.bf16.mxu0 0
      %339 = vmatpush1.bf16.msra.mxu0 %v329
      %340 = vmatprep.subr.bf16.mxu0 0
      %341 = vmatpush1.bf16.msra.mxu0 %v328
      %342 = vmatprep.subr.bf16.mxu0 0
      %343 = vmatpush1.bf16.msra.mxu0 %v327
      %344 = vmatprep.subr.bf16.mxu0 0
      %345 = vmatpush1.bf16.msra.mxu0 %v326
      %346 = vmatprep.subr.bf16.mxu0 0
      %347 = vmatpush1.bf16.msra.mxu0 %v325
      %348 = vmatprep.subr.bf16.mxu0 0
      %349 = vmatpush1.bf16.msra.mxu0 %v324
      %350 = vmatprep.subr.bf16.mxu0 0
      %351 = vmatpush1.bf16.msra.mxu0 %v323
      %352 = vmatprep.subr.bf16.mxu0 0
      %353 = vmatpush1.bf16.msra.mxu0 %v322
      %354 = vmatprep.subr.bf16.mxu0 0
      %355 = vmatpush2.bf16.msra.mxu0 0
      %356 = vmatprep.subr.bf16.mxu0 0
      %357 = vmatpush2.bf16.msra.mxu0 0
      %358 = vmatprep.subr.bf16.mxu0 0
      %359 = vmatpush2.bf16.msra.mxu0 0
      %360 = vmatprep.subr.bf16.mxu0 0
      %361 = vmatpush2.bf16.msra.mxu0 0
      %362 = vmatprep.subr.bf16.mxu0 0
      %363 = vmatpush2.bf16.msra.mxu0 0
      %364 = vmatprep.subr.bf16.mxu0 0
      %365 = vmatpush2.bf16.msra.mxu0 0
      %366 = vmatprep.subr.bf16.mxu0 0
      %367 = vmatpush2.bf16.msra.mxu0 0
      %368 = vmatprep.subr.bf16.mxu0 0
      %369 = vmatpush2.bf16.msra.mxu0 0
      %370 = vmatprep.mubr.bf16.mxu0 0
      %371 = vmatmul.mubr.bf16.gmra.mxu0 %v266
      %v372 = vpop.f32.mrf.mxu0
      %v373 = vadd.f32 %v288, %v372
      %v374 = vpop.f32.mrf.mxu0
      %v375 = vpop.f32.mrf.mxu0
      %v376 = vpop.f32.mrf.mxu0
      %377 = vdwg.mxu0
      %v378 = vpack.c.bf16 %v373, %v373
      %v379 = vld [vmem:[%s4] sm:$0xf]
      %v380 = vld [vmem:[%s4 + $0x4] sm:$0xf]
      %v381 = vld [vmem:[%s4 + $0x8] sm:$0xf]
      %v382 = vld [vmem:[%s4 + $0xc] sm:$0xf]
      %v383 = vld [vmem:[%s4 + $0x10] sm:$0xf]
      %v384 = vld [vmem:[%s4 + $0x14] sm:$0xf]
      %v385 = vld [vmem:[%s4 + $0x18] sm:$0xf]
      %v386 = vld [vmem:[%s4 + $0x1c] sm:$0xf]
      %v387 = vld [vmem:[%s4 + $0x20] sm:$0xf]
      %v388 = vld [vmem:[%s4 + $0x24] sm:$0xf]
      %v389 = vld [vmem:[%s4 + $0x28] sm:$0xf]
      %v390 = vld [vmem:[%s4 + $0x2c] sm:$0xf]
      %v391 = vld [vmem:[%s4 + $0x30] sm:$0xf]
      %v392 = vld [vmem:[%s4 + $0x34] sm:$0xf]
      %v393 = vld [vmem:[%s4 + $0x38] sm:$0xf]
      %v394 = vld [vmem:[%s4 + $0x3c] sm:$0xf]
      %v411 = vunpack.c.l.b16 %v379
      %v412 = vunpack.c.l.b16 %v380
      %v413 = vunpack.c.l.b16 %v381
      %v414 = vunpack.c.l.b16 %v382
      %v415 = vunpack.c.l.b16 %v383
      %v416 = vunpack.c.l.b16 %v384
      %v417 = vunpack.c.l.b16 %v385
      %v418 = vunpack.c.l.b16 %v386
      %v419 = vunpack.c.l.b16 %v387
      %v420 = vunpack.c.l.b16 %v388
      %v421 = vunpack.c.l.b16 %v389
      %v422 = vunpack.c.l.b16 %v390
      %v423 = vunpack.c.l.b16 %v391
      %v424 = vunpack.c.l.b16 %v392
      %v425 = vunpack.c.l.b16 %v393
      %v426 = vunpack.c.l.b16 %v394
      %v427 = vpack.c.b16 %v412, %v411
      %v428 = vpack.c.b16 %v414, %v413
      %v429 = vpack.c.b16 %v416, %v415
      %v430 = vpack.c.b16 %v418, %v417
      %v431 = vpack.c.b16 %v420, %v419
      %v432 = vpack.c.b16 %v422, %v421
      %v433 = vpack.c.b16 %v424, %v423
      %v434 = vpack.c.b16 %v426, %v425
      %443 = vmatprep.subr.bf16.mxu0 0
      %444 = vmatpush1.bf16.msra.mxu0 %v434
      %445 = vmatprep.subr.bf16.mxu0 0
      %446 = vmatpush1.bf16.msra.mxu0 %v433
      %447 = vmatprep.subr.bf16.mxu0 0
      %448 = vmatpush1.bf16.msra.mxu0 %v432
      %449 = vmatprep.subr.bf16.mxu0 0
      %450 = vmatpush1.bf16.msra.mxu0 %v431
      %451 = vmatprep.subr.bf16.mxu0 0
      %452 = vmatpush1.bf16.msra.mxu0 %v430
      %453 = vmatprep.subr.bf16.mxu0 0
      %454 = vmatpush1.bf16.msra.mxu0 %v429
      %455 = vmatprep.subr.bf16.mxu0 0
      %456 = vmatpush1.bf16.msra.mxu0 %v428
      %457 = vmatprep.subr.bf16.mxu0 0
      %458 = vmatpush1.bf16.msra.mxu0 %v427
      %459 = vmatprep.subr.bf16.mxu0 0
      %460 = vmatpush2.bf16.msra.mxu0 0
      %461 = vmatprep.subr.bf16.mxu0 0
      %462 = vmatpush2.bf16.msra.mxu0 0
      %463 = vmatprep.subr.bf16.mxu0 0
      %464 = vmatpush2.bf16.msra.mxu0 0
      %465 = vmatprep.subr.bf16.mxu0 0
      %466 = vmatpush2.bf16.msra.mxu0 0
      %467 = vmatprep.subr.bf16.mxu0 0
      %468 = vmatpush2.bf16.msra.mxu0 0
      %469 = vmatprep.subr.bf16.mxu0 0
      %470 = vmatpush2.bf16.msra.mxu0 0
      %471 = vmatprep.subr.bf16.mxu0 0
      %472 = vmatpush2.bf16.msra.mxu0 0
      %473 = vmatprep.subr.bf16.mxu0 0
      %474 = vmatpush2.bf16.msra.mxu0 0
      %475 = vmatprep.mubr.bf16.mxu0 0
      %476 = vmatmul.mubr.bf16.gmra.mxu0 %v378
      %v477 = vpop.f32.mrf.mxu0
      %v478 = vadd.f32 0.0, %v477
      %v479 = vpop.f32.mrf.mxu0
      %v480 = vpop.f32.mrf.mxu0
      %v481 = vpop.f32.mrf.mxu0
      %482 = vdwg.mxu0
      %v483 = vld [vmem:[%s5] sm:$0x1]
      %484 = vmatprep.subr.bf16.mxu0 0
      %485 = vmatpush1.bf16.xpose.msra.mxu0 0
      %486 = vmatprep.subr.bf16.mxu0 0
      %487 = vmatpush1.bf16.xpose.msra.mxu0 0
      %488 = vmatprep.subr.bf16.mxu0 0
      %489 = vmatpush1.bf16.xpose.msra.mxu0 0
      %490 = vmatprep.subr.bf16.mxu0 0
      %491 = vmatpush1.bf16.xpose.msra.mxu0 0
      %492 = vmatprep.subr.bf16.mxu0 0
      %493 = vmatpush1.bf16.xpose.msra.mxu0 0
      %494 = vmatprep.subr.bf16.mxu0 0
      %495 = vmatpush1.bf16.xpose.msra.mxu0 0
      %496 = vmatprep.subr.bf16.mxu0 0
      %497 = vmatpush1.bf16.xpose.msra.mxu0 0
      %498 = vmatprep.subr.bf16.mxu0 0
      %499 = vmatpush1.bf16.xpose.msra.mxu0 %v378
      %500 = vmatprep.subr.bf16.mxu0 0
      %501 = vmatpush2.bf16.xpose.msra.mxu0 0
      %502 = vmatprep.subr.bf16.mxu0 0
      %503 = vmatpush2.bf16.xpose.msra.mxu0 0
      %504 = vmatprep.subr.bf16.mxu0 0
      %505 = vmatpush2.bf16.xpose.msra.mxu0 0
      %506 = vmatprep.subr.bf16.mxu0 0
      %507 = vmatpush2.bf16.xpose.msra.mxu0 0
      %508 = vmatprep.subr.bf16.mxu0 0
      %509 = vmatpush2.bf16.xpose.msra.mxu0 0
      %510 = vmatprep.subr.bf16.mxu0 0
      %511 = vmatpush2.bf16.xpose.msra.mxu0 0
      %512 = vmatprep.subr.bf16.mxu0 0
      %513 = vmatpush2.bf16.xpose.msra.mxu0 0
      %514 = vmatprep.subr.bf16.mxu0 0
      %515 = vmatpush2.bf16.xpose.msra.mxu0 0
      %516 = vmatprep.mubr.bf16.mxu0 0
      %517 = vmatmul.mubr.bf16.gmra.mxu0 %v483
      %v518 = vpop.f32.mrf.mxu0
      %v519 = vadd.f32 0.0, %v518
      %v520 = vpop.f32.mrf.mxu0
      %v521 = vpop.f32.mrf.mxu0
      %v522 = vpop.f32.mrf.mxu0
      %523 = vdwg.mxu0
      %525 = vset.pattern.permute.xlu0 0
      %526 = vperm.xlu0 %525, %v478
      %v527 = vpop.permute.xlu0 %526
      %v529 = vlaneseq
      %v530 = vshrl.u32 %v529, 7
      %v531 = vsub.s32 0, %v530
      %v532 = vrot.slane %v519, %v531
      %v533 = vadd.f32 %v527, %v532
      %vm534 = vcmp.gt.f32.partialorder %v533, 0.0
      %v535 = vmul.f32 %v533, 0.2
      %v536 = vsel %vm534, %v533, %v535
      %v537 = vld [vmem:[%s259] sm:$0xf]
      %v538 = vadd.f32 %v536, %v537
      %vm539 = vcmask 27648
      %v540 = vsel %vm539, %v538, -inf
      %541 = vmax.xlane.f32.xlu0 %v540
      %v542 = vpop.xlane.xlu0 %541
      %v543 = vsub.f32 %v538, %v542
      %v544 = vmul.f32 %v543, 1.442695
      %v545 = vpow.pop %v544
      %v546 = vsel %vm539, %v545, 0.0
      %547 = vadd.xlane.f32.xlu0 %v546
      %v548 = vpop.xlane.xlu0 %547
      %v549 = vrcp.pop %v548
      %v550 = vmul.f32 %v545, %v549
      %v551 = vpack.c.bf16 %v550, %v550
      %vm552 = vcmask 31744
      %v554 = vsel %vm552, %v551, 0
      %vm556 = vcmask 1041408
      %v558 = vsel %vm556, %v378, 0
      %560 = vmatprep.subr.bf16.mxu0 0
      %561 = vmatpush1.bf16.msra.mxu0 0
      %562 = vmatprep.subr.bf16.mxu0 0
      %563 = vmatpush1.bf16.msra.mxu0 0
      %564 = vmatprep.subr.bf16.mxu0 0
      %565 = vmatpush1.bf16.msra.mxu0 0
      %566 = vmatprep.subr.bf16.mxu0 0
      %567 = vmatpush1.bf16.msra.mxu0 0
      %568 = vmatprep.subr.bf16.mxu0 0
      %569 = vmatpush1.bf16.msra.mxu0 0
      %570 = vmatprep.subr.bf16.mxu0 0
      %571 = vmatpush1.bf16.msra.mxu0 0
      %572 = vmatprep.subr.bf16.mxu0 0
      %573 = vmatpush1.bf16.msra.mxu0 0
      %574 = vmatprep.subr.bf16.mxu0 0
      %575 = vmatpush1.bf16.msra.mxu0 %v558
      %576 = vmatprep.subr.bf16.mxu0 0
      %577 = vmatpush2.bf16.msra.mxu0 0
      %578 = vmatprep.subr.bf16.mxu0 0
      %579 = vmatpush2.bf16.msra.mxu0 0
      %580 = vmatprep.subr.bf16.mxu0 0
      %581 = vmatpush2.bf16.msra.mxu0 0
      %582 = vmatprep.subr.bf16.mxu0 0
      %583 = vmatpush2.bf16.msra.mxu0 0
      %584 = vmatprep.subr.bf16.mxu0 0
      %585 = vmatpush2.bf16.msra.mxu0 0
      %586 = vmatprep.subr.bf16.mxu0 0
      %587 = vmatpush2.bf16.msra.mxu0 0
      %588 = vmatprep.subr.bf16.mxu0 0
      %589 = vmatpush2.bf16.msra.mxu0 0
      %590 = vmatprep.subr.bf16.mxu0 0
      %591 = vmatpush2.bf16.msra.mxu0 0
      %592 = vmatprep.mubr.bf16.mxu0 0
      %593 = vmatmul.mubr.bf16.gmra.mxu0 %v554
      %v594 = vpop.f32.mrf.mxu0
      %v595 = vadd.f32 0.0, %v594
      %v596 = vpop.f32.mrf.mxu0
      %v597 = vpop.f32.mrf.mxu0
      %v598 = vpop.f32.mrf.mxu0
      %599 = vdwg.mxu0
      %vm600 = vcmp.gt.f32.partialorder %v595, 0.0
      %v601 = vmul.f32 %v595, 1.442695
      %v602 = vpow.pop %v601
      %v603 = vsub.f32 %v602, 1.0
      %v604 = vsel %vm600, %v595, %v603
      %605 = vst [vmem:[%s263] sm:$0xf] %v604
      %p606 = scmp.lt.s32.totalorder %s17, 5
      %s607 = scalar_select %p606, %s17, 5
      %s608 = smul.addr %s607, 4
      %s609 = scalar_lea.vmem %s6, %s608
      // Predicated region
      $region45: #{fwd.6} parent=43 // pred_check
        %p610 = pneg %p171
      $region46: #{fwd.6} parent=43 // pred_check_branch
        %612 = sbr.rel (%p610) target = $region48
      $region47: #{fwd.6} parent=43 // pred_region
        _
      $region48: #{fwd.6} parent=43 // pred_fallthru
        _
    $region44: #{fwd.6} parent=5 // pred_fallthru
      _
    %p613 = scmp.le.s32.totalorder 2, %s12
    // Predicated region
    $region49: #{fwd.6} parent=5 // pred_check
      %p614 = pneg %p613
    $region50: #{fwd.6} parent=5 // pred_check_branch
      %616 = sbr.rel (%p614) target = $region52
    $region51: #{fwd.6} parent=5 // pred_region
      %s617 = ssub.s32 %s12, 2
      // Predicated region
      $region53: #{fwd.6} parent=51 // pred_check
        %p618 = pneg %p177
      $region54: #{fwd.6} parent=51 // pred_check_branch
        %620 = sbr.rel (%p618) target = $region56
      $region55: #{fwd.6} parent=51 // pred_region
        %p621 = scmp.lt.s32.totalorder %s18, 5
        %s622 = scalar_select %p621, %s18, 5
        %s623 = smul.addr %s622, 4
        %s624 = scalar_lea.vmem %s6, %s623
      $region56: #{fwd.6} parent=51 // pred_fallthru
        _
    $region52: #{fwd.6} parent=5 // pred_fallthru
      _
  $region6: #{fwd.6} parent=0 // loop_footer
    %s16 = sadd.s32 1, %s12
  $region7: #{fwd.6} parent=0 // loop_footer_branch
    %11 = sbr.rel target = $region3
  $region8: #{fwd.6} parent=0 // loop_exit
    _

// kernel: fwd.5
$region0: #{fwd.5}
  #allocation0 [shape = 'u32[]', space=smem, size = 0x4, offset = 0x4, fixed_abs, tag = 'smem constant byte address 0x4 - core index']
  #allocation1 [shape = 'u32[144,128]{1,0:T(1,128)}', space=vmem, size = 0x12000, scoped, tag = 'internal scratch']
  %s0 = inlined_call_operand.vmem [shape: f32[10,128], index: 0, kind: input, shape index: {}]
  %s1 = inlined_call_operand.vmem [shape: f32[1,128], index: 1, kind: input, shape index: {}]
  %s2 = inlined_call_operand.vmem [shape: f32[1,128], index: 2, kind: input, shape index: {}]
  %s3 = inlined_call_operand.vmem [shape: f32[10,128], index: 3, kind: output, shape index: {}]
  %s4 = sld [smem:[#allocation0]]
  $region22: #{fwd.5} parent=0
    _
  %s6 = ssub.s32 1, %s4
  %s7 = scalar_select 0, %s6, %s4
  // Predicated region
  $region2: #{fwd.5} parent=0 // pred_check
    _
  $region3: #{fwd.5} parent=0 // pred_check_branch
    %9 = sbr.rel (0) target = $region5
  $region4: #{fwd.5} parent=0 // pred_region
    _
  $region5: #{fwd.5} parent=0 // pred_fallthru
    _
  // Predicated region
  $region6: #{fwd.5} parent=0 // pred_check
    _
  $region7: #{fwd.5} parent=0 // pred_check_branch
    %11 = sbr.rel (0) target = $region9
  $region8: #{fwd.5} parent=0 // pred_region
    _
  $region9: #{fwd.5} parent=0 // pred_fallthru
    _
  // Predicated region
  $region10: #{fwd.5} parent=0 // pred_check
    _
  $region11: #{fwd.5} parent=0 // pred_check_branch
    %13 = sbr.rel (0) target = $region13
  $region12: #{fwd.5} parent=0 // pred_region
    _
  $region13: #{fwd.5} parent=0 // pred_fallthru
    _
  %v14 = vld [vmem:[%s0] sm:$0xff]
  %v15 = vld [vmem:[%s0 + $0x8] sm:$0x3]
  %16 = vadd.xlane.f32.xlu0 %v14
  %v17 = vpop.xlane.xlu0 %16
  %vm18 = vcmask 1041408
  %v19 = vsel %vm18, %v15, 0.0
  %20 = vadd.xlane.f32.xlu0 %v19
  %v21 = vpop.xlane.xlu0 %20
  %v22 = vrcp.pop 128.0
  %v23 = vmul.f32 %v17, %v22
  %v24 = vmul.f32 %v21, %v22
  %v25 = vsub.f32 %v14, %v23
  %v26 = vsub.f32 %v15, %v24
  %v27 = vmul.f32 %v25, %v25
  %v28 = vmul.f32 %v26, %v26
  %29 = vadd.xlane.f32.xlu0 %v27
  %v30 = vpop.xlane.xlu0 %29
  %v31 = vsel %vm18, %v28, 0.0
  %32 = vadd.xlane.f32.xlu0 %v31
  %v33 = vpop.xlane.xlu0 %32
  %v34 = vmul.f32 %v30, %v22
  %v35 = vmul.f32 %v33, %v22
  %v36 = vadd.f32 %v34, 1e-12
  %v37 = vadd.f32 %v35, 1e-12
  %v38 = vrsqrt.pop %v36
  %v39 = vrsqrt.pop %v37
  %v40 = vmul.f32 %v25, %v38
  %v41 = vmul.f32 %v26, %v39
  %v42 = vld [vmem:[%s1] sm:$0x1]
  %v44 = vlaneseq
  %v45 = vshrl.u32 %v44, 7
  %v46 = vsub.s32 0, %v45
  %v47 = vrot.slane %v42, %v46
  %v49 = vmul.f32 %v40, %v47
  %v50 = vmul.f32 %v41, %v47
  %v51 = vld [vmem:[%s2] sm:$0x1]
  %v53 = vlaneseq
  %v54 = vshrl.u32 %v53, 7
  %v55 = vsub.s32 0, %v54
  %v56 = vrot.slane %v51, %v55
  %v58 = vadd.f32 %v49, %v56
  %v59 = vadd.f32 %v50, %v56
  %60 = vst [vmem:[%s3] sm:$0xff] %v58
  %61 = vst [vmem:[%s3 + $0x8] sm:$0x3] %v59
  // Predicated region
  $region14: #{fwd.5} parent=0 // pred_check
    _
  $region15: #{fwd.5} parent=0 // pred_check_branch
    %63 = sbr.rel (0) target = $region17
  $region16: #{fwd.5} parent=0 // pred_region
    _
  $region17: #{fwd.5} parent=0 // pred_fallthru
    _
  // Predicated region
  $region18: #{fwd.5} parent=0 // pred_check
    _
  $region19: #{fwd.5} parent=0 // pred_check_branch
    %65 = sbr.rel (0) target = $region21
  $region20: #{fwd.5} parent=0 // pred_region
    _
  $region21: #{fwd.5} parent=0 // pred_fallthru
    _

// kernel: fwd.9
$region0: #{fwd.9}
  #allocation0 [shape = 'u32[]', space=smem, size = 0x4, offset = 0x4, fixed_abs, tag = 'smem constant byte address 0x4 - core index']
  #allocation1 [shape = 'u32[144,128]{1,0:T(1,128)}', space=vmem, size = 0x12000, scoped, tag = 'internal scratch']
  %s0 = inlined_call_operand.vmem [shape: f32[2,128], index: 0, kind: input, shape index: {}]
  %s1 = inlined_call_operand.vmem [shape: f32[1,128], index: 1, kind: input, shape index: {}]
  %s2 = inlined_call_operand.vmem [shape: f32[1,128], index: 2, kind: input, shape index: {}]
  %s3 = inlined_call_operand.vmem [shape: bf16[128,11], index: 3, kind: input, shape index: {}]
  %s4 = inlined_call_operand.vmem [shape: f32[1,11], index: 4, kind: input, shape index: {}]
  %s5 = inlined_call_operand.vmem [shape: f32[2,11], index: 5, kind: output, shape index: {}]
  %s6 = sld [smem:[#allocation0]]
  $region30: #{fwd.9} parent=0
    _
  %s8 = ssub.s32 1, %s6
  %s9 = scalar_select 0, %s8, %s6
  // Predicated region
  $region2: #{fwd.9} parent=0 // pred_check
    _
  $region3: #{fwd.9} parent=0 // pred_check_branch
    %11 = sbr.rel (0) target = $region5
  $region4: #{fwd.9} parent=0 // pred_region
    _
  $region5: #{fwd.9} parent=0 // pred_fallthru
    _
  // Predicated region
  $region6: #{fwd.9} parent=0 // pred_check
    _
  $region7: #{fwd.9} parent=0 // pred_check_branch
    %13 = sbr.rel (0) target = $region9
  $region8: #{fwd.9} parent=0 // pred_region
    _
  $region9: #{fwd.9} parent=0 // pred_fallthru
    _
  // Predicated region
  $region10: #{fwd.9} parent=0 // pred_check
    _
  $region11: #{fwd.9} parent=0 // pred_check_branch
    %15 = sbr.rel (0) target = $region13
  $region12: #{fwd.9} parent=0 // pred_region
    _
  $region13: #{fwd.9} parent=0 // pred_fallthru
    _
  // Predicated region
  $region14: #{fwd.9} parent=0 // pred_check
    _
  $region15: #{fwd.9} parent=0 // pred_check_branch
    %17 = sbr.rel (0) target = $region17
  $region16: #{fwd.9} parent=0 // pred_region
    _
  $region17: #{fwd.9} parent=0 // pred_fallthru
    _
  // Predicated region
  $region18: #{fwd.9} parent=0 // pred_check
    _
  $region19: #{fwd.9} parent=0 // pred_check_branch
    %19 = sbr.rel (0) target = $region21
  $region20: #{fwd.9} parent=0 // pred_region
    _
  $region21: #{fwd.9} parent=0 // pred_fallthru
    _
  %v21 = vld [vmem:[%s0] sm:$0x3]
  %vm22 = vcmask 1041408
  %v23 = vsel %vm22, %v21, 0.0
  %24 = vadd.xlane.f32.xlu0 %v23
  %v25 = vpop.xlane.xlu0 %24
  %v26 = vrcp.pop 128.0
  %v27 = vmul.f32 %v25, %v26
  %v28 = vsub.f32 %v21, %v27
  %v29 = vmul.f32 %v28, %v28
  %v30 = vsel %vm22, %v29, 0.0
  %31 = vadd.xlane.f32.xlu0 %v30
  %v32 = vpop.xlane.xlu0 %31
  %v33 = vmul.f32 %v32, %v26
  %v34 = vadd.f32 %v33, 1e-07
  %v35 = vrsqrt.pop %v34
  %v36 = vmul.f32 %v28, %v35
  %v37 = vld [vmem:[%s1] sm:$0x1]
  %v39 = vlaneseq
  %v40 = vshrl.u32 %v39, 7
  %v41 = vsub.s32 0, %v40
  %v42 = vrot.slane %v37, %v41
  %v44 = vmul.f32 %v36, %v42
  %v45 = vld [vmem:[%s2] sm:$0x1]
  %v47 = vlaneseq
  %v48 = vshrl.u32 %v47, 7
  %v49 = vsub.s32 0, %v48
  %v50 = vrot.slane %v45, %v49
  %v52 = vadd.f32 %v44, %v50
  %v53 = vpack.c.bf16 %v52, %v52
  %v54 = vld [vmem:[%s3] sm:$0xf]
  %v55 = vld [vmem:[%s3 + $0x4] sm:$0xf]
  %v56 = vld [vmem:[%s3 + $0x8] sm:$0xf]
  %v57 = vld [vmem:[%s3 + $0xc] sm:$0xf]
  %v58 = vld [vmem:[%s3 + $0x10] sm:$0xf]
  %v59 = vld [vmem:[%s3 + $0x14] sm:$0xf]
  %v60 = vld [vmem:[%s3 + $0x18] sm:$0xf]
  %v61 = vld [vmem:[%s3 + $0x1c] sm:$0xf]
  %v62 = vld [vmem:[%s3 + $0x20] sm:$0xf]
  %v63 = vld [vmem:[%s3 + $0x24] sm:$0xf]
  %v64 = vld [vmem:[%s3 + $0x28] sm:$0xf]
  %v65 = vld [vmem:[%s3 + $0x2c] sm:$0xf]
  %v66 = vld [vmem:[%s3 + $0x30] sm:$0xf]
  %v67 = vld [vmem:[%s3 + $0x34] sm:$0xf]
  %v68 = vld [vmem:[%s3 + $0x38] sm:$0xf]
  %v69 = vld [vmem:[%s3 + $0x3c] sm:$0xf]
  %v70 = vld [vmem:[%s4] sm:$0x1]
  %v72 = vlaneseq
  %v73 = vshrl.u32 %v72, 7
  %v74 = vsub.s32 0, %v73
  %v75 = vrot.slane %v70, %v74
  %v93 = vunpack.c.l.b16 %v54
  %v94 = vunpack.c.l.b16 %v55
  %v95 = vunpack.c.l.b16 %v56
  %v96 = vunpack.c.l.b16 %v57
  %v97 = vunpack.c.l.b16 %v58
  %v98 = vunpack.c.l.b16 %v59
  %v99 = vunpack.c.l.b16 %v60
  %v100 = vunpack.c.l.b16 %v61
  %v101 = vunpack.c.l.b16 %v62
  %v102 = vunpack.c.l.b16 %v63
  %v103 = vunpack.c.l.b16 %v64
  %v104 = vunpack.c.l.b16 %v65
  %v105 = vunpack.c.l.b16 %v66
  %v106 = vunpack.c.l.b16 %v67
  %v107 = vunpack.c.l.b16 %v68
  %v108 = vunpack.c.l.b16 %v69
  %v109 = vpack.c.b16 %v94, %v93
  %v110 = vpack.c.b16 %v96, %v95
  %v111 = vpack.c.b16 %v98, %v97
  %v112 = vpack.c.b16 %v100, %v99
  %v113 = vpack.c.b16 %v102, %v101
  %v114 = vpack.c.b16 %v104, %v103
  %v115 = vpack.c.b16 %v106, %v105
  %v116 = vpack.c.b16 %v108, %v107
  %125 = vmatprep.subr.bf16.mxu0 0
  %126 = vmatpush1.bf16.msra.mxu0 %v116
  %127 = vmatprep.subr.bf16.mxu0 0
  %128 = vmatpush1.bf16.msra.mxu0 %v115
  %129 = vmatprep.subr.bf16.mxu0 0
  %130 = vmatpush1.bf16.msra.mxu0 %v114
  %131 = vmatprep.subr.bf16.mxu0 0
  %132 = vmatpush1.bf16.msra.mxu0 %v113
  %133 = vmatprep.subr.bf16.mxu0 0
  %134 = vmatpush1.bf16.msra.mxu0 %v112
  %135 = vmatprep.subr.bf16.mxu0 0
  %136 = vmatpush1.bf16.msra.mxu0 %v111
  %137 = vmatprep.subr.bf16.mxu0 0
  %138 = vmatpush1.bf16.msra.mxu0 %v110
  %139 = vmatprep.subr.bf16.mxu0 0
  %140 = vmatpush1.bf16.msra.mxu0 %v109
  %141 = vmatprep.subr.bf16.mxu0 0
  %142 = vmatpush2.bf16.msra.mxu0 0
  %143 = vmatprep.subr.bf16.mxu0 0
  %144 = vmatpush2.bf16.msra.mxu0 0
  %145 = vmatprep.subr.bf16.mxu0 0
  %146 = vmatpush2.bf16.msra.mxu0 0
  %147 = vmatprep.subr.bf16.mxu0 0
  %148 = vmatpush2.bf16.msra.mxu0 0
  %149 = vmatprep.subr.bf16.mxu0 0
  %150 = vmatpush2.bf16.msra.mxu0 0
  %151 = vmatprep.subr.bf16.mxu0 0
  %152 = vmatpush2.bf16.msra.mxu0 0
  %153 = vmatprep.subr.bf16.mxu0 0
  %154 = vmatpush2.bf16.msra.mxu0 0
  %155 = vmatprep.subr.bf16.mxu0 0
  %156 = vmatpush2.bf16.msra.mxu0 0
  %157 = vmatprep.mubr.bf16.mxu0 0
  %158 = vmatmul.mubr.bf16.gmra.mxu0 %v53
  %v159 = vpop.f32.mrf.mxu0
  %v160 = vadd.f32 %v75, %v159
  %v161 = vpop.f32.mrf.mxu0
  %v162 = vpop.f32.mrf.mxu0
  %v163 = vpop.f32.mrf.mxu0
  %164 = vdwg.mxu0
  %vm165 = vcmask 82944
  %166 = vst.msk [vmem:[%s5] sm:$0x3] %vm165, %v160
  // Predicated region
  $region22: #{fwd.9} parent=0 // pred_check
    _
  $region23: #{fwd.9} parent=0 // pred_check_branch
    %168 = sbr.rel (0) target = $region25
  $region24: #{fwd.9} parent=0 // pred_region
    _
  $region25: #{fwd.9} parent=0 // pred_fallthru
    _
  // Predicated region
  $region26: #{fwd.9} parent=0 // pred_check
    _
  $region27: #{fwd.9} parent=0 // pred_check_branch
    %170 = sbr.rel (0) target = $region29
  $region28: #{fwd.9} parent=0 // pred_region
    _
  $region29: #{fwd.9} parent=0 // pred_fallthru
    _

// kernel: fwd.8
$region0: #{fwd.8}
  #allocation0 [shape = 'u32[]', space=smem, size = 0x4, offset = 0x4, fixed_abs, tag = 'smem constant byte address 0x4 - core index']
  #allocation1 [shape = 'u32[144,128]{1,0:T(1,128)}', space=vmem, size = 0x12000, scoped, tag = 'internal scratch']
  #allocation2 [shape = 'f32[5,128]{1,0:T(8,128)}', space=vmem, size = 0x1000, scoped, tag = 'scratch operand']
  %s0 = inlined_call_operand.vmem [shape: f32[2,5,128], index: 0, kind: input, shape index: {}]
  %s1 = inlined_call_operand.vmem [shape: f32[2,5,5], index: 1, kind: input, shape index: {}]
  %s2 = inlined_call_operand.vmem [shape: f32[2,8,5,5], index: 2, kind: input, shape index: {}]
  %s3 = inlined_call_operand.vmem [shape: f32[2,1,128], index: 3, kind: input, shape index: {}]
  %s4 = inlined_call_operand.vmem [shape: f32[2,1,128], index: 4, kind: input, shape index: {}]
  %s5 = inlined_call_operand.vmem [shape: bf16[2,128,384], index: 5, kind: input, shape index: {}]
  %s6 = inlined_call_operand.vmem [shape: f32[2,1,384], index: 6, kind: input, shape index: {}]
  %s7 = inlined_call_operand.vmem [shape: bf16[2,128,128], index: 7, kind: input, shape index: {}]
  %s8 = inlined_call_operand.vmem [shape: f32[2,1,128], index: 8, kind: input, shape index: {}]
  %s9 = inlined_call_operand.vmem [shape: f32[2,1,128], index: 9, kind: input, shape index: {}]
  %s10 = inlined_call_operand.vmem [shape: f32[2,1,128], index: 10, kind: input, shape index: {}]
  %s11 = inlined_call_operand.vmem [shape: bf16[2,128,256], index: 11, kind: input, shape index: {}]
  %s12 = inlined_call_operand.vmem [shape: f32[2,1,256], index: 12, kind: input, shape index: {}]
  %s13 = inlined_call_operand.vmem [shape: bf16[2,256,128], index: 13, kind: input, shape index: {}]
  %s14 = inlined_call_operand.vmem [shape: f32[2,1,128], index: 14, kind: input, shape index: {}]
  %s15 = inlined_call_operand.vmem [shape: bf16[128,32], index: 15, kind: input, shape index: {}]
  %s16 = inlined_call_operand.vmem [shape: bf16[32,128], index: 16, kind: input, shape index: {}]
  %s17 = inlined_call_operand.vmem [shape: f32[1,128], index: 17, kind: input, shape index: {}]
  %s18 = inlined_call_operand.vmem [shape: f32[1,128], index: 18, kind: input, shape index: {}]
  %s19 = inlined_call_operand.vmem [shape: f32[2,5,128], index: 19, kind: output, shape index: {}]
  %s20 = sld [smem:[#allocation0]]
  $region117: #{fwd.8} parent=0
    _
  %s22 = ssub.s32 1, %s20
  %s23 = scalar_select 0, %s22, %s20
  loop: start=0, step=1, limit=6
  $region2: #{fwd.8} parent=0 // loop_pre_header
    _
  $region3: #{fwd.8} parent=0 // loop_header
    %s25 = sphi 0, %s29
    %p26 = scmp.ge.s32.totalorder %s25, 6
    %s32 = sphi 0, %s44
    %s33 = sphi 0, %s40
    %s34 = sphi 0, %s32
    %s35 = sphi 0, %s33
    %s36 = sphi 0, %s34
    %s37 = sphi 0, %s35
    %s47 = sphi 0, %s49
    %s50 = sphi 0, %s47
    %s51 = sphi 0, %s50
    %s67 = sphi 0, %s51
    %s73 = sphi 0, %s75
    %s76 = sphi 0, %s73
    %s77 = sphi 0, %s76
    %s93 = sphi 0, %s77
    %s99 = sphi 0, %s101
    %s102 = sphi 0, %s99
    %s103 = sphi 0, %s102
    %s119 = sphi 0, %s103
    %s125 = sphi 0, %s127
    %s128 = sphi 0, %s125
    %s129 = sphi 0, %s128
    %s145 = sphi 0, %s129
    %s151 = sphi 0, %s153
    %s154 = sphi 0, %s151
    %s155 = sphi 0, %s154
    %s171 = sphi 0, %s155
    %s177 = sphi 0, %s179
    %s180 = sphi 0, %s177
    %s181 = sphi 0, %s180
    %s197 = sphi 0, %s181
    %s203 = sphi 0, %s205
    %s206 = sphi 0, %s203
    %s207 = sphi 0, %s206
    %s223 = sphi 0, %s207
    %s229 = sphi 0, %s231
    %s232 = sphi 0, %s229
    %s233 = sphi 0, %s232
    %s249 = sphi 0, %s233
    %s255 = sphi 0, %s257
    %s258 = sphi 0, %s255
    %s259 = sphi 0, %s258
    %s275 = sphi 0, %s259
    %s281 = sphi 0, %s283
    %s284 = sphi 0, %s281
    %s285 = sphi 0, %s284
    %s301 = sphi 0, %s285
    %s307 = sphi 0, %s309
    %s310 = sphi 0, %s307
    %s311 = sphi 0, %s310
    %s327 = sphi 0, %s311
    %s333 = sphi 0, %s335
    %s336 = sphi 0, %s333
    %s337 = sphi 0, %s336
    %s353 = sphi 0, %s337
    %s359 = sphi 0, %s361
    %s362 = sphi 0, %s359
    %s363 = sphi 0, %s362
    %s379 = sphi 0, %s363
    %s385 = sphi 0, %s387
    %s388 = sphi 0, %s385
    %s389 = sphi 0, %s388
    %s405 = sphi 0, %s389
    %s411 = sphi 0, %s413
    %s414 = sphi 0, %s411
    %s415 = sphi 0, %s414
    %s431 = sphi 0, %s415
    %s435 = sphi 0, %s435
    %s437 = sphi 0, %s435
    %s438 = sphi 0, %s437
    %s452 = sphi 0, %s438
    %s456 = sphi 0, %s456
    %s458 = sphi 0, %s456
    %s459 = sphi 0, %s458
    %s473 = sphi 0, %s459
    %s477 = sphi 0, %s477
    %s479 = sphi 0, %s477
    %s480 = sphi 0, %s479
    %s494 = sphi 0, %s480
    %s498 = sphi 0, %s498
    %s500 = sphi 0, %s498
    %s501 = sphi 0, %s500
    %s515 = sphi 0, %s501
    %s521 = sphi 0, %s523
    %s524 = sphi 0, %s521
    %s525 = sphi 0, %s524
    %s541 = sphi 0, %s525
  $region4: #{fwd.8} parent=0 // loop_header_branch
    %28 = sbr.rel (%p26) target = $region8
  $region5: #{fwd.8} parent=0 // loop_body
    %s30 = ssub.s32 %s25, 1
    %s31 = ssub.s32 %s25, 2
    %s38 = sadd.s32 1, %s33
    %p39 = scmp.ge.s32.totalorder %s38, 2
    %s40 = scalar_select %p39, 0, %s38
    %s41 = sadd.s32 1, %s32
    %s42 = scalar_select %p39, %s41, %s32
    %p43 = scmp.ge.s32.totalorder %s42, 2
    %s44 = scalar_select %p43, 0, %s42
    %s45 = ssub.s32 %s32, %s44
    %p46 = scmp.eq.s32.totalorder %s45, 0
    %s48 = sadd.s32 %s47, 1
    %s49 = scalar_select %p46, %s47, %s48
    %p52 = pneg %p46
    %p53 = scmp.eq.s32.totalorder %s25, 3
    %p54 = por %p52, %p53
    %p55 = scmp.ne.s32.totalorder %s47, %s50
    %p56 = scmp.eq.s32.totalorder %s25, 0
    %p57 = por %p55, %p56
    %p58 = scmp.ne.s32.totalorder %s47, %s50
    %p59 = scmp.eq.s32.totalorder %s30, 3
    %p60 = por %p58, %p59
    %p61 = scmp.ne.s32.totalorder %s50, %s51
    %p62 = scmp.eq.s32.totalorder %s30, 0
    %p63 = por %p61, %p62
    %p64 = scmp.ne.s32.totalorder %s50, %s51
    %p65 = scmp.eq.s32.totalorder %s31, 3
    %p66 = por %p64, %p65
    %p68 = scmp.ne.s32.totalorder %s51, %s67
    %p69 = scmp.eq.s32.totalorder %s31, 0
    %p70 = por %p68, %p69
    %s71 = ssub.s32 %s32, %s44
    %p72 = scmp.eq.s32.totalorder %s71, 0
    %s74 = sadd.s32 %s73, 1
    %s75 = scalar_select %p72, %s73, %s74
    %p78 = pneg %p72
    %p79 = scmp.eq.s32.totalorder %s25, 3
    %p80 = por %p78, %p79
    %p81 = scmp.ne.s32.totalorder %s73, %s76
    %p82 = scmp.eq.s32.totalorder %s25, 0
    %p83 = por %p81, %p82
    %p84 = scmp.ne.s32.totalorder %s73, %s76
    %p85 = scmp.eq.s32.totalorder %s30, 3
    %p86 = por %p84, %p85
    %p87 = scmp.ne.s32.totalorder %s76, %s77
    %p88 = scmp.eq.s32.totalorder %s30, 0
    %p89 = por %p87, %p88
    %p90 = scmp.ne.s32.totalorder %s76, %s77
    %p91 = scmp.eq.s32.totalorder %s31, 3
    %p92 = por %p90, %p91
    %p94 = scmp.ne.s32.totalorder %s77, %s93
    %p95 = scmp.eq.s32.totalorder %s31, 0
    %p96 = por %p94, %p95
    %s97 = ssub.s32 %s32, %s44
    %p98 = scmp.eq.s32.totalorder %s97, 0
    %s100 = sadd.s32 %s99, 1
    %s101 = scalar_select %p98, %s99, %s100
    %p104 = pneg %p98
    %p105 = scmp.eq.s32.totalorder %s25, 3
    %p106 = por %p104, %p105
    %p107 = scmp.ne.s32.totalorder %s99, %s102
    %p108 = scmp.eq.s32.totalorder %s25, 0
    %p109 = por %p107, %p108
    %p110 = scmp.ne.s32.totalorder %s99, %s102
    %p111 = scmp.eq.s32.totalorder %s30, 3
    %p112 = por %p110, %p111
    %p113 = scmp.ne.s32.totalorder %s102, %s103
    %p114 = scmp.eq.s32.totalorder %s30, 0
    %p115 = por %p113, %p114
    %p116 = scmp.ne.s32.totalorder %s102, %s103
    %p117 = scmp.eq.s32.totalorder %s31, 3
    %p118 = por %p116, %p117
    %p120 = scmp.ne.s32.totalorder %s103, %s119
    %p121 = scmp.eq.s32.totalorder %s31, 0
    %p122 = por %p120, %p121
    %s123 = ssub.s32 %s33, %s40
    %p124 = scmp.eq.s32.totalorder %s123, 0
    %s126 = sadd.s32 %s125, 1
    %s127 = scalar_select %p124, %s125, %s126
    %p130 = pneg %p124
    %p131 = scmp.eq.s32.totalorder %s25, 3
    %p132 = por %p130, %p131
    %p133 = scmp.ne.s32.totalorder %s125, %s128
    %p134 = scmp.eq.s32.totalorder %s25, 0
    %p135 = por %p133, %p134
    %p136 = scmp.ne.s32.totalorder %s125, %s128
    %p137 = scmp.eq.s32.totalorder %s30, 3
    %p138 = por %p136, %p137
    %p139 = scmp.ne.s32.totalorder %s128, %s129
    %p140 = scmp.eq.s32.totalorder %s30, 0
    %p141 = por %p139, %p140
    %p142 = scmp.ne.s32.totalorder %s128, %s129
    %p143 = scmp.eq.s32.totalorder %s31, 3
    %p144 = por %p142, %p143
    %p146 = scmp.ne.s32.totalorder %s129, %s145
    %p147 = scmp.eq.s32.totalorder %s31, 0
    %p148 = por %p146, %p147
    %s149 = ssub.s32 %s33, %s40
    %p150 = scmp.eq.s32.totalorder %s149, 0
    %s152 = sadd.s32 %s151, 1
    %s153 = scalar_select %p150, %s151, %s152
    %p156 = pneg %p150
    %p157 = scmp.eq.s32.totalorder %s25, 3
    %p158 = por %p156, %p157
    %p159 = scmp.ne.s32.totalorder %s151, %s154
    %p160 = scmp.eq.s32.totalorder %s25, 0
    %p161 = por %p159, %p160
    %p162 = scmp.ne.s32.totalorder %s151, %s154
    %p163 = scmp.eq.s32.totalorder %s30, 3
    %p164 = por %p162, %p163
    %p165 = scmp.ne.s32.totalorder %s154, %s155
    %p166 = scmp.eq.s32.totalorder %s30, 0
    %p167 = por %p165, %p166
    %p168 = scmp.ne.s32.totalorder %s154, %s155
    %p169 = scmp.eq.s32.totalorder %s31, 3
    %p170 = por %p168, %p169
    %p172 = scmp.ne.s32.totalorder %s155, %s171
    %p173 = scmp.eq.s32.totalorder %s31, 0
    %p174 = por %p172, %p173
    %s175 = ssub.s32 %s33, %s40
    %p176 = scmp.eq.s32.totalorder %s175, 0
    %s178 = sadd.s32 %s177, 1
    %s179 = scalar_select %p176, %s177, %s178
    %p182 = pneg %p176
    %p183 = scmp.eq.s32.totalorder %s25, 3
    %p184 = por %p182, %p183
    %p185 = scmp.ne.s32.totalorder %s177, %s180
    %p186 = scmp.eq.s32.totalorder %s25, 0
    %p187 = por %p185, %p186
    %p188 = scmp.ne.s32.totalorder %s177, %s180
    %p189 = scmp.eq.s32.totalorder %s30, 3
    %p190 = por %p188, %p189
    %p191 = scmp.ne.s32.totalorder %s180, %s181
    %p192 = scmp.eq.s32.totalorder %s30, 0
    %p193 = por %p191, %p192
    %p194 = scmp.ne.s32.totalorder %s180, %s181
    %p195 = scmp.eq.s32.totalorder %s31, 3
    %p196 = por %p194, %p195
    %p198 = scmp.ne.s32.totalorder %s181, %s197
    %p199 = scmp.eq.s32.totalorder %s31, 0
    %p200 = por %p198, %p199
    %s201 = ssub.s32 %s33, %s40
    %p202 = scmp.eq.s32.totalorder %s201, 0
    %s204 = sadd.s32 %s203, 1
    %s205 = scalar_select %p202, %s203, %s204
    %p208 = pneg %p202
    %p209 = scmp.eq.s32.totalorder %s25, 3
    %p210 = por %p208, %p209
    %p211 = scmp.ne.s32.totalorder %s203, %s206
    %p212 = scmp.eq.s32.totalorder %s25, 0
    %p213 = por %p211, %p212
    %p214 = scmp.ne.s32.totalorder %s203, %s206
    %p215 = scmp.eq.s32.totalorder %s30, 3
    %p216 = por %p214, %p215
    %p217 = scmp.ne.s32.totalorder %s206, %s207
    %p218 = scmp.eq.s32.totalorder %s30, 0
    %p219 = por %p217, %p218
    %p220 = scmp.ne.s32.totalorder %s206, %s207
    %p221 = scmp.eq.s32.totalorder %s31, 3
    %p222 = por %p220, %p221
    %p224 = scmp.ne.s32.totalorder %s207, %s223
    %p225 = scmp.eq.s32.totalorder %s31, 0
    %p226 = por %p224, %p225
    %s227 = ssub.s32 %s33, %s40
    %p228 = scmp.eq.s32.totalorder %s227, 0
    %s230 = sadd.s32 %s229, 1
    %s231 = scalar_select %p228, %s229, %s230
    %p234 = pneg %p228
    %p235 = scmp.eq.s32.totalorder %s25, 3
    %p236 = por %p234, %p235
    %p237 = scmp.ne.s32.totalorder %s229, %s232
    %p238 = scmp.eq.s32.totalorder %s25, 0
    %p239 = por %p237, %p238
    %p240 = scmp.ne.s32.totalorder %s229, %s232
    %p241 = scmp.eq.s32.totalorder %s30, 3
    %p242 = por %p240, %p241
    %p243 = scmp.ne.s32.totalorder %s232, %s233
    %p244 = scmp.eq.s32.totalorder %s30, 0
    %p245 = por %p243, %p244
    %p246 = scmp.ne.s32.totalorder %s232, %s233
    %p247 = scmp.eq.s32.totalorder %s31, 3
    %p248 = por %p246, %p247
    %p250 = scmp.ne.s32.totalorder %s233, %s249
    %p251 = scmp.eq.s32.totalorder %s31, 0
    %p252 = por %p250, %p251
    %s253 = ssub.s32 %s33, %s40
    %p254 = scmp.eq.s32.totalorder %s253, 0
    %s256 = sadd.s32 %s255, 1
    %s257 = scalar_select %p254, %s255, %s256
    %p260 = pneg %p254
    %p261 = scmp.eq.s32.totalorder %s25, 3
    %p262 = por %p260, %p261
    %p263 = scmp.ne.s32.totalorder %s255, %s258
    %p264 = scmp.eq.s32.totalorder %s25, 0
    %p265 = por %p263, %p264
    %p266 = scmp.ne.s32.totalorder %s255, %s258
    %p267 = scmp.eq.s32.totalorder %s30, 3
    %p268 = por %p266, %p267
    %p269 = scmp.ne.s32.totalorder %s258, %s259
    %p270 = scmp.eq.s32.totalorder %s30, 0
    %p271 = por %p269, %p270
    %p272 = scmp.ne.s32.totalorder %s258, %s259
    %p273 = scmp.eq.s32.totalorder %s31, 3
    %p274 = por %p272, %p273
    %p276 = scmp.ne.s32.totalorder %s259, %s275
    %p277 = scmp.eq.s32.totalorder %s31, 0
    %p278 = por %p276, %p277
    %s279 = ssub.s32 %s33, %s40
    %p280 = scmp.eq.s32.totalorder %s279, 0
    %s282 = sadd.s32 %s281, 1
    %s283 = scalar_select %p280, %s281, %s282
    %p286 = pneg %p280
    %p287 = scmp.eq.s32.totalorder %s25, 3
    %p288 = por %p286, %p287
    %p289 = scmp.ne.s32.totalorder %s281, %s284
    %p290 = scmp.eq.s32.totalorder %s25, 0
    %p291 = por %p289, %p290
    %p292 = scmp.ne.s32.totalorder %s281, %s284
    %p293 = scmp.eq.s32.totalorder %s30, 3
    %p294 = por %p292, %p293
    %p295 = scmp.ne.s32.totalorder %s284, %s285
    %p296 = scmp.eq.s32.totalorder %s30, 0
    %p297 = por %p295, %p296
    %p298 = scmp.ne.s32.totalorder %s284, %s285
    %p299 = scmp.eq.s32.totalorder %s31, 3
    %p300 = por %p298, %p299
    %p302 = scmp.ne.s32.totalorder %s285, %s301
    %p303 = scmp.eq.s32.totalorder %s31, 0
    %p304 = por %p302, %p303
    %s305 = ssub.s32 %s33, %s40
    %p306 = scmp.eq.s32.totalorder %s305, 0
    %s308 = sadd.s32 %s307, 1
    %s309 = scalar_select %p306, %s307, %s308
    %p312 = pneg %p306
    %p313 = scmp.eq.s32.totalorder %s25, 3
    %p314 = por %p312, %p313
    %p315 = scmp.ne.s32.totalorder %s307, %s310
    %p316 = scmp.eq.s32.totalorder %s25, 0
    %p317 = por %p315, %p316
    %p318 = scmp.ne.s32.totalorder %s307, %s310
    %p319 = scmp.eq.s32.totalorder %s30, 3
    %p320 = por %p318, %p319
    %p321 = scmp.ne.s32.totalorder %s310, %s311
    %p322 = scmp.eq.s32.totalorder %s30, 0
    %p323 = por %p321, %p322
    %p324 = scmp.ne.s32.totalorder %s310, %s311
    %p325 = scmp.eq.s32.totalorder %s31, 3
    %p326 = por %p324, %p325
    %p328 = scmp.ne.s32.totalorder %s311, %s327
    %p329 = scmp.eq.s32.totalorder %s31, 0
    %p330 = por %p328, %p329
    %s331 = ssub.s32 %s33, %s40
    %p332 = scmp.eq.s32.totalorder %s331, 0
    %s334 = sadd.s32 %s333, 1
    %s335 = scalar_select %p332, %s333, %s334
    %p338 = pneg %p332
    %p339 = scmp.eq.s32.totalorder %s25, 3
    %p340 = por %p338, %p339
    %p341 = scmp.ne.s32.totalorder %s333, %s336
    %p342 = scmp.eq.s32.totalorder %s25, 0
    %p343 = por %p341, %p342
    %p344 = scmp.ne.s32.totalorder %s333, %s336
    %p345 = scmp.eq.s32.totalorder %s30, 3
    %p346 = por %p344, %p345
    %p347 = scmp.ne.s32.totalorder %s336, %s337
    %p348 = scmp.eq.s32.totalorder %s30, 0
    %p349 = por %p347, %p348
    %p350 = scmp.ne.s32.totalorder %s336, %s337
    %p351 = scmp.eq.s32.totalorder %s31, 3
    %p352 = por %p350, %p351
    %p354 = scmp.ne.s32.totalorder %s337, %s353
    %p355 = scmp.eq.s32.totalorder %s31, 0
    %p356 = por %p354, %p355
    %s357 = ssub.s32 %s33, %s40
    %p358 = scmp.eq.s32.totalorder %s357, 0
    %s360 = sadd.s32 %s359, 1
    %s361 = scalar_select %p358, %s359, %s360
    %p364 = pneg %p358
    %p365 = scmp.eq.s32.totalorder %s25, 3
    %p366 = por %p364, %p365
    %p367 = scmp.ne.s32.totalorder %s359, %s362
    %p368 = scmp.eq.s32.totalorder %s25, 0
    %p369 = por %p367, %p368
    %p370 = scmp.ne.s32.totalorder %s359, %s362
    %p371 = scmp.eq.s32.totalorder %s30, 3
    %p372 = por %p370, %p371
    %p373 = scmp.ne.s32.totalorder %s362, %s363
    %p374 = scmp.eq.s32.totalorder %s30, 0
    %p375 = por %p373, %p374
    %p376 = scmp.ne.s32.totalorder %s362, %s363
    %p377 = scmp.eq.s32.totalorder %s31, 3
    %p378 = por %p376, %p377
    %p380 = scmp.ne.s32.totalorder %s363, %s379
    %p381 = scmp.eq.s32.totalorder %s31, 0
    %p382 = por %p380, %p381
    %s383 = ssub.s32 %s33, %s40
    %p384 = scmp.eq.s32.totalorder %s383, 0
    %s386 = sadd.s32 %s385, 1
    %s387 = scalar_select %p384, %s385, %s386
    %p390 = pneg %p384
    %p391 = scmp.eq.s32.totalorder %s25, 3
    %p392 = por %p390, %p391
    %p393 = scmp.ne.s32.totalorder %s385, %s388
    %p394 = scmp.eq.s32.totalorder %s25, 0
    %p395 = por %p393, %p394
    %p396 = scmp.ne.s32.totalorder %s385, %s388
    %p397 = scmp.eq.s32.totalorder %s30, 3
    %p398 = por %p396, %p397
    %p399 = scmp.ne.s32.totalorder %s388, %s389
    %p400 = scmp.eq.s32.totalorder %s30, 0
    %p401 = por %p399, %p400
    %p402 = scmp.ne.s32.totalorder %s388, %s389
    %p403 = scmp.eq.s32.totalorder %s31, 3
    %p404 = por %p402, %p403
    %p406 = scmp.ne.s32.totalorder %s389, %s405
    %p407 = scmp.eq.s32.totalorder %s31, 0
    %p408 = por %p406, %p407
    %s409 = ssub.s32 %s33, %s40
    %p410 = scmp.eq.s32.totalorder %s409, 0
    %s412 = sadd.s32 %s411, 1
    %s413 = scalar_select %p410, %s411, %s412
    %p416 = pneg %p410
    %p417 = scmp.eq.s32.totalorder %s25, 3
    %p418 = por %p416, %p417
    %p419 = scmp.ne.s32.totalorder %s411, %s414
    %p420 = scmp.eq.s32.totalorder %s25, 0
    %p421 = por %p419, %p420
    %p422 = scmp.ne.s32.totalorder %s411, %s414
    %p423 = scmp.eq.s32.totalorder %s30, 3
    %p424 = por %p422, %p423
    %p425 = scmp.ne.s32.totalorder %s414, %s415
    %p426 = scmp.eq.s32.totalorder %s30, 0
    %p427 = por %p425, %p426
    %p428 = scmp.ne.s32.totalorder %s414, %s415
    %p429 = scmp.eq.s32.totalorder %s31, 3
    %p430 = por %p428, %p429
    %p432 = scmp.ne.s32.totalorder %s415, %s431
    %p433 = scmp.eq.s32.totalorder %s31, 0
    %p434 = por %p432, %p433
    %s436 = sadd.s32 %s435, 1
    %p439 = scmp.eq.s32.totalorder %s25, 3
    %p440 = scmp.ne.s32.totalorder %s435, %s437
    %p441 = scmp.eq.s32.totalorder %s25, 0
    %p442 = por %p440, %p441
    %p443 = scmp.ne.s32.totalorder %s435, %s437
    %p444 = scmp.eq.s32.totalorder %s30, 3
    %p445 = por %p443, %p444
    %p446 = scmp.ne.s32.totalorder %s437, %s438
    %p447 = scmp.eq.s32.totalorder %s30, 0
    %p448 = por %p446, %p447
    %p449 = scmp.ne.s32.totalorder %s437, %s438
    %p450 = scmp.eq.s32.totalorder %s31, 3
    %p451 = por %p449, %p450
    %p453 = scmp.ne.s32.totalorder %s438, %s452
    %p454 = scmp.eq.s32.totalorder %s31, 0
    %p455 = por %p453, %p454
    %s457 = sadd.s32 %s456, 1
    %p460 = scmp.eq.s32.totalorder %s25, 3
    %p461 = scmp.ne.s32.totalorder %s456, %s458
    %p462 = scmp.eq.s32.totalorder %s25, 0
    %p463 = por %p461, %p462
    %p464 = scmp.ne.s32.totalorder %s456, %s458
    %p465 = scmp.eq.s32.totalorder %s30, 3
    %p466 = por %p464, %p465
    %p467 = scmp.ne.s32.totalorder %s458, %s459
    %p468 = scmp.eq.s32.totalorder %s30, 0
    %p469 = por %p467, %p468
    %p470 = scmp.ne.s32.totalorder %s458, %s459
    %p471 = scmp.eq.s32.totalorder %s31, 3
    %p472 = por %p470, %p471
    %p474 = scmp.ne.s32.totalorder %s459, %s473
    %p475 = scmp.eq.s32.totalorder %s31, 0
    %p476 = por %p474, %p475
    %s478 = sadd.s32 %s477, 1
    %p481 = scmp.eq.s32.totalorder %s25, 3
    %p482 = scmp.ne.s32.totalorder %s477, %s479
    %p483 = scmp.eq.s32.totalorder %s25, 0
    %p484 = por %p482, %p483
    %p485 = scmp.ne.s32.totalorder %s477, %s479
    %p486 = scmp.eq.s32.totalorder %s30, 3
    %p487 = por %p485, %p486
    %p488 = scmp.ne.s32.totalorder %s479, %s480
    %p489 = scmp.eq.s32.totalorder %s30, 0
    %p490 = por %p488, %p489
    %p491 = scmp.ne.s32.totalorder %s479, %s480
    %p492 = scmp.eq.s32.totalorder %s31, 3
    %p493 = por %p491, %p492
    %p495 = scmp.ne.s32.totalorder %s480, %s494
    %p496 = scmp.eq.s32.totalorder %s31, 0
    %p497 = por %p495, %p496
    %s499 = sadd.s32 %s498, 1
    %p502 = scmp.eq.s32.totalorder %s25, 3
    %p503 = scmp.ne.s32.totalorder %s498, %s500
    %p504 = scmp.eq.s32.totalorder %s25, 0
    %p505 = por %p503, %p504
    %p506 = scmp.ne.s32.totalorder %s498, %s500
    %p507 = scmp.eq.s32.totalorder %s30, 3
    %p508 = por %p506, %p507
    %p509 = scmp.ne.s32.totalorder %s500, %s501
    %p510 = scmp.eq.s32.totalorder %s30, 0
    %p511 = por %p509, %p510
    %p512 = scmp.ne.s32.totalorder %s500, %s501
    %p513 = scmp.eq.s32.totalorder %s31, 3
    %p514 = por %p512, %p513
    %p516 = scmp.ne.s32.totalorder %s501, %s515
    %p517 = scmp.eq.s32.totalorder %s31, 0
    %p518 = por %p516, %p517
    %s519 = ssub.s32 %s32, %s44
    %p520 = scmp.eq.s32.totalorder %s519, 0
    %s522 = sadd.s32 %s521, 1
    %s523 = scalar_select %p520, %s521, %s522
    %p526 = pneg %p520
    %p527 = scmp.eq.s32.totalorder %s25, 3
    %p528 = por %p526, %p527
    %p529 = scmp.ne.s32.totalorder %s521, %s524
    %p530 = scmp.eq.s32.totalorder %s25, 0
    %p531 = por %p529, %p530
    %p532 = scmp.ne.s32.totalorder %s521, %s524
    %p533 = scmp.eq.s32.totalorder %s30, 3
    %p534 = por %p532, %p533
    %p535 = scmp.ne.s32.totalorder %s524, %s525
    %p536 = scmp.eq.s32.totalorder %s30, 0
    %p537 = por %p535, %p536
    %p538 = scmp.ne.s32.totalorder %s524, %s525
    %p539 = scmp.eq.s32.totalorder %s31, 3
    %p540 = por %p538, %p539
    %p542 = scmp.ne.s32.totalorder %s525, %s541
    %p543 = scmp.eq.s32.totalorder %s31, 0
    %p544 = por %p542, %p543
    %p545 = scmp.le.s32.totalorder 1, %s25
    %p546 = scmp.lt.s32.totalorder %s25, 5
    %p547 = pnand %p545, %p546
    %p548 = pneg %p547
    // Predicated region
    $region9: #{fwd.8} parent=5 // pred_check
      _
    $region10: #{fwd.8} parent=5 // pred_check_branch
      %550 = sbr.rel (%p547) target = $region12
    $region11: #{fwd.8} parent=5 // pred_region
      %s551 = ssub.s32 %s25, 1
      // Predicated region
      $region13: #{fwd.8} parent=11 // pred_check
        %p552 = pneg %p448
      $region14: #{fwd.8} parent=11 // pred_check_branch
        %554 = sbr.rel (%p552) target = $region16
      $region15: #{fwd.8} parent=11 // pred_region
        _
      $region16: #{fwd.8} parent=11 // pred_fallthru
        _
      // Predicated region
      $region17: #{fwd.8} parent=11 // pred_check
        %p555 = pneg %p469
      $region18: #{fwd.8} parent=11 // pred_check_branch
        %557 = sbr.rel (%p555) target = $region20
      $region19: #{fwd.8} parent=11 // pred_region
        _
      $region20: #{fwd.8} parent=11 // pred_fallthru
        _
      // Predicated region
      $region21: #{fwd.8} parent=11 // pred_check
        %p558 = pneg %p490
      $region22: #{fwd.8} parent=11 // pred_check_branch
        %560 = sbr.rel (%p558) target = $region24
      $region23: #{fwd.8} parent=11 // pred_region
        _
      $region24: #{fwd.8} parent=11 // pred_fallthru
        _
      // Predicated region
      $region25: #{fwd.8} parent=11 // pred_check
        %p561 = pneg %p511
      $region26: #{fwd.8} parent=11 // pred_check_branch
        %563 = sbr.rel (%p561) target = $region28
      $region27: #{fwd.8} parent=11 // pred_region
        _
      $region28: #{fwd.8} parent=11 // pred_fallthru
        _
    $region12: #{fwd.8} parent=5 // pred_fallthru
      _
    %p564 = scmp.lt.s32.totalorder %s25, 4
    // Predicated region
    $region29: #{fwd.8} parent=5 // pred_check
      %p565 = pneg %p564
    $region30: #{fwd.8} parent=5 // pred_check_branch
      %567 = sbr.rel (%p565) target = $region32
    $region31: #{fwd.8} parent=5 // pred_region
      // Predicated region
      $region33: #{fwd.8} parent=31 // pred_check
        %p568 = pneg %p57
      $region34: #{fwd.8} parent=31 // pred_check_branch
        %570 = sbr.rel (%p568) target = $region36
      $region35: #{fwd.8} parent=31 // pred_region
        %p571 = scmp.lt.s32.totalorder %s32, 1
        %s572 = scalar_select %p571, %s32, 1
        %s573 = smul.addr %s572, 8
        %s574 = scalar_lea.vmem %s0, %s573
      $region36: #{fwd.8} parent=31 // pred_fallthru
        _
      // Predicated region
      $region37: #{fwd.8} parent=31 // pred_check
        %p575 = pneg %p83
      $region38: #{fwd.8} parent=31 // pred_check_branch
        %577 = sbr.rel (%p575) target = $region40
      $region39: #{fwd.8} parent=31 // pred_region
        %p578 = scmp.lt.s32.totalorder %s32, 1
        %s579 = scalar_select %p578, %s32, 1
        %s580 = smul.addr %s579, 8
        %s581 = scalar_lea.vmem %s1, %s580
      $region40: #{fwd.8} parent=31 // pred_fallthru
        _
      // Predicated region
      $region41: #{fwd.8} parent=31 // pred_check
        %p582 = pneg %p109
      $region42: #{fwd.8} parent=31 // pred_check_branch
        %584 = sbr.rel (%p582) target = $region44
      $region43: #{fwd.8} parent=31 // pred_region
        %p585 = scmp.lt.s32.totalorder %s32, 1
        %s586 = scalar_select %p585, %s32, 1
        %s587 = smul.addr %s586, 8
        %s588 = smul.addr %s587, 8
        %s589 = scalar_lea.vmem %s2, %s588
      $region44: #{fwd.8} parent=31 // pred_fallthru
        _
      // Predicated region
      $region45: #{fwd.8} parent=31 // pred_check
        %p590 = pneg %p135
      $region46: #{fwd.8} parent=31 // pred_check_branch
        %592 = sbr.rel (%p590) target = $region48
      $region47: #{fwd.8} parent=31 // pred_region
        %p593 = scmp.lt.s32.totalorder %s33, 1
        %s594 = scalar_select %p593, %s33, 1
        %s595 = scalar_lea.vmem %s3, %s594
      $region48: #{fwd.8} parent=31 // pred_fallthru
        _
      // Predicated region
      $region49: #{fwd.8} parent=31 // pred_check
        %p596 = pneg %p161
      $region50: #{fwd.8} parent=31 // pred_check_branch
        %598 = sbr.rel (%p596) target = $region52
      $region51: #{fwd.8} parent=31 // pred_region
        %p599 = scmp.lt.s32.totalorder %s33, 1
        %s600 = scalar_select %p599, %s33, 1
        %s601 = scalar_lea.vmem %s4, %s600
      $region52: #{fwd.8} parent=31 // pred_fallthru
        _
      // Predicated region
      $region53: #{fwd.8} parent=31 // pred_check
        %p602 = pneg %p187
      $region54: #{fwd.8} parent=31 // pred_check_branch
        %604 = sbr.rel (%p602) target = $region56
      $region55: #{fwd.8} parent=31 // pred_region
        %p605 = scmp.lt.s32.totalorder %s33, 1
        %s606 = scalar_select %p605, %s33, 1
        %s607 = smul.addr %s606, 48
        %s608 = smul.addr %s607, 4
        %s609 = scalar_lea.vmem %s5, %s608
      $region56: #{fwd.8} parent=31 // pred_fallthru
        _
      // Predicated region
      $region57: #{fwd.8} parent=31 // pred_check
        %p610 = pneg %p213
      $region58: #{fwd.8} parent=31 // pred_check_branch
        %612 = sbr.rel (%p610) target = $region60
      $region59: #{fwd.8} parent=31 // pred_region
        %p613 = scmp.lt.s32.totalorder %s33, 1
        %s614 = scalar_select %p613, %s33, 1
        %s615 = smul.addr %s614, 3
        %s616 = scalar_lea.vmem %s6, %s615
      $region60: #{fwd.8} parent=31 // pred_fallthru
        _
      // Predicated region
      $region61: #{fwd.8} parent=31 // pred_check
        %p617 = pneg %p239
      $region62: #{fwd.8} parent=31 // pred_check_branch
        %619 = sbr.rel (%p617) target = $region64
      $region63: #{fwd.8} parent=31 // pred_region
        %p620 = scmp.lt.s32.totalorder %s33, 1
        %s621 = scalar_select %p620, %s33, 1
        %s622 = smul.addr %s621, 16
        %s623 = smul.addr %s622, 4
        %s624 = scalar_lea.vmem %s7, %s623
      $region64: #{fwd.8} parent=31 // pred_fallthru
        _
      // Predicated region
      $region65: #{fwd.8} parent=31 // pred_check
        %p625 = pneg %p265
      $region66: #{fwd.8} parent=31 // pred_check_branch
        %627 = sbr.rel (%p625) target = $region68
      $region67: #{fwd.8} parent=31 // pred_region
        %p628 = scmp.lt.s32.totalorder %s33, 1
        %s629 = scalar_select %p628, %s33, 1
        %s630 = scalar_lea.vmem %s8, %s629
      $region68: #{fwd.8} parent=31 // pred_fallthru
        _
      // Predicated region
      $region69: #{fwd.8} parent=31 // pred_check
        %p631 = pneg %p291
      $region70: #{fwd.8} parent=31 // pred_check_branch
        %633 = sbr.rel (%p631) target = $region72
      $region71: #{fwd.8} parent=31 // pred_region
        %p634 = scmp.lt.s32.totalorder %s33, 1
        %s635 = scalar_select %p634, %s33, 1
        %s636 = scalar_lea.vmem %s9, %s635
      $region72: #{fwd.8} parent=31 // pred_fallthru
        _
      // Predicated region
      $region73: #{fwd.8} parent=31 // pred_check
        %p637 = pneg %p317
      $region74: #{fwd.8} parent=31 // pred_check_branch
        %639 = sbr.rel (%p637) target = $region76
      $region75: #{fwd.8} parent=31 // pred_region
        %p640 = scmp.lt.s32.totalorder %s33, 1
        %s641 = scalar_select %p640, %s33, 1
        %s642 = scalar_lea.vmem %s10, %s641
      $region76: #{fwd.8} parent=31 // pred_fallthru
        _
      // Predicated region
      $region77: #{fwd.8} parent=31 // pred_check
        %p643 = pneg %p343
      $region78: #{fwd.8} parent=31 // pred_check_branch
        %645 = sbr.rel (%p643) target = $region80
      $region79: #{fwd.8} parent=31 // pred_region
        %p646 = scmp.lt.s32.totalorder %s33, 1
        %s647 = scalar_select %p646, %s33, 1
        %s648 = smul.addr %s647, 32
        %s649 = smul.addr %s648, 4
        %s650 = scalar_lea.vmem %s11, %s649
      $region80: #{fwd.8} parent=31 // pred_fallthru
        _
      // Predicated region
      $region81: #{fwd.8} parent=31 // pred_check
        %p651 = pneg %p369
      $region82: #{fwd.8} parent=31 // pred_check_branch
        %653 = sbr.rel (%p651) target = $region84
      $region83: #{fwd.8} parent=31 // pred_region
        %p654 = scmp.lt.s32.totalorder %s33, 1
        %s655 = scalar_select %p654, %s33, 1
        %s656 = smul.addr %s655, 2
        %s657 = scalar_lea.vmem %s12, %s656
      $region84: #{fwd.8} parent=31 // pred_fallthru
        _
      // Predicated region
      $region85: #{fwd.8} parent=31 // pred_check
        %p658 = pneg %p395
      $region86: #{fwd.8} parent=31 // pred_check_branch
        %660 = sbr.rel (%p658) target = $region88
      $region87: #{fwd.8} parent=31 // pred_region
        %p661 = scmp.lt.s32.totalorder %s33, 1
        %s662 = scalar_select %p661, %s33, 1
        %s663 = smul.addr %s662, 32
        %s664 = smul.addr %s663, 4
        %s665 = scalar_lea.vmem %s13, %s664
      $region88: #{fwd.8} parent=31 // pred_fallthru
        _
      // Predicated region
      $region89: #{fwd.8} parent=31 // pred_check
        %p666 = pneg %p421
      $region90: #{fwd.8} parent=31 // pred_check_branch
        %668 = sbr.rel (%p666) target = $region92
      $region91: #{fwd.8} parent=31 // pred_region
        %p669 = scmp.lt.s32.totalorder %s33, 1
        %s670 = scalar_select %p669, %s33, 1
        %s671 = scalar_lea.vmem %s14, %s670
      $region92: #{fwd.8} parent=31 // pred_fallthru
        _
    $region32: #{fwd.8} parent=5 // pred_fallthru
      _
    %p672 = scmp.le.s32.totalorder 1, %s25
    %p673 = scmp.lt.s32.totalorder %s25, 5
    %p674 = pnand %p672, %p673
    %p675 = pneg %p674
    // Predicated region
    $region93: #{fwd.8} parent=5 // pred_check
      _
    $region94: #{fwd.8} parent=5 // pred_check_branch
      %677 = sbr.rel (%p674) target = $region96
    $region95: #{fwd.8} parent=5 // pred_region
      %s678 = ssub.s32 %s25, 1
      %p679 = scmp.lt.s32.totalorder %s34, 1
      %s680 = scalar_select %p679, %s34, 1
      %s681 = smul.addr %s680, 8
      %s682 = scalar_lea.vmem %s0, %s681
      %p683 = pneg %p63
      %p684 = pneg %p60
      %p685 = scmp.lt.s32.totalorder %s34, 1
      %s686 = scalar_select %p685, %s34, 1
      %s687 = smul.addr %s686, 8
      %s688 = scalar_lea.vmem %s1, %s687
      %p689 = pneg %p89
      %p690 = pneg %p86
      %p691 = scmp.lt.s32.totalorder %s34, 1
      %s692 = scalar_select %p691, %s34, 1
      %s693 = smul.addr %s692, 8
      %s694 = smul.addr %s693, 8
      %s695 = scalar_lea.vmem %s2, %s694
      %p696 = pneg %p115
      %p697 = pneg %p112
      %p698 = scmp.lt.s32.totalorder %s35, 1
      %s699 = scalar_select %p698, %s35, 1
      %s700 = scalar_lea.vmem %s3, %s699
      %p701 = pneg %p141
      %p702 = pneg %p138
      %p703 = scmp.lt.s32.totalorder %s35, 1
      %s704 = scalar_select %p703, %s35, 1
      %s705 = scalar_lea.vmem %s4, %s704
      %p706 = pneg %p167
      %p707 = pneg %p164
      %p708 = scmp.lt.s32.totalorder %s35, 1
      %s709 = scalar_select %p708, %s35, 1
      %s710 = smul.addr %s709, 48
      %s711 = smul.addr %s710, 4
      %s712 = scalar_lea.vmem %s5, %s711
      %p713 = pneg %p193
      %p714 = pneg %p190
      %p715 = scmp.lt.s32.totalorder %s35, 1
      %s716 = scalar_select %p715, %s35, 1
      %s717 = smul.addr %s716, 3
      %s718 = scalar_lea.vmem %s6, %s717
      %p719 = pneg %p219
      %p720 = pneg %p216
      %p721 = scmp.lt.s32.totalorder %s35, 1
      %s722 = scalar_select %p721, %s35, 1
      %s723 = smul.addr %s722, 16
      %s724 = smul.addr %s723, 4
      %s725 = scalar_lea.vmem %s7, %s724
      %p726 = pneg %p245
      %p727 = pneg %p242
      %p728 = scmp.lt.s32.totalorder %s35, 1
      %s729 = scalar_select %p728, %s35, 1
      %s730 = scalar_lea.vmem %s8, %s729
      %p731 = pneg %p271
      %p732 = pneg %p268
      %p733 = scmp.lt.s32.totalorder %s35, 1
      %s734 = scalar_select %p733, %s35, 1
      %s735 = scalar_lea.vmem %s9, %s734
      %p736 = pneg %p297
      %p737 = pneg %p294
      %p738 = scmp.lt.s32.totalorder %s35, 1
      %s739 = scalar_select %p738, %s35, 1
      %s740 = scalar_lea.vmem %s10, %s739
      %p741 = pneg %p323
      %p742 = pneg %p320
      %p743 = scmp.lt.s32.totalorder %s35, 1
      %s744 = scalar_select %p743, %s35, 1
      %s745 = smul.addr %s744, 32
      %s746 = smul.addr %s745, 4
      %s747 = scalar_lea.vmem %s11, %s746
      %p748 = pneg %p349
      %p749 = pneg %p346
      %p750 = scmp.lt.s32.totalorder %s35, 1
      %s751 = scalar_select %p750, %s35, 1
      %s752 = smul.addr %s751, 2
      %s753 = scalar_lea.vmem %s12, %s752
      %p754 = pneg %p375
      %p755 = pneg %p372
      %p756 = scmp.lt.s32.totalorder %s35, 1
      %s757 = scalar_select %p756, %s35, 1
      %s758 = smul.addr %s757, 32
      %s759 = smul.addr %s758, 4
      %s760 = scalar_lea.vmem %s13, %s759
      %p761 = pneg %p401
      %p762 = pneg %p398
      %p763 = scmp.lt.s32.totalorder %s35, 1
      %s764 = scalar_select %p763, %s35, 1
      %s765 = scalar_lea.vmem %s14, %s764
      %p766 = pneg %p427
      %p767 = pneg %p424
      %p768 = pneg %p448
      %p769 = pneg %p445
      %p770 = pneg %p469
      %p771 = pneg %p466
      %p772 = pneg %p490
      %p773 = pneg %p487
      %p774 = pneg %p511
      %p775 = pneg %p508
      %p776 = pneg %p537
      %p777 = pneg %p534
      %p778 = scmp.lt.s32.totalorder %s34, 1
      %s779 = scalar_select %p778, %s34, 1
      %s780 = smul.addr %s779, 8
      %s781 = scalar_lea.vmem %s19, %s780
      %p782 = scmp.lt.s32.totalorder %s34, 1
      %s783 = scalar_select %p782, %s34, 1
      %s784 = smul.addr %s783, 8
      %s785 = scalar_lea.vmem %s0, %s784
      %p786 = scmp.lt.s32.totalorder %s34, 1
      %s787 = scalar_select %p786, %s34, 1
      %s788 = smul.addr %s787, 8
      %s789 = scalar_lea.vmem %s1, %s788
      %p790 = scmp.lt.s32.totalorder %s34, 1
      %s791 = scalar_select %p790, %s34, 1
      %s792 = smul.addr %s791, 8
      %s793 = smul.addr %s792, 8
      %s794 = scalar_lea.vmem %s2, %s793
      %p795 = scmp.lt.s32.totalorder %s35, 1
      %s796 = scalar_select %p795, %s35, 1
      %s797 = scalar_lea.vmem %s3, %s796
      %p798 = scmp.lt.s32.totalorder %s35, 1
      %s799 = scalar_select %p798, %s35, 1
      %s800 = scalar_lea.vmem %s4, %s799
      %p801 = scmp.lt.s32.totalorder %s35, 1
      %s802 = scalar_select %p801, %s35, 1
      %s803 = smul.addr %s802, 48
      %s804 = smul.addr %s803, 4
      %s805 = scalar_lea.vmem %s5, %s804
      %p806 = scmp.lt.s32.totalorder %s35, 1
      %s807 = scalar_select %p806, %s35, 1
      %s808 = smul.addr %s807, 3
      %s809 = scalar_lea.vmem %s6, %s808
      %p810 = scmp.lt.s32.totalorder %s35, 1
      %s811 = scalar_select %p810, %s35, 1
      %s812 = smul.addr %s811, 16
      %s813 = smul.addr %s812, 4
      %s814 = scalar_lea.vmem %s7, %s813
      %p815 = scmp.lt.s32.totalorder %s35, 1
      %s816 = scalar_select %p815, %s35, 1
      %s817 = scalar_lea.vmem %s8, %s816
      %p818 = scmp.lt.s32.totalorder %s35, 1
      %s819 = scalar_select %p818, %s35, 1
      %s820 = scalar_lea.vmem %s9, %s819
      %p821 = scmp.lt.s32.totalorder %s35, 1
      %s822 = scalar_select %p821, %s35, 1
      %s823 = scalar_lea.vmem %s10, %s822
      %p824 = scmp.lt.s32.totalorder %s35, 1
      %s825 = scalar_select %p824, %s35, 1
      %s826 = smul.addr %s825, 32
      %s827 = smul.addr %s826, 4
      %s828 = scalar_lea.vmem %s11, %s827
      %p829 = scmp.lt.s32.totalorder %s35, 1
      %s830 = scalar_select %p829, %s35, 1
      %s831 = smul.addr %s830, 2
      %s832 = scalar_lea.vmem %s12, %s831
      %p833 = scmp.lt.s32.totalorder %s35, 1
      %s834 = scalar_select %p833, %s35, 1
      %s835 = smul.addr %s834, 32
      %s836 = smul.addr %s835, 4
      %s837 = scalar_lea.vmem %s13, %s836
      %p838 = scmp.lt.s32.totalorder %s35, 1
      %s839 = scalar_select %p838, %s35, 1
      %s840 = scalar_lea.vmem %s14, %s839
      %p841 = scmp.lt.s32.totalorder %s34, 1
      %s842 = scalar_select %p841, %s34, 1
      %s843 = smul.addr %s842, 8
      %s844 = scalar_lea.vmem %s19, %s843
      %p846 = scmp.eq.s32.totalorder %s35, 0
      // Predicated region
      $region97: #{fwd.8} parent=95 // pred_check
        %p847 = pneg %p846
      $region98: #{fwd.8} parent=95 // pred_check_branch
        %849 = sbr.rel (%p847) target = $region100
      $region99: #{fwd.8} parent=95 // pred_region
        %v850 = vld [vmem:[%s785] sm:$0x1f]
        %851 = vst [vmem:[#allocation2] sm:$0x1f] %v850
      $region100: #{fwd.8} parent=95 // pred_fallthru
        _
      %v852 = vld [vmem:[#allocation2] sm:$0x1f]
      %vm853 = vcmask 1044480
      %v854 = vsel %vm853, %v852, 0.0
      %855 = vadd.xlane.f32.xlu0 %v854
      %v856 = vpop.xlane.xlu0 %855
      %v857 = vrcp.pop 128.0
      %v858 = vmul.f32 %v856, %v857
      %v859 = vsub.f32 %v852, %v858
      %v860 = vmul.f32 %v859, %v859
      %v861 = vsel %vm853, %v860, 0.0
      %862 = vadd.xlane.f32.xlu0 %v861
      %v863 = vpop.xlane.xlu0 %862
      %v864 = vmul.f32 %v863, %v857
      %v865 = vadd.f32 %v864, 1e-12
      %v866 = vrsqrt.pop %v865
      %v867 = vmul.f32 %v859, %v866
      %v868 = vld [vmem:[%s797] sm:$0x1]
      %v870 = vlaneseq
      %v871 = vshrl.u32 %v870, 7
      %v872 = vsub.s32 0, %v871
      %v873 = vrot.slane %v868, %v872
      %v875 = vmul.f32 %v867, %v873
      %v876 = vld [vmem:[%s800] sm:$0x1]
      %v878 = vlaneseq
      %v879 = vshrl.u32 %v878, 7
      %v880 = vsub.s32 0, %v879
      %v881 = vrot.slane %v876, %v880
      %v883 = vadd.f32 %v875, %v881
      %v884 = vpack.c.bf16 %v883, %v883
      %v885 = vld [vmem:[%s805] sm:$0xff]
      %v886 = vld [vmem:[%s805 + $0x8] sm:$0xf]
      %v887 = vld [vmem:[%s805 + $0xc] sm:$0xff]
      %v888 = vld [vmem:[%s805 + $0x14] sm:$0xf]
      %v889 = vld [vmem:[%s805 + $0x18] sm:$0xff]
      %v890 = vld [vmem:[%s805 + $0x20] sm:$0xf]
      %v891 = vld [vmem:[%s805 + $0x24] sm:$0xff]
      %v892 = vld [vmem:[%s805 + $0x2c] sm:$0xf]
      %v893 = vld [vmem:[%s805 + $0x30] sm:$0xff]
      %v894 = vld [vmem:[%s805 + $0x38] sm:$0xf]
      %v895 = vld [vmem:[%s805 + $0x3c] sm:$0xff]
      %v896 = vld [vmem:[%s805 + $0x44] sm:$0xf]
      %v897 = vld [vmem:[%s805 + $0x48] sm:$0xff]
      %v898 = vld [vmem:[%s805 + $0x50] sm:$0xf]
      %v899 = vld [vmem:[%s805 + $0x54] sm:$0xff]
      %v900 = vld [vmem:[%s805 + $0x5c] sm:$0xf]
      %v901 = vld [vmem:[%s805 + $0x60] sm:$0xff]
      %v902 = vld [vmem:[%s805 + $0x68] sm:$0xf]
      %v903 = vld [vmem:[%s805 + $0x6c] sm:$0xff]
      %v904 = vld [vmem:[%s805 + $0x74] sm:$0xf]
      %v905 = vld [vmem:[%s805 + $0x78] sm:$0xff]
      %v906 = vld [vmem:[%s805 + $0x80] sm:$0xf]
      %v907 = vld [vmem:[%s805 + $0x84] sm:$0xff]
      %v908 = vld [vmem:[%s805 + $0x8c] sm:$0xf]
      %v909 = vld [vmem:[%s805 + $0x90] sm:$0xff]
      %v910 = vld [vmem:[%s805 + $0x98] sm:$0xf]
      %v911 = vld [vmem:[%s805 + $0x9c] sm:$0xff]
      %v912 = vld [vmem:[%s805 + $0xa4] sm:$0xf]
      %v913 = vld [vmem:[%s805 + $0xa8] sm:$0xff]
      %v914 = vld [vmem:[%s805 + $0xb0] sm:$0xf]
      %v915 = vld [vmem:[%s805 + $0xb4] sm:$0xff]
      %v916 = vld [vmem:[%s805 + $0xbc] sm:$0xf]
      %v917 = vld [vmem:[%s809] sm:$0x7]
      %v919 = vlaneseq
      %v920 = vshrl.u32 %v919, 7
      %v921 = vsub.s32 0, %v920
      %v922 = vrot.slane %v917, %v921
      %v923 = vlaneseq
      %v924 = vshrl.u32 %v923, 7
      %v925 = vsub.s32 1, %v924
      %v926 = vrot.slane %v917, %v925
      %v927 = vlaneseq
      %v928 = vshrl.u32 %v927, 7
      %v929 = vsub.s32 2, %v928
      %v930 = vrot.slane %v917, %v929
      %v966 = vunpack.c.l.b16 %v885
      %v967 = vunpack.c.h.b16 %v885
      %v968 = vunpack.c.l.b16 %v886
      %v969 = vunpack.c.l.b16 %v887
      %v970 = vunpack.c.h.b16 %v887
      %v971 = vunpack.c.l.b16 %v888
      %v972 = vunpack.c.l.b16 %v889
      %v973 = vunpack.c.h.b16 %v889
      %v974 = vunpack.c.l.b16 %v890
      %v975 = vunpack.c.l.b16 %v891
      %v976 = vunpack.c.h.b16 %v891
      %v977 = vunpack.c.l.b16 %v892
      %v978 = vunpack.c.l.b16 %v893
      %v979 = vunpack.c.h.b16 %v893
      %v980 = vunpack.c.l.b16 %v894
      %v981 = vunpack.c.l.b16 %v895
      %v982 = vunpack.c.h.b16 %v895
      %v983 = vunpack.c.l.b16 %v896
      %v984 = vunpack.c.l.b16 %v897
      %v985 = vunpack.c.h.b16 %v897
      %v986 = vunpack.c.l.b16 %v898
      %v987 = vunpack.c.l.b16 %v899
      %v988 = vunpack.c.h.b16 %v899
      %v989 = vunpack.c.l.b16 %v900
      %v990 = vunpack.c.l.b16 %v901
      %v991 = vunpack.c.h.b16 %v901
      %v992 = vunpack.c.l.b16 %v902
      %v993 = vunpack.c.l.b16 %v903
      %v994 = vunpack.c.h.b16 %v903
      %v995 = vunpack.c.l.b16 %v904
      %v996 = vunpack.c.l.b16 %v905
      %v997 = vunpack.c.h.b16 %v905
      %v998 = vunpack.c.l.b16 %v906
      %v999 = vunpack.c.l.b16 %v907
      %v1000 = vunpack.c.h.b16 %v907
      %v1001 = vunpack.c.l.b16 %v908
      %v1002 = vunpack.c.l.b16 %v909
      %v1003 = vunpack.c.h.b16 %v909
      %v1004 = vunpack.c.l.b16 %v910
      %v1005 = vunpack.c.l.b16 %v911
      %v1006 = vunpack.c.h.b16 %v911
      %v1007 = vunpack.c.l.b16 %v912
      %v1008 = vunpack.c.l.b16 %v913
      %v1009 = vunpack.c.h.b16 %v913
      %v1010 = vunpack.c.l.b16 %v914
      %v1011 = vunpack.c.l.b16 %v915
      %v1012 = vunpack.c.h.b16 %v915
      %v1013 = vunpack.c.l.b16 %v916
      %v1014 = vpack.c.b16 %v969, %v966
      %v1015 = vpack.c.b16 %v970, %v967
      %v1016 = vpack.c.b16 %v971, %v968
      %v1017 = vpack.c.b16 %v975, %v972
      %v1018 = vpack.c.b16 %v976, %v973
      %v1019 = vpack.c.b16 %v977, %v974
      %v1020 = vpack.c.b16 %v981, %v978
      %v1021 = vpack.c.b16 %v982, %v979
      %v1022 = vpack.c.b16 %v983, %v980
      %v1023 = vpack.c.b16 %v987, %v984
      %v1024 = vpack.c.b16 %v988, %v985
      %v1025 = vpack.c.b16 %v989, %v986
      %v1026 = vpack.c.b16 %v993, %v990
      %v1027 = vpack.c.b16 %v994, %v991
      %v1028 = vpack.c.b16 %v995, %v992
      %v1029 = vpack.c.b16 %v999, %v996
      %v1030 = vpack.c.b16 %v1000, %v997
      %v1031 = vpack.c.b16 %v1001, %v998
      %v1032 = vpack.c.b16 %v1005, %v1002
      %v1033 = vpack.c.b16 %v1006, %v1003
      %v1034 = vpack.c.b16 %v1007, %v1004
      %v1035 = vpack.c.b16 %v1011, %v1008
      %v1036 = vpack.c.b16 %v1012, %v1009
      %v1037 = vpack.c.b16 %v1013, %v1010
      %1062 = vmatprep.subr.bf16.mxu0 %v1036
      %1063 = vmatpush1.bf16.msra.mxu0 %v1035
      %1064 = vmatprep.subr.bf16.mxu0 %v1033
      %1065 = vmatpush1.bf16.msra.mxu0 %v1032
      %1066 = vmatprep.subr.bf16.mxu0 %v1030
      %1067 = vmatpush1.bf16.msra.mxu0 %v1029
      %1068 = vmatprep.subr.bf16.mxu0 %v1027
      %1069 = vmatpush1.bf16.msra.mxu0 %v1026
      %1070 = vmatprep.subr.bf16.mxu0 %v1024
      %1071 = vmatpush1.bf16.msra.mxu0 %v1023
      %1072 = vmatprep.subr.bf16.mxu0 %v1021
      %1073 = vmatpush1.bf16.msra.mxu0 %v1020
      %1074 = vmatprep.subr.bf16.mxu0 %v1018
      %1075 = vmatpush1.bf16.msra.mxu0 %v1017
      %1076 = vmatprep.subr.bf16.mxu0 %v1015
      %1077 = vmatpush1.bf16.msra.mxu0 %v1014
      %1078 = vmatprep.subr.bf16.mxu0 0
      %1079 = vmatpush2.bf16.msra.mxu0 0
      %1080 = vmatprep.subr.bf16.mxu0 0
      %1081 = vmatpush2.bf16.msra.mxu0 0
      %1082 = vmatprep.subr.bf16.mxu0 0
      %1083 = vmatpush2.bf16.msra.mxu0 0
      %1084 = vmatprep.subr.bf16.mxu0 0
      %1085 = vmatpush2.bf16.msra.mxu0 0
      %1086 = vmatprep.subr.bf16.mxu0 0
      %1087 = vmatpush2.bf16.msra.mxu0 0
      %1088 = vmatprep.subr.bf16.mxu0 0
      %1089 = vmatpush2.bf16.msra.mxu0 0
      %1090 = vmatprep.subr.bf16.mxu0 0
      %1091 = vmatpush2.bf16.msra.mxu0 0
      %1092 = vmatprep.subr.bf16.mxu0 0
      %1093 = vmatpush2.bf16.msra.mxu0 0
      %1094 = vmatprep.mubr.bf16.mxu0 0
      %1095 = vmatmul.mubr.bf16.gmra.mxu0 %v884
      %v1096 = vpop.f32.mrf.mxu0
      %v1097 = vadd.f32 %v922, %v1096
      %v1098 = vpop.f32.mrf.mxu0
      %v1099 = vadd.f32 %v926, %v1098
      %v1100 = vpop.f32.mrf.mxu0
      %v1101 = vpop.f32.mrf.mxu0
      %1102 = vdwg.mxu0
      %1103 = vmatprep.subr.bf16.mxu0 0
      %1104 = vmatpush1.bf16.msra.mxu0 %v1037
      %1105 = vmatprep.subr.bf16.mxu0 0
      %1106 = vmatpush1.bf16.msra.mxu0 %v1034
      %1107 = vmatprep.subr.bf16.mxu0 0
      %1108 = vmatpush1.bf16.msra.mxu0 %v1031
      %1109 = vmatprep.subr.bf16.mxu0 0
      %1110 = vmatpush1.bf16.msra.mxu0 %v1028
      %1111 = vmatprep.subr.bf16.mxu0 0
      %1112 = vmatpush1.bf16.msra.mxu0 %v1025
      %1113 = vmatprep.subr.bf16.mxu0 0
      %1114 = vmatpush1.bf16.msra.mxu0 %v1022
      %1115 = vmatprep.subr.bf16.mxu0 0
      %1116 = vmatpush1.bf16.msra.mxu0 %v1019
      %1117 = vmatprep.subr.bf16.mxu0 0
      %1118 = vmatpush1.bf16.msra.mxu0 %v1016
      %1119 = vmatprep.subr.bf16.mxu0 0
      %1120 = vmatpush2.bf16.msra.mxu0 0
      %1121 = vmatprep.subr.bf16.mxu0 0
      %1122 = vmatpush2.bf16.msra.mxu0 0
      %1123 = vmatprep.subr.bf16.mxu0 0
      %1124 = vmatpush2.bf16.msra.mxu0 0
      %1125 = vmatprep.subr.bf16.mxu0 0
      %1126 = vmatpush2.bf16.msra.mxu0 0
      %1127 = vmatprep.subr.bf16.mxu0 0
      %1128 = vmatpush2.bf16.msra.mxu0 0
      %1129 = vmatprep.subr.bf16.mxu0 0
      %1130 = vmatpush2.bf16.msra.mxu0 0
      %1131 = vmatprep.subr.bf16.mxu0 0
      %1132 = vmatpush2.bf16.msra.mxu0 0
      %1133 = vmatprep.subr.bf16.mxu0 0
      %1134 = vmatpush2.bf16.msra.mxu0 0
      %1135 = vmatprep.mubr.bf16.mxu0 0
      %1136 = vmatmul.mubr.bf16.gmra.mxu0 %v884
      %v1137 = vpop.f32.mrf.mxu0
      %v1138 = vadd.f32 %v930, %v1137
      %v1139 = vpop.f32.mrf.mxu0
      %v1140 = vpop.f32.mrf.mxu0
      %v1141 = vpop.f32.mrf.mxu0
      %1142 = vdwg.mxu0
      %v1143 = vpack.c.bf16 %v1097, %v1097
      %v1144 = vld [vmem:[%s15] sm:$0xf]
      %v1145 = vld [vmem:[%s15 + $0x4] sm:$0xf]
      %v1146 = vld [vmem:[%s15 + $0x8] sm:$0xf]
      %v1147 = vld [vmem:[%s15 + $0xc] sm:$0xf]
      %v1148 = vld [vmem:[%s15 + $0x10] sm:$0xf]
      %v1149 = vld [vmem:[%s15 + $0x14] sm:$0xf]
      %v1150 = vld [vmem:[%s15 + $0x18] sm:$0xf]
      %v1151 = vld [vmem:[%s15 + $0x1c] sm:$0xf]
      %v1152 = vld [vmem:[%s15 + $0x20] sm:$0xf]
      %v1153 = vld [vmem:[%s15 + $0x24] sm:$0xf]
      %v1154 = vld [vmem:[%s15 + $0x28] sm:$0xf]
      %v1155 = vld [vmem:[%s15 + $0x2c] sm:$0xf]
      %v1156 = vld [vmem:[%s15 + $0x30] sm:$0xf]
      %v1157 = vld [vmem:[%s15 + $0x34] sm:$0xf]
      %v1158 = vld [vmem:[%s15 + $0x38] sm:$0xf]
      %v1159 = vld [vmem:[%s15 + $0x3c] sm:$0xf]
      %v1176 = vunpack.c.l.b16 %v1144
      %v1177 = vunpack.c.l.b16 %v1145
      %v1178 = vunpack.c.l.b16 %v1146
      %v1179 = vunpack.c.l.b16 %v1147
      %v1180 = vunpack.c.l.b16 %v1148
      %v1181 = vunpack.c.l.b16 %v1149
      %v1182 = vunpack.c.l.b16 %v1150
      %v1183 = vunpack.c.l.b16 %v1151
      %v1184 = vunpack.c.l.b16 %v1152
      %v1185 = vunpack.c.l.b16 %v1153
      %v1186 = vunpack.c.l.b16 %v1154
      %v1187 = vunpack.c.l.b16 %v1155
      %v1188 = vunpack.c.l.b16 %v1156
      %v1189 = vunpack.c.l.b16 %v1157
      %v1190 = vunpack.c.l.b16 %v1158
      %v1191 = vunpack.c.l.b16 %v1159
      %v1192 = vpack.c.b16 %v1177, %v1176
      %v1193 = vpack.c.b16 %v1179, %v1178
      %v1194 = vpack.c.b16 %v1181, %v1180
      %v1195 = vpack.c.b16 %v1183, %v1182
      %v1196 = vpack.c.b16 %v1185, %v1184
      %v1197 = vpack.c.b16 %v1187, %v1186
      %v1198 = vpack.c.b16 %v1189, %v1188
      %v1199 = vpack.c.b16 %v1191, %v1190
      %1208 = vmatprep.subr.bf16.mxu0 0
      %1209 = vmatpush1.bf16.msra.mxu0 %v1199
      %1210 = vmatprep.subr.bf16.mxu0 0
      %1211 = vmatpush1.bf16.msra.mxu0 %v1198
      %1212 = vmatprep.subr.bf16.mxu0 0
      %1213 = vmatpush1.bf16.msra.mxu0 %v1197
      %1214 = vmatprep.subr.bf16.mxu0 0
      %1215 = vmatpush1.bf16.msra.mxu0 %v1196
      %1216 = vmatprep.subr.bf16.mxu0 0
      %1217 = vmatpush1.bf16.msra.mxu0 %v1195
      %1218 = vmatprep.subr.bf16.mxu0 0
      %1219 = vmatpush1.bf16.msra.mxu0 %v1194
      %1220 = vmatprep.subr.bf16.mxu0 0
      %1221 = vmatpush1.bf16.msra.mxu0 %v1193
      %1222 = vmatprep.subr.bf16.mxu0 0
      %1223 = vmatpush1.bf16.msra.mxu0 %v1192
      %1224 = vmatprep.subr.bf16.mxu0 0
      %1225 = vmatpush2.bf16.msra.mxu0 0
      %1226 = vmatprep.subr.bf16.mxu0 0
      %1227 = vmatpush2.bf16.msra.mxu0 0
      %1228 = vmatprep.subr.bf16.mxu0 0
      %1229 = vmatpush2.bf16.msra.mxu0 0
      %1230 = vmatprep.subr.bf16.mxu0 0
      %1231 = vmatpush2.bf16.msra.mxu0 0
      %1232 = vmatprep.subr.bf16.mxu0 0
      %1233 = vmatpush2.bf16.msra.mxu0 0
      %1234 = vmatprep.subr.bf16.mxu0 0
      %1235 = vmatpush2.bf16.msra.mxu0 0
      %1236 = vmatprep.subr.bf16.mxu0 0
      %1237 = vmatpush2.bf16.msra.mxu0 0
      %1238 = vmatprep.subr.bf16.mxu0 0
      %1239 = vmatpush2.bf16.msra.mxu0 0
      %1240 = vmatprep.mubr.bf16.mxu0 0
      %1241 = vmatmul.mubr.bf16.gmra.mxu0 %v1143
      %v1242 = vpop.f32.mrf.mxu0
      %v1243 = vadd.f32 0.0, %v1242
      %v1244 = vpop.f32.mrf.mxu0
      %v1245 = vpop.f32.mrf.mxu0
      %v1246 = vpop.f32.mrf.mxu0
      %1247 = vdwg.mxu0
      %v1248 = vld [vmem:[%s789] sm:$0x1f]
      %v1249 = vld [vmem:[%s794] sm:$0x1f]
      %v1250 = vld [vmem:[%s794 + $0x8] sm:$0x1f]
      %v1251 = vld [vmem:[%s794 + $0x10] sm:$0x1f]
      %v1252 = vld [vmem:[%s794 + $0x18] sm:$0x1f]
      %v1253 = vld [vmem:[%s794 + $0x20] sm:$0x1f]
      %v1254 = vld [vmem:[%s794 + $0x28] sm:$0x1f]
      %v1255 = vld [vmem:[%s794 + $0x30] sm:$0x1f]
      %v1256 = vld [vmem:[%s794 + $0x38] sm:$0x1f]
      %v1257 = vpack.c.bf16 %v1099, %v1099
      %v1258 = vpack.c.bf16 %v1138, %v1138
      %1260 = vset.pattern.permute.xlu0 0
      %1261 = vperm.xlu0 %1260, %v1243
      %v1262 = vpop.permute.xlu0 %1261
      %v1264 = vmul.f32 %v1249, %v1262
      %v1265 = vadd.f32 %v1264, 0.0
      %1266 = vset.pattern.permute.xlu0 1
      %1267 = vperm.xlu0 %1266, %v1243
      %v1268 = vpop.permute.xlu0 %1267
      %v1270 = vmul.f32 %v1250, %v1268
      %v1271 = vadd.f32 %v1265, %v1270
      %1272 = vset.pattern.permute.xlu0 2
      %1273 = vperm.xlu0 %1272, %v1243
      %v1274 = vpop.permute.xlu0 %1273
      %v1276 = vmul.f32 %v1251, %v1274
      %v1277 = vadd.f32 %v1271, %v1276
      %1278 = vset.pattern.permute.xlu0 3
      %1279 = vperm.xlu0 %1278, %v1243
      %v1280 = vpop.permute.xlu0 %1279
      %v1282 = vmul.f32 %v1252, %v1280
      %v1283 = vadd.f32 %v1277, %v1282
      %1284 = vset.pattern.permute.xlu0 4
      %1285 = vperm.xlu0 %1284, %v1243
      %v1286 = vpop.permute.xlu0 %1285
      %v1288 = vmul.f32 %v1253, %v1286
      %v1289 = vadd.f32 %v1283, %v1288
      %1290 = vset.pattern.permute.xlu0 5
      %1291 = vperm.xlu0 %1290, %v1243
      %v1292 = vpop.permute.xlu0 %1291
      %v1294 = vmul.f32 %v1254, %v1292
      %v1295 = vadd.f32 %v1289, %v1294
      %1296 = vset.pattern.permute.xlu0 6
      %1297 = vperm.xlu0 %1296, %v1243
      %v1298 = vpop.permute.xlu0 %1297
      %v1300 = vmul.f32 %v1255, %v1298
      %v1301 = vadd.f32 %v1295, %v1300
      %1302 = vset.pattern.permute.xlu0 7
      %1303 = vperm.xlu0 %1302, %v1243
      %v1304 = vpop.permute.xlu0 %1303
      %v1306 = vmul.f32 %v1256, %v1304
      %v1307 = vadd.f32 %v1301, %v1306
      %vm1308 = vcmask 261120
      %v1310 = vsel %vm1308, %v1143, 0
      %v1313 = vsel %vm1308, %v1257, 0
      %1315 = vmatprep.subr.bf16.mxu0 0
      %1316 = vmatpush1.bf16.xpose.msra.mxu0 0
      %1317 = vmatprep.subr.bf16.mxu0 0
      %1318 = vmatpush1.bf16.xpose.msra.mxu0 0
      %1319 = vmatprep.subr.bf16.mxu0 0
      %1320 = vmatpush1.bf16.xpose.msra.mxu0 0
      %1321 = vmatprep.subr.bf16.mxu0 0
      %1322 = vmatpush1.bf16.xpose.msra.mxu0 0
      %1323 = vmatprep.subr.bf16.mxu0 0
      %1324 = vmatpush1.bf16.xpose.msra.mxu0 0
      %1325 = vmatprep.subr.bf16.mxu0 0
      %1326 = vmatpush1.bf16.xpose.msra.mxu0 0
      %1327 = vmatprep.subr.bf16.mxu0 0
      %1328 = vmatpush1.bf16.xpose.msra.mxu0 0
      %1329 = vmatprep.subr.bf16.mxu0 0
      %1330 = vmatpush1.bf16.xpose.msra.mxu0 %v1313
      %1331 = vmatprep.subr.bf16.mxu0 0
      %1332 = vmatpush2.bf16.xpose.msra.mxu0 0
      %1333 = vmatprep.subr.bf16.mxu0 0
      %1334 = vmatpush2.bf16.xpose.msra.mxu0 0
      %1335 = vmatprep.subr.bf16.mxu0 0
      %1336 = vmatpush2.bf16.xpose.msra.mxu0 0
      %1337 = vmatprep.subr.bf16.mxu0 0
      %1338 = vmatpush2.bf16.xpose.msra.mxu0 0
      %1339 = vmatprep.subr.bf16.mxu0 0
      %1340 = vmatpush2.bf16.xpose.msra.mxu0 0
      %1341 = vmatprep.subr.bf16.mxu0 0
      %1342 = vmatpush2.bf16.xpose.msra.mxu0 0
      %1343 = vmatprep.subr.bf16.mxu0 0
      %1344 = vmatpush2.bf16.xpose.msra.mxu0 0
      %1345 = vmatprep.subr.bf16.mxu0 0
      %1346 = vmatpush2.bf16.xpose.msra.mxu0 0
      %1347 = vmatprep.mubr.bf16.mxu0 0
      %1348 = vmatmul.mubr.bf16.gmra.mxu0 %v1310
      %v1349 = vpop.f32.mrf.mxu0
      %v1350 = vadd.f32 %v1307, %v1349
      %v1351 = vpop.f32.mrf.mxu0
      %v1352 = vpop.f32.mrf.mxu0
      %v1353 = vpop.f32.mrf.mxu0
      %1354 = vdwg.mxu0
      %v1355 = vmul.f32 %v1350, 0.17677669
      %v1356 = vadd.f32 %v1355, %v1248
      %vm1357 = vcmask 36864
      %v1358 = vsel %vm1357, %v1356, -inf
      %1359 = vmax.xlane.f32.xlu0 %v1358
      %v1360 = vpop.xlane.xlu0 %1359
      %v1361 = vsub.f32 %v1356, %v1360
      %v1362 = vmul.f32 %v1361, 1.442695
      %v1363 = vpow.pop %v1362
      %v1364 = vsel %vm1357, %v1363, 0.0
      %1365 = vadd.xlane.f32.xlu0 %v1364
      %v1366 = vpop.xlane.xlu0 %1365
      %v1367 = vrcp.pop %v1366
      %v1368 = vmul.f32 %v1363, %v1367
      %v1369 = vpack.c.bf16 %v1368, %v1368
      %vm1370 = vcmask 39936
      %v1372 = vsel %vm1370, %v1369, 0
      %vm1374 = vcmask 1041408
      %vm1375 = vcmask 1042432
      %v1376 = vsel %vm1374, 4294967295, 65535
      %v1377 = vsel %vm1375, %v1376, 0
      %v1379 = vand.u32 %v1258, %v1377
      %1381 = vmatprep.subr.bf16.mxu0 0
      %1382 = vmatpush1.bf16.msra.mxu0 0
      %1383 = vmatprep.subr.bf16.mxu0 0
      %1384 = vmatpush1.bf16.msra.mxu0 0
      %1385 = vmatprep.subr.bf16.mxu0 0
      %1386 = vmatpush1.bf16.msra.mxu0 0
      %1387 = vmatprep.subr.bf16.mxu0 0
      %1388 = vmatpush1.bf16.msra.mxu0 0
      %1389 = vmatprep.subr.bf16.mxu0 0
      %1390 = vmatpush1.bf16.msra.mxu0 0
      %1391 = vmatprep.subr.bf16.mxu0 0
      %1392 = vmatpush1.bf16.msra.mxu0 0
      %1393 = vmatprep.subr.bf16.mxu0 0
      %1394 = vmatpush1.bf16.msra.mxu0 0
      %1395 = vmatprep.subr.bf16.mxu0 0
      %1396 = vmatpush1.bf16.msra.mxu0 %v1379
      %1397 = vmatprep.subr.bf16.mxu0 0
      %1398 = vmatpush2.bf16.msra.mxu0 0
      %1399 = vmatprep.subr.bf16.mxu0 0
      %1400 = vmatpush2.bf16.msra.mxu0 0
      %1401 = vmatprep.subr.bf16.mxu0 0
      %1402 = vmatpush2.bf16.msra.mxu0 0
      %1403 = vmatprep.subr.bf16.mxu0 0
      %1404 = vmatpush2.bf16.msra.mxu0 0
      %1405 = vmatprep.subr.bf16.mxu0 0
      %1406 = vmatpush2.bf16.msra.mxu0 0
      %1407 = vmatprep.subr.bf16.mxu0 0
      %1408 = vmatpush2.bf16.msra.mxu0 0
      %1409 = vmatprep.subr.bf16.mxu0 0
      %1410 = vmatpush2.bf16.msra.mxu0 0
      %1411 = vmatprep.subr.bf16.mxu0 0
      %1412 = vmatpush2.bf16.msra.mxu0 0
      %1413 = vmatprep.mubr.bf16.mxu0 0
      %1414 = vmatmul.mubr.bf16.gmra.mxu0 %v1372
      %v1415 = vpop.f32.mrf.mxu0
      %v1416 = vadd.f32 0.0, %v1415
      %v1417 = vpop.f32.mrf.mxu0
      %v1418 = vpop.f32.mrf.mxu0
      %v1419 = vpop.f32.mrf.mxu0
      %1420 = vdwg.mxu0
      %v1421 = vmul.f32 %v1368, %v1249
      %v1422 = vsel %vm1357, %v1421, 0.0
      %1423 = vadd.xlane.f32.xlu0 %v1422
      %v1424 = vpop.xlane.xlu0 %1423
      %v1425 = vmul.f32 %v1368, %v1250
      %v1426 = vsel %vm1357, %v1425, 0.0
      %1427 = vadd.xlane.f32.xlu0 %v1426
      %v1428 = vpop.xlane.xlu0 %1427
      %v1429 = vmul.f32 %v1368, %v1251
      %v1430 = vsel %vm1357, %v1429, 0.0
      %1431 = vadd.xlane.f32.xlu0 %v1430
      %v1432 = vpop.xlane.xlu0 %1431
      %v1433 = vmul.f32 %v1368, %v1252
      %v1434 = vsel %vm1357, %v1433, 0.0
      %1435 = vadd.xlane.f32.xlu0 %v1434
      %v1436 = vpop.xlane.xlu0 %1435
      %v1437 = vmul.f32 %v1368, %v1253
      %v1438 = vsel %vm1357, %v1437, 0.0
      %1439 = vadd.xlane.f32.xlu0 %v1438
      %v1440 = vpop.xlane.xlu0 %1439
      %v1441 = vmul.f32 %v1368, %v1254
      %v1442 = vsel %vm1357, %v1441, 0.0
      %1443 = vadd.xlane.f32.xlu0 %v1442
      %v1444 = vpop.xlane.xlu0 %1443
      %v1445 = vmul.f32 %v1368, %v1255
      %v1446 = vsel %vm1357, %v1445, 0.0
      %1447 = vadd.xlane.f32.xlu0 %v1446
      %v1448 = vpop.xlane.xlu0 %1447
      %v1449 = vmul.f32 %v1368, %v1256
      %v1450 = vsel %vm1357, %v1449, 0.0
      %1451 = vadd.xlane.f32.xlu0 %v1450
      %v1452 = vpop.xlane.xlu0 %1451
      %vm1453 = vcmask 7168
      %v1454 = vsel %vm1453, %v1424, %v1428
      %vm1455 = vcmask 15360
      %v1456 = vsel %vm1455, %v1454, %v1432
      %vm1457 = vcmask 23552
      %v1458 = vsel %vm1457, %v1456, %v1436
      %vm1459 = vcmask 31744
      %v1460 = vsel %vm1459, %v1458, %v1440
      %v1461 = vsel %vm1370, %v1460, %v1444
      %vm1462 = vcmask 48128
      %v1463 = vsel %vm1462, %v1461, %v1448
      %vm1464 = vcmask 56320
      %v1465 = vsel %vm1464, %v1463, %v1452
      %1466 = vset.pattern.permute.xlu0 8
      %1467 = vperm.xlu0 %1466, %v1243
      %v1468 = vpop.permute.xlu0 %1467
      %v1470 = vmul.f32 %v1249, %v1468
      %v1471 = vadd.f32 %v1470, 0.0
      %1472 = vset.pattern.permute.xlu0 9
      %1473 = vperm.xlu0 %1472, %v1243
      %v1474 = vpop.permute.xlu0 %1473
      %v1476 = vmul.f32 %v1250, %v1474
      %v1477 = vadd.f32 %v1471, %v1476
      %1478 = vset.pattern.permute.xlu0 10
      %1479 = vperm.xlu0 %1478, %v1243
      %v1480 = vpop.permute.xlu0 %1479
      %v1482 = vmul.f32 %v1251, %v1480
      %v1483 = vadd.f32 %v1477, %v1482
      %1484 = vset.pattern.permute.xlu0 11
      %1485 = vperm.xlu0 %1484, %v1243
      %v1486 = vpop.permute.xlu0 %1485
      %v1488 = vmul.f32 %v1252, %v1486
      %v1489 = vadd.f32 %v1483, %v1488
      %1490 = vset.pattern.permute.xlu0 12
      %1491 = vperm.xlu0 %1490, %v1243
      %v1492 = vpop.permute.xlu0 %1491
      %v1494 = vmul.f32 %v1253, %v1492
      %v1495 = vadd.f32 %v1489, %v1494
      %1496 = vset.pattern.permute.xlu0 13
      %1497 = vperm.xlu0 %1496, %v1243
      %v1498 = vpop.permute.xlu0 %1497
      %v1500 = vmul.f32 %v1254, %v1498
      %v1501 = vadd.f32 %v1495, %v1500
      %1502 = vset.pattern.permute.xlu0 14
      %1503 = vperm.xlu0 %1502, %v1243
      %v1504 = vpop.permute.xlu0 %1503
      %v1506 = vmul.f32 %v1255, %v1504
      %v1507 = vadd.f32 %v1501, %v1506
      %1508 = vset.pattern.permute.xlu0 15
      %1509 = vperm.xlu0 %1508, %v1243
      %v1510 = vpop.permute.xlu0 %1509
      %v1512 = vmul.f32 %v1256, %v1510
      %v1513 = vadd.f32 %v1507, %v1512
      %1515 = vrot.lane.b32.xlu0 %v1143, 96
      %v1516 = vpop.permute.xlu0 %1515
      %1518 = vrot.lane.b32.xlu0 %v1257, 96
      %v1519 = vpop.permute.xlu0 %1518
      %v1521 = vsel %vm1308, %v1516, 0
      %v1524 = vsel %vm1308, %v1519, 0
      %1526 = vmatprep.subr.bf16.mxu0 0
      %1527 = vmatpush1.bf16.xpose.msra.mxu0 0
      %1528 = vmatprep.subr.bf16.mxu0 0
      %1529 = vmatpush1.bf16.xpose.msra.mxu0 0
      %1530 = vmatprep.subr.bf16.mxu0 0
      %1531 = vmatpush1.bf16.xpose.msra.mxu0 0
      %1532 = vmatprep.subr.bf16.mxu0 0
      %1533 = vmatpush1.bf16.xpose.msra.mxu0 0
      %1534 = vmatprep.subr.bf16.mxu0 0
      %1535 = vmatpush1.bf16.xpose.msra.mxu0 0
      %1536 = vmatprep.subr.bf16.mxu0 0
      %1537 = vmatpush1.bf16.xpose.msra.mxu0 0
      %1538 = vmatprep.subr.bf16.mxu0 0
      %1539 = vmatpush1.bf16.xpose.msra.mxu0 0
      %1540 = vmatprep.subr.bf16.mxu0 0
      %1541 = vmatpush1.bf16.xpose.msra.mxu0 %v1524
      %1542 = vmatprep.subr.bf16.mxu0 0
      %1543 = vmatpush2.bf16.xpose.msra.mxu0 0
      %1544 = vmatprep.subr.bf16.mxu0 0
      %1545 = vmatpush2.bf16.xpose.msra.mxu0 0
      %1546 = vmatprep.subr.bf16.mxu0 0
      %1547 = vmatpush2.bf16.xpose.msra.mxu0 0
      %1548 = vmatprep.subr.bf16.mxu0 0
      %1549 = vmatpush2.bf16.xpose.msra.mxu0 0
      %1550 = vmatprep.subr.bf16.mxu0 0
      %1551 = vmatpush2.bf16.xpose.msra.mxu0 0
      %1552 = vmatprep.subr.bf16.mxu0 0
      %1553 = vmatpush2.bf16.xpose.msra.mxu0 0
      %1554 = vmatprep.subr.bf16.mxu0 0
      %1555 = vmatpush2.bf16.xpose.msra.mxu0 0
      %1556 = vmatprep.subr.bf16.mxu0 0
      %1557 = vmatpush2.bf16.xpose.msra.mxu0 0
      %1558 = vmatprep.mubr.bf16.mxu0 0
      %1559 = vmatmul.mubr.bf16.gmra.mxu0 %v1521
      %v1560 = vpop.f32.mrf.mxu0
      %v1561 = vadd.f32 %v1513, %v1560
      %v1562 = vpop.f32.mrf.mxu0
      %v1563 = vpop.f32.mrf.mxu0
      %v1564 = vpop.f32.mrf.mxu0
      %1565 = vdwg.mxu0
      %v1566 = vmul.f32 %v1561, 0.17677669
      %v1567 = vadd.f32 %v1566, %v1248
      %v1568 = vsel %vm1357, %v1567, -inf
      %1569 = vmax.xlane.f32.xlu0 %v1568
      %v1570 = vpop.xlane.xlu0 %1569
      %v1571 = vsub.f32 %v1567, %v1570
      %v1572 = vmul.f32 %v1571, 1.442695
      %v1573 = vpow.pop %v1572
      %v1574 = vsel %vm1357, %v1573, 0.0
      %1575 = vadd.xlane.f32.xlu0 %v1574
      %v1576 = vpop.xlane.xlu0 %1575
      %v1577 = vrcp.pop %v1576
      %v1578 = vmul.f32 %v1573, %v1577
      %v1579 = vpack.c.bf16 %v1578, %v1578
      %1581 = vrot.lane.b32.xlu0 %v1258, 96
      %v1582 = vpop.permute.xlu0 %1581
      %v1584 = vsel %vm1370, %v1579, 0
      %v1587 = vand.u32 %v1582, %v1377
      %1589 = vmatprep.subr.bf16.mxu0 0
      %1590 = vmatpush1.bf16.msra.mxu0 0
      %1591 = vmatprep.subr.bf16.mxu0 0
      %1592 = vmatpush1.bf16.msra.mxu0 0
      %1593 = vmatprep.subr.bf16.mxu0 0
      %1594 = vmatpush1.bf16.msra.mxu0 0
      %1595 = vmatprep.subr.bf16.mxu0 0
      %1596 = vmatpush1.bf16.msra.mxu0 0
      %1597 = vmatprep.subr.bf16.mxu0 0
      %1598 = vmatpush1.bf16.msra.mxu0 0
      %1599 = vmatprep.subr.bf16.mxu0 0
      %1600 = vmatpush1.bf16.msra.mxu0 0
      %1601 = vmatprep.subr.bf16.mxu0 0
      %1602 = vmatpush1.bf16.msra.mxu0 0
      %1603 = vmatprep.subr.bf16.mxu0 0
      %1604 = vmatpush1.bf16.msra.mxu0 %v1587
      %1605 = vmatprep.subr.bf16.mxu0 0
      %1606 = vmatpush2.bf16.msra.mxu0 0
      %1607 = vmatprep.subr.bf16.mxu0 0
      %1608 = vmatpush2.bf16.msra.mxu0 0
      %1609 = vmatprep.subr.bf16.mxu0 0
      %1610 = vmatpush2.bf16.msra.mxu0 0
      %1611 = vmatprep.subr.bf16.mxu0 0
      %1612 = vmatpush2.bf16.msra.mxu0 0
      %1613 = vmatprep.subr.bf16.mxu0 0
      %1614 = vmatpush2.bf16.msra.mxu0 0
      %1615 = vmatprep.subr.bf16.mxu0 0
      %1616 = vmatpush2.bf16.msra.mxu0 0
      %1617 = vmatprep.subr.bf16.mxu0 0
      %1618 = vmatpush2.bf16.msra.mxu0 0
      %1619 = vmatprep.subr.bf16.mxu0 0
      %1620 = vmatpush2.bf16.msra.mxu0 0
      %1621 = vmatprep.mubr.bf16.mxu0 0
      %1622 = vmatmul.mubr.bf16.gmra.mxu0 %v1584
      %v1623 = vpop.f32.mrf.mxu0
      %v1624 = vadd.f32 0.0, %v1623
      %v1625 = vpop.f32.mrf.mxu0
      %v1626 = vpop.f32.mrf.mxu0
      %v1627 = vpop.f32.mrf.mxu0
      %1628 = vdwg.mxu0
      %v1629 = vmul.f32 %v1578, %v1249
      %v1630 = vsel %vm1357, %v1629, 0.0
      %1631 = vadd.xlane.f32.xlu0 %v1630
      %v1632 = vpop.xlane.xlu0 %1631
      %v1633 = vmul.f32 %v1578, %v1250
      %v1634 = vsel %vm1357, %v1633, 0.0
      %1635 = vadd.xlane.f32.xlu0 %v1634
      %v1636 = vpop.xlane.xlu0 %1635
      %v1637 = vmul.f32 %v1578, %v1251
      %v1638 = vsel %vm1357, %v1637, 0.0
      %1639 = vadd.xlane.f32.xlu0 %v1638
      %v1640 = vpop.xlane.xlu0 %1639
      %v1641 = vmul.f32 %v1578, %v1252
      %v1642 = vsel %vm1357, %v1641, 0.0
      %1643 = vadd.xlane.f32.xlu0 %v1642
      %v1644 = vpop.xlane.xlu0 %1643
      %v1645 = vmul.f32 %v1578, %v1253
      %v1646 = vsel %vm1357, %v1645, 0.0
      %1647 = vadd.xlane.f32.xlu0 %v1646
      %v1648 = vpop.xlane.xlu0 %1647
      %v1649 = vmul.f32 %v1578, %v1254
      %v1650 = vsel %vm1357, %v1649, 0.0
      %1651 = vadd.xlane.f32.xlu0 %v1650
      %v1652 = vpop.xlane.xlu0 %1651
      %v1653 = vmul.f32 %v1578, %v1255
      %v1654 = vsel %vm1357, %v1653, 0.0
      %1655 = vadd.xlane.f32.xlu0 %v1654
      %v1656 = vpop.xlane.xlu0 %1655
      %v1657 = vmul.f32 %v1578, %v1256
      %v1658 = vsel %vm1357, %v1657, 0.0
      %1659 = vadd.xlane.f32.xlu0 %v1658
      %v1660 = vpop.xlane.xlu0 %1659
      %v1661 = vsel %vm1453, %v1632, %v1636
      %v1662 = vsel %vm1455, %v1661, %v1640
      %v1663 = vsel %vm1457, %v1662, %v1644
      %v1664 = vsel %vm1459, %v1663, %v1648
      %v1665 = vsel %vm1370, %v1664, %v1652
      %v1666 = vsel %vm1462, %v1665, %v1656
      %v1667 = vsel %vm1464, %v1666, %v1660
      %1668 = vset.pattern.permute.xlu0 16
      %1669 = vperm.xlu0 %1668, %v1243
      %v1670 = vpop.permute.xlu0 %1669
      %v1672 = vmul.f32 %v1249, %v1670
      %v1673 = vadd.f32 %v1672, 0.0
      %1674 = vset.pattern.permute.xlu0 17
      %1675 = vperm.xlu0 %1674, %v1243
      %v1676 = vpop.permute.xlu0 %1675
      %v1678 = vmul.f32 %v1250, %v1676
      %v1679 = vadd.f32 %v1673, %v1678
      %1680 = vset.pattern.permute.xlu0 18
      %1681 = vperm.xlu0 %1680, %v1243
      %v1682 = vpop.permute.xlu0 %1681
      %v1684 = vmul.f32 %v1251, %v1682
      %v1685 = vadd.f32 %v1679, %v1684
      %1686 = vset.pattern.permute.xlu0 19
      %1687 = vperm.xlu0 %1686, %v1243
      %v1688 = vpop.permute.xlu0 %1687
      %v1690 = vmul.f32 %v1252, %v1688
      %v1691 = vadd.f32 %v1685, %v1690
      %1692 = vset.pattern.permute.xlu0 20
      %1693 = vperm.xlu0 %1692, %v1243
      %v1694 = vpop.permute.xlu0 %1693
      %v1696 = vmul.f32 %v1253, %v1694
      %v1697 = vadd.f32 %v1691, %v1696
      %1698 = vset.pattern.permute.xlu0 21
      %1699 = vperm.xlu0 %1698, %v1243
      %v1700 = vpop.permute.xlu0 %1699
      %v1702 = vmul.f32 %v1254, %v1700
      %v1703 = vadd.f32 %v1697, %v1702
      %1704 = vset.pattern.permute.xlu0 22
      %1705 = vperm.xlu0 %1704, %v1243
      %v1706 = vpop.permute.xlu0 %1705
      %v1708 = vmul.f32 %v1255, %v1706
      %v1709 = vadd.f32 %v1703, %v1708
      %1710 = vset.pattern.permute.xlu0 23
      %1711 = vperm.xlu0 %1710, %v1243
      %v1712 = vpop.permute.xlu0 %1711
      %v1714 = vmul.f32 %v1256, %v1712
      %v1715 = vadd.f32 %v1709, %v1714
      %1716 = vrot.lane.b32.xlu0 %v1143, 64
      %v1717 = vpop.permute.xlu0 %1716
      %1718 = vrot.lane.b32.xlu0 %v1257, 64
      %v1719 = vpop.permute.xlu0 %1718
      %v1721 = vsel %vm1308, %v1717, 0
      %v1724 = vsel %vm1308, %v1719, 0
      %1726 = vmatprep.subr.bf16.mxu0 0
      %1727 = vmatpush1.bf16.xpose.msra.mxu0 0
      %1728 = vmatprep.subr.bf16.mxu0 0
      %1729 = vmatpush1.bf16.xpose.msra.mxu0 0
      %1730 = vmatprep.subr.bf16.mxu0 0
      %1731 = vmatpush1.bf16.xpose.msra.mxu0 0
      %1732 = vmatprep.subr.bf16.mxu0 0
      %1733 = vmatpush1.bf16.xpose.msra.mxu0 0
      %1734 = vmatprep.subr.bf16.mxu0 0
      %1735 = vmatpush1.bf16.xpose.msra.mxu0 0
      %1736 = vmatprep.subr.bf16.mxu0 0
      %1737 = vmatpush1.bf16.xpose.msra.mxu0 0
      %1738 = vmatprep.subr.bf16.mxu0 0
      %1739 = vmatpush1.bf16.xpose.msra.mxu0 0
      %1740 = vmatprep.subr.bf16.mxu0 0
      %1741 = vmatpush1.bf16.xpose.msra.mxu0 %v1724
      %1742 = vmatprep.subr.bf16.mxu0 0
      %1743 = vmatpush2.bf16.xpose.msra.mxu0 0
      %1744 = vmatprep.subr.bf16.mxu0 0
      %1745 = vmatpush2.bf16.xpose.msra.mxu0 0
      %1746 = vmatprep.subr.bf16.mxu0 0
      %1747 = vmatpush2.bf16.xpose.msra.mxu0 0
      %1748 = vmatprep.subr.bf16.mxu0 0
      %1749 = vmatpush2.bf16.xpose.msra.mxu0 0
      %1750 = vmatprep.subr.bf16.mxu0 0
      %1751 = vmatpush2.bf16.xpose.msra.mxu0 0
      %1752 = vmatprep.subr.bf16.mxu0 0
      %1753 = vmatpush2.bf16.xpose.msra.mxu0 0
      %1754 = vmatprep.subr.bf16.mxu0 0
      %1755 = vmatpush2.bf16.xpose.msra.mxu0 0
      %1756 = vmatprep.subr.bf16.mxu0 0
      %1757 = vmatpush2.bf16.xpose.msra.mxu0 0
      %1758 = vmatprep.mubr.bf16.mxu0 0
      %1759 = vmatmul.mubr.bf16.gmra.mxu0 %v1721
      %v1760 = vpop.f32.mrf.mxu0
      %v1761 = vadd.f32 %v1715, %v1760
      %v1762 = vpop.f32.mrf.mxu0
      %v1763 = vpop.f32.mrf.mxu0
      %v1764 = vpop.f32.mrf.mxu0
      %1765 = vdwg.mxu0
      %v1766 = vmul.f32 %v1761, 0.17677669
      %v1767 = vadd.f32 %v1766, %v1248
      %v1768 = vsel %vm1357, %v1767, -inf
      %1769 = vmax.xlane.f32.xlu0 %v1768
      %v1770 = vpop.xlane.xlu0 %1769
      %v1771 = vsub.f32 %v1767, %v1770
      %v1772 = vmul.f32 %v1771, 1.442695
      %v1773 = vpow.pop %v1772
      %v1774 = vsel %vm1357, %v1773, 0.0
      %1775 = vadd.xlane.f32.xlu0 %v1774
      %v1776 = vpop.xlane.xlu0 %1775
      %v1777 = vrcp.pop %v1776
      %v1778 = vmul.f32 %v1773, %v1777
      %v1779 = vpack.c.bf16 %v1778, %v1778
      %1780 = vrot.lane.b32.xlu0 %v1258, 64
      %v1781 = vpop.permute.xlu0 %1780
      %v1783 = vsel %vm1370, %v1779, 0
      %v1786 = vand.u32 %v1781, %v1377
      %1788 = vmatprep.subr.bf16.mxu0 0
      %1789 = vmatpush1.bf16.msra.mxu0 0
      %1790 = vmatprep.subr.bf16.mxu0 0
      %1791 = vmatpush1.bf16.msra.mxu0 0
      %1792 = vmatprep.subr.bf16.mxu0 0
      %1793 = vmatpush1.bf16.msra.mxu0 0
      %1794 = vmatprep.subr.bf16.mxu0 0
      %1795 = vmatpush1.bf16.msra.mxu0 0
      %1796 = vmatprep.subr.bf16.mxu0 0
      %1797 = vmatpush1.bf16.msra.mxu0 0
      %1798 = vmatprep.subr.bf16.mxu0 0
      %1799 = vmatpush1.bf16.msra.mxu0 0
      %1800 = vmatprep.subr.bf16.mxu0 0
      %1801 = vmatpush1.bf16.msra.mxu0 0
      %1802 = vmatprep.subr.bf16.mxu0 0
      %1803 = vmatpush1.bf16.msra.mxu0 %v1786
      %1804 = vmatprep.subr.bf16.mxu0 0
      %1805 = vmatpush2.bf16.msra.mxu0 0
      %1806 = vmatprep.subr.bf16.mxu0 0
      %1807 = vmatpush2.bf16.msra.mxu0 0
      %1808 = vmatprep.subr.bf16.mxu0 0
      %1809 = vmatpush2.bf16.msra.mxu0 0
      %1810 = vmatprep.subr.bf16.mxu0 0
      %1811 = vmatpush2.bf16.msra.mxu0 0
      %1812 = vmatprep.subr.bf16.mxu0 0
      %1813 = vmatpush2.bf16.msra.mxu0 0
      %1814 = vmatprep.subr.bf16.mxu0 0
      %1815 = vmatpush2.bf16.msra.mxu0 0
      %1816 = vmatprep.subr.bf16.mxu0 0
      %1817 = vmatpush2.bf16.msra.mxu0 0
      %1818 = vmatprep.subr.bf16.mxu0 0
      %1819 = vmatpush2.bf16.msra.mxu0 0
      %1820 = vmatprep.mubr.bf16.mxu0 0
      %1821 = vmatmul.mubr.bf16.gmra.mxu0 %v1783
      %v1822 = vpop.f32.mrf.mxu0
      %v1823 = vadd.f32 0.0, %v1822
      %v1824 = vpop.f32.mrf.mxu0
      %v1825 = vpop.f32.mrf.mxu0
      %v1826 = vpop.f32.mrf.mxu0
      %1827 = vdwg.mxu0
      %v1828 = vmul.f32 %v1778, %v1249
      %v1829 = vsel %vm1357, %v1828, 0.0
      %1830 = vadd.xlane.f32.xlu0 %v1829
      %v1831 = vpop.xlane.xlu0 %1830
      %v1832 = vmul.f32 %v1778, %v1250
      %v1833 = vsel %vm1357, %v1832, 0.0
      %1834 = vadd.xlane.f32.xlu0 %v1833
      %v1835 = vpop.xlane.xlu0 %1834
      %v1836 = vmul.f32 %v1778, %v1251
      %v1837 = vsel %vm1357, %v1836, 0.0
      %1838 = vadd.xlane.f32.xlu0 %v1837
      %v1839 = vpop.xlane.xlu0 %1838
      %v1840 = vmul.f32 %v1778, %v1252
      %v1841 = vsel %vm1357, %v1840, 0.0
      %1842 = vadd.xlane.f32.xlu0 %v1841
      %v1843 = vpop.xlane.xlu0 %1842
      %v1844 = vmul.f32 %v1778, %v1253
      %v1845 = vsel %vm1357, %v1844, 0.0
      %1846 = vadd.xlane.f32.xlu0 %v1845
      %v1847 = vpop.xlane.xlu0 %1846
      %v1848 = vmul.f32 %v1778, %v1254
      %v1849 = vsel %vm1357, %v1848, 0.0
      %1850 = vadd.xlane.f32.xlu0 %v1849
      %v1851 = vpop.xlane.xlu0 %1850
      %v1852 = vmul.f32 %v1778, %v1255
      %v1853 = vsel %vm1357, %v1852, 0.0
      %1854 = vadd.xlane.f32.xlu0 %v1853
      %v1855 = vpop.xlane.xlu0 %1854
      %v1856 = vmul.f32 %v1778, %v1256
      %v1857 = vsel %vm1357, %v1856, 0.0
      %1858 = vadd.xlane.f32.xlu0 %v1857
      %v1859 = vpop.xlane.xlu0 %1858
      %v1860 = vsel %vm1453, %v1831, %v1835
      %v1861 = vsel %vm1455, %v1860, %v1839
      %v1862 = vsel %vm1457, %v1861, %v1843
      %v1863 = vsel %vm1459, %v1862, %v1847
      %v1864 = vsel %vm1370, %v1863, %v1851
      %v1865 = vsel %vm1462, %v1864, %v1855
      %v1866 = vsel %vm1464, %v1865, %v1859
      %1867 = vset.pattern.permute.xlu0 24
      %1868 = vperm.xlu0 %1867, %v1243
      %v1869 = vpop.permute.xlu0 %1868
      %v1871 = vmul.f32 %v1249, %v1869
      %v1872 = vadd.f32 %v1871, 0.0
      %1873 = vset.pattern.permute.xlu0 25
      %1874 = vperm.xlu0 %1873, %v1243
      %v1875 = vpop.permute.xlu0 %1874
      %v1877 = vmul.f32 %v1250, %v1875
      %v1878 = vadd.f32 %v1872, %v1877
      %1879 = vset.pattern.permute.xlu0 26
      %1880 = vperm.xlu0 %1879, %v1243
      %v1881 = vpop.permute.xlu0 %1880
      %v1883 = vmul.f32 %v1251, %v1881
      %v1884 = vadd.f32 %v1878, %v1883
      %1885 = vset.pattern.permute.xlu0 27
      %1886 = vperm.xlu0 %1885, %v1243
      %v1887 = vpop.permute.xlu0 %1886
      %v1889 = vmul.f32 %v1252, %v1887
      %v1890 = vadd.f32 %v1884, %v1889
      %1891 = vset.pattern.permute.xlu0 28
      %1892 = vperm.xlu0 %1891, %v1243
      %v1893 = vpop.permute.xlu0 %1892
      %v1895 = vmul.f32 %v1253, %v1893
      %v1896 = vadd.f32 %v1890, %v1895
      %1897 = vset.pattern.permute.xlu0 29
      %1898 = vperm.xlu0 %1897, %v1243
      %v1899 = vpop.permute.xlu0 %1898
      %v1901 = vmul.f32 %v1254, %v1899
      %v1902 = vadd.f32 %v1896, %v1901
      %1903 = vset.pattern.permute.xlu0 30
      %1904 = vperm.xlu0 %1903, %v1243
      %v1905 = vpop.permute.xlu0 %1904
      %v1907 = vmul.f32 %v1255, %v1905
      %v1908 = vadd.f32 %v1902, %v1907
      %1909 = vset.pattern.permute.xlu0 31
      %1910 = vperm.xlu0 %1909, %v1243
      %v1911 = vpop.permute.xlu0 %1910
      %v1913 = vmul.f32 %v1256, %v1911
      %v1914 = vadd.f32 %v1908, %v1913
      %1915 = vrot.lane.b32.xlu0 %v1143, 32
      %v1916 = vpop.permute.xlu0 %1915
      %1917 = vrot.lane.b32.xlu0 %v1257, 32
      %v1918 = vpop.permute.xlu0 %1917
      %v1920 = vsel %vm1308, %v1916, 0
      %v1923 = vsel %vm1308, %v1918, 0
      %1925 = vmatprep.subr.bf16.mxu0 0
      %1926 = vmatpush1.bf16.xpose.msra.mxu0 0
      %1927 = vmatprep.subr.bf16.mxu0 0
      %1928 = vmatpush1.bf16.xpose.msra.mxu0 0
      %1929 = vmatprep.subr.bf16.mxu0 0
      %1930 = vmatpush1.bf16.xpose.msra.mxu0 0
      %1931 = vmatprep.subr.bf16.mxu0 0
      %1932 = vmatpush1.bf16.xpose.msra.mxu0 0
      %1933 = vmatprep.subr.bf16.mxu0 0
      %1934 = vmatpush1.bf16.xpose.msra.mxu0 0
      %1935 = vmatprep.subr.bf16.mxu0 0
      %1936 = vmatpush1.bf16.xpose.msra.mxu0 0
      %1937 = vmatprep.subr.bf16.mxu0 0
      %1938 = vmatpush1.bf16.xpose.msra.mxu0 0
      %1939 = vmatprep.subr.bf16.mxu0 0
      %1940 = vmatpush1.bf16.xpose.msra.mxu0 %v1923
      %1941 = vmatprep.subr.bf16.mxu0 0
      %1942 = vmatpush2.bf16.xpose.msra.mxu0 0
      %1943 = vmatprep.subr.bf16.mxu0 0
      %1944 = vmatpush2.bf16.xpose.msra.mxu0 0
      %1945 = vmatprep.subr.bf16.mxu0 0
      %1946 = vmatpush2.bf16.xpose.msra.mxu0 0
      %1947 = vmatprep.subr.bf16.mxu0 0
      %1948 = vmatpush2.bf16.xpose.msra.mxu0 0
      %1949 = vmatprep.subr.bf16.mxu0 0
      %1950 = vmatpush2.bf16.xpose.msra.mxu0 0
      %1951 = vmatprep.subr.bf16.mxu0 0
      %1952 = vmatpush2.bf16.xpose.msra.mxu0 0
      %1953 = vmatprep.subr.bf16.mxu0 0
      %1954 = vmatpush2.bf16.xpose.msra.mxu0 0
      %1955 = vmatprep.subr.bf16.mxu0 0
      %1956 = vmatpush2.bf16.xpose.msra.mxu0 0
      %1957 = vmatprep.mubr.bf16.mxu0 0
      %1958 = vmatmul.mubr.bf16.gmra.mxu0 %v1920
      %v1959 = vpop.f32.mrf.mxu0
      %v1960 = vadd.f32 %v1914, %v1959
      %v1961 = vpop.f32.mrf.mxu0
      %v1962 = vpop.f32.mrf.mxu0
      %v1963 = vpop.f32.mrf.mxu0
      %1964 = vdwg.mxu0
      %v1965 = vmul.f32 %v1960, 0.17677669
      %v1966 = vadd.f32 %v1965, %v1248
      %v1967 = vsel %vm1357, %v1966, -inf
      %1968 = vmax.xlane.f32.xlu0 %v1967
      %v1969 = vpop.xlane.xlu0 %1968
      %v1970 = vsub.f32 %v1966, %v1969
      %v1971 = vmul.f32 %v1970, 1.442695
      %v1972 = vpow.pop %v1971
      %v1973 = vsel %vm1357, %v1972, 0.0
      %1974 = vadd.xlane.f32.xlu0 %v1973
      %v1975 = vpop.xlane.xlu0 %1974
      %v1976 = vrcp.pop %v1975
      %v1977 = vmul.f32 %v1972, %v1976
      %v1978 = vpack.c.bf16 %v1977, %v1977
      %1979 = vrot.lane.b32.xlu0 %v1258, 32
      %v1980 = vpop.permute.xlu0 %1979
      %v1982 = vsel %vm1370, %v1978, 0
      %v1985 = vand.u32 %v1980, %v1377
      %1987 = vmatprep.subr.bf16.mxu0 0
      %1988 = vmatpush1.bf16.msra.mxu0 0
      %1989 = vmatprep.subr.bf16.mxu0 0
      %1990 = vmatpush1.bf16.msra.mxu0 0
      %1991 = vmatprep.subr.bf16.mxu0 0
      %1992 = vmatpush1.bf16.msra.mxu0 0
      %1993 = vmatprep.subr.bf16.mxu0 0
      %1994 = vmatpush1.bf16.msra.mxu0 0
      %1995 = vmatprep.subr.bf16.mxu0 0
      %1996 = vmatpush1.bf16.msra.mxu0 0
      %1997 = vmatprep.subr.bf16.mxu0 0
      %1998 = vmatpush1.bf16.msra.mxu0 0
      %1999 = vmatprep.subr.bf16.mxu0 0
      %2000 = vmatpush1.bf16.msra.mxu0 0
      %2001 = vmatprep.subr.bf16.mxu0 0
      %2002 = vmatpush1.bf16.msra.mxu0 %v1985
      %2003 = vmatprep.subr.bf16.mxu0 0
      %2004 = vmatpush2.bf16.msra.mxu0 0
      %2005 = vmatprep.subr.bf16.mxu0 0
      %2006 = vmatpush2.bf16.msra.mxu0 0
      %2007 = vmatprep.subr.bf16.mxu0 0
      %2008 = vmatpush2.bf16.msra.mxu0 0
      %2009 = vmatprep.subr.bf16.mxu0 0
      %2010 = vmatpush2.bf16.msra.mxu0 0
      %2011 = vmatprep.subr.bf16.mxu0 0
      %2012 = vmatpush2.bf16.msra.mxu0 0
      %2013 = vmatprep.subr.bf16.mxu0 0
      %2014 = vmatpush2.bf16.msra.mxu0 0
      %2015 = vmatprep.subr.bf16.mxu0 0
      %2016 = vmatpush2.bf16.msra.mxu0 0
      %2017 = vmatprep.subr.bf16.mxu0 0
      %2018 = vmatpush2.bf16.msra.mxu0 0
      %2019 = vmatprep.mubr.bf16.mxu0 0
      %2020 = vmatmul.mubr.bf16.gmra.mxu0 %v1982
      %v2021 = vpop.f32.mrf.mxu0
      %v2022 = vadd.f32 0.0, %v2021
      %v2023 = vpop.f32.mrf.mxu0
      %v2024 = vpop.f32.mrf.mxu0
      %v2025 = vpop.f32.mrf.mxu0
      %2026 = vdwg.mxu0
      %v2027 = vmul.f32 %v1977, %v1249
      %v2028 = vsel %vm1357, %v2027, 0.0
      %2029 = vadd.xlane.f32.xlu0 %v2028
      %v2030 = vpop.xlane.xlu0 %2029
      %v2031 = vmul.f32 %v1977, %v1250
      %v2032 = vsel %vm1357, %v2031, 0.0
      %2033 = vadd.xlane.f32.xlu0 %v2032
      %v2034 = vpop.xlane.xlu0 %2033
      %v2035 = vmul.f32 %v1977, %v1251
      %v2036 = vsel %vm1357, %v2035, 0.0
      %2037 = vadd.xlane.f32.xlu0 %v2036
      %v2038 = vpop.xlane.xlu0 %2037
      %v2039 = vmul.f32 %v1977, %v1252
      %v2040 = vsel %vm1357, %v2039, 0.0
      %2041 = vadd.xlane.f32.xlu0 %v2040
      %v2042 = vpop.xlane.xlu0 %2041
      %v2043 = vmul.f32 %v1977, %v1253
      %v2044 = vsel %vm1357, %v2043, 0.0
      %2045 = vadd.xlane.f32.xlu0 %v2044
      %v2046 = vpop.xlane.xlu0 %2045
      %v2047 = vmul.f32 %v1977, %v1254
      %v2048 = vsel %vm1357, %v2047, 0.0
      %2049 = vadd.xlane.f32.xlu0 %v2048
      %v2050 = vpop.xlane.xlu0 %2049
      %v2051 = vmul.f32 %v1977, %v1255
      %v2052 = vsel %vm1357, %v2051, 0.0
      %2053 = vadd.xlane.f32.xlu0 %v2052
      %v2054 = vpop.xlane.xlu0 %2053
      %v2055 = vmul.f32 %v1977, %v1256
      %v2056 = vsel %vm1357, %v2055, 0.0
      %2057 = vadd.xlane.f32.xlu0 %v2056
      %v2058 = vpop.xlane.xlu0 %2057
      %v2059 = vsel %vm1453, %v2030, %v2034
      %v2060 = vsel %vm1455, %v2059, %v2038
      %v2061 = vsel %vm1457, %v2060, %v2042
      %v2062 = vsel %vm1459, %v2061, %v2046
      %v2063 = vsel %vm1370, %v2062, %v2050
      %v2064 = vsel %vm1462, %v2063, %v2054
      %v2065 = vsel %vm1464, %v2064, %v2058
      %2067 = vrot.lane.b32.xlu0 %v1624, 32
      %v2068 = vpop.permute.xlu0 %2067
      %2071 = vrot.lane.b32.xlu0 %v1823, 64
      %v2072 = vpop.permute.xlu0 %2071
      %2075 = vrot.lane.b32.xlu0 %v2022, 96
      %v2076 = vpop.permute.xlu0 %2075
      %v2078 = vsel %vm1308, %v1416, %v2068
      %vm2079 = vcmask 523264
      %v2080 = vsel %vm2079, %v2078, %v2072
      %vm2081 = vcmask 785408
      %v2082 = vsel %vm2081, %v2080, %v2076
      %2084 = vrot.lane.b32.xlu0 %v1667, 8
      %v2085 = vpop.permute.xlu0 %2084
      %2088 = vrot.lane.b32.xlu0 %v1866, 16
      %v2089 = vpop.permute.xlu0 %2088
      %2092 = vrot.lane.b32.xlu0 %v2065, 24
      %v2093 = vpop.permute.xlu0 %2092
      %vm2095 = vcmask 64512
      %v2096 = vsel %vm2095, %v1465, %v2085
      %vm2097 = vcmask 130048
      %v2098 = vsel %vm2097, %v2096, %v2089
      %vm2099 = vcmask 195584
      %v2100 = vsel %vm2099, %v2098, %v2093
      %v2101 = vpack.c.bf16 %v2100, %v2100
      %v2102 = vld [vmem:[%s16] sm:$0xf]
      %v2103 = vld [vmem:[%s16 + $0x4] sm:$0xf]
      %v2104 = vld [vmem:[%s16 + $0x8] sm:$0xf]
      %v2105 = vld [vmem:[%s16 + $0xc] sm:$0xf]
      %v2110 = vunpack.c.l.b16 %v2102
      %v2111 = vunpack.c.l.b16 %v2103
      %v2112 = vunpack.c.l.b16 %v2104
      %v2113 = vunpack.c.l.b16 %v2105
      %v2114 = vpack.c.b16 %v2111, %v2110
      %v2115 = vpack.c.b16 %v2113, %v2112
      %v2119 = vsel %vm1308, %v2101, 0
      %2121 = vmatprep.subr.bf16.mxu0 0
      %2122 = vmatpush1.bf16.msra.mxu0 0
      %2123 = vmatprep.subr.bf16.mxu0 0
      %2124 = vmatpush1.bf16.msra.mxu0 0
      %2125 = vmatprep.subr.bf16.mxu0 0
      %2126 = vmatpush1.bf16.msra.mxu0 0
      %2127 = vmatprep.subr.bf16.mxu0 0
      %2128 = vmatpush1.bf16.msra.mxu0 0
      %2129 = vmatprep.subr.bf16.mxu0 0
      %2130 = vmatpush1.bf16.msra.mxu0 0
      %2131 = vmatprep.subr.bf16.mxu0 0
      %2132 = vmatpush1.bf16.msra.mxu0 0
      %2133 = vmatprep.subr.bf16.mxu0 0
      %2134 = vmatpush1.bf16.msra.mxu0 %v2115
      %2135 = vmatprep.subr.bf16.mxu0 0
      %2136 = vmatpush1.bf16.msra.mxu0 %v2114
      %2137 = vmatprep.subr.bf16.mxu0 0
      %2138 = vmatpush2.bf16.msra.mxu0 0
      %2139 = vmatprep.subr.bf16.mxu0 0
      %2140 = vmatpush2.bf16.msra.mxu0 0
      %2141 = vmatprep.subr.bf16.mxu0 0
      %2142 = vmatpush2.bf16.msra.mxu0 0
      %2143 = vmatprep.subr.bf16.mxu0 0
      %2144 = vmatpush2.bf16.msra.mxu0 0
      %2145 = vmatprep.subr.bf16.mxu0 0
      %2146 = vmatpush2.bf16.msra.mxu0 0
      %2147 = vmatprep.subr.bf16.mxu0 0
      %2148 = vmatpush2.bf16.msra.mxu0 0
      %2149 = vmatprep.subr.bf16.mxu0 0
      %2150 = vmatpush2.bf16.msra.mxu0 0
      %2151 = vmatprep.subr.bf16.mxu0 0
      %2152 = vmatpush2.bf16.msra.mxu0 0
      %2153 = vmatprep.mubr.bf16.mxu0 0
      %2154 = vmatmul.mubr.bf16.gmra.mxu0 %v2119
      %v2155 = vpop.f32.mrf.mxu0
      %v2156 = vadd.f32 0.0, %v2155
      %v2157 = vpop.f32.mrf.mxu0
      %v2158 = vpop.f32.mrf.mxu0
      %v2159 = vpop.f32.mrf.mxu0
      %2160 = vdwg.mxu0
      %v2161 = vadd.f32 %v2082, %v2156
      %v2162 = vpack.c.bf16 %v2161, %v2161
      %v2163 = vld [vmem:[%s814] sm:$0xf]
      %v2164 = vld [vmem:[%s814 + $0x4] sm:$0xf]
      %v2165 = vld [vmem:[%s814 + $0x8] sm:$0xf]
      %v2166 = vld [vmem:[%s814 + $0xc] sm:$0xf]
      %v2167 = vld [vmem:[%s814 + $0x10] sm:$0xf]
      %v2168 = vld [vmem:[%s814 + $0x14] sm:$0xf]
      %v2169 = vld [vmem:[%s814 + $0x18] sm:$0xf]
      %v2170 = vld [vmem:[%s814 + $0x1c] sm:$0xf]
      %v2171 = vld [vmem:[%s814 + $0x20] sm:$0xf]
      %v2172 = vld [vmem:[%s814 + $0x24] sm:$0xf]
      %v2173 = vld [vmem:[%s814 + $0x28] sm:$0xf]
      %v2174 = vld [vmem:[%s814 + $0x2c] sm:$0xf]
      %v2175 = vld [vmem:[%s814 + $0x30] sm:$0xf]
      %v2176 = vld [vmem:[%s814 + $0x34] sm:$0xf]
      %v2177 = vld [vmem:[%s814 + $0x38] sm:$0xf]
      %v2178 = vld [vmem:[%s814 + $0x3c] sm:$0xf]
      %v2195 = vunpack.c.l.b16 %v2163
      %v2196 = vunpack.c.l.b16 %v2164
      %v2197 = vunpack.c.l.b16 %v2165
      %v2198 = vunpack.c.l.b16 %v2166
      %v2199 = vunpack.c.l.b16 %v2167
      %v2200 = vunpack.c.l.b16 %v2168
      %v2201 = vunpack.c.l.b16 %v2169
      %v2202 = vunpack.c.l.b16 %v2170
      %v2203 = vunpack.c.l.b16 %v2171
      %v2204 = vunpack.c.l.b16 %v2172
      %v2205 = vunpack.c.l.b16 %v2173
      %v2206 = vunpack.c.l.b16 %v2174
      %v2207 = vunpack.c.l.b16 %v2175
      %v2208 = vunpack.c.l.b16 %v2176
      %v2209 = vunpack.c.l.b16 %v2177
      %v2210 = vunpack.c.l.b16 %v2178
      %v2211 = vpack.c.b16 %v2196, %v2195
      %v2212 = vpack.c.b16 %v2198, %v2197
      %v2213 = vpack.c.b16 %v2200, %v2199
      %v2214 = vpack.c.b16 %v2202, %v2201
      %v2215 = vpack.c.b16 %v2204, %v2203
      %v2216 = vpack.c.b16 %v2206, %v2205
      %v2217 = vpack.c.b16 %v2208, %v2207
      %v2218 = vpack.c.b16 %v2210, %v2209
      %2227 = vmatprep.subr.bf16.mxu0 0
      %2228 = vmatpush1.bf16.msra.mxu0 %v2218
      %2229 = vmatprep.subr.bf16.mxu0 0
      %2230 = vmatpush1.bf16.msra.mxu0 %v2217
      %2231 = vmatprep.subr.bf16.mxu0 0
      %2232 = vmatpush1.bf16.msra.mxu0 %v2216
      %2233 = vmatprep.subr.bf16.mxu0 0
      %2234 = vmatpush1.bf16.msra.mxu0 %v2215
      %2235 = vmatprep.subr.bf16.mxu0 0
      %2236 = vmatpush1.bf16.msra.mxu0 %v2214
      %2237 = vmatprep.subr.bf16.mxu0 0
      %2238 = vmatpush1.bf16.msra.mxu0 %v2213
      %2239 = vmatprep.subr.bf16.mxu0 0
      %2240 = vmatpush1.bf16.msra.mxu0 %v2212
      %2241 = vmatprep.subr.bf16.mxu0 0
      %2242 = vmatpush1.bf16.msra.mxu0 %v2211
      %2243 = vmatprep.subr.bf16.mxu0 0
      %2244 = vmatpush2.bf16.msra.mxu0 0
      %2245 = vmatprep.subr.bf16.mxu0 0
      %2246 = vmatpush2.bf16.msra.mxu0 0
      %2247 = vmatprep.subr.bf16.mxu0 0
      %2248 = vmatpush2.bf16.msra.mxu0 0
      %2249 = vmatprep.subr.bf16.mxu0 0
      %2250 = vmatpush2.bf16.msra.mxu0 0
      %2251 = vmatprep.subr.bf16.mxu0 0
      %2252 = vmatpush2.bf16.msra.mxu0 0
      %2253 = vmatprep.subr.bf16.mxu0 0
      %2254 = vmatpush2.bf16.msra.mxu0 0
      %2255 = vmatprep.subr.bf16.mxu0 0
      %2256 = vmatpush2.bf16.msra.mxu0 0
      %2257 = vmatprep.subr.bf16.mxu0 0
      %2258 = vmatpush2.bf16.msra.mxu0 0
      %2259 = vmatprep.mubr.bf16.mxu0 0
      %2260 = vmatmul.mubr.bf16.gmra.mxu0 %v2162
      %v2261 = vpop.f32.mrf.mxu0
      %v2262 = vadd.f32 0.0, %v2261
      %v2263 = vpop.f32.mrf.mxu0
      %v2264 = vpop.f32.mrf.mxu0
      %v2265 = vpop.f32.mrf.mxu0
      %2266 = vdwg.mxu0
      %v2267 = vadd.f32 %v852, %v2262
      %v2268 = vld [vmem:[%s817] sm:$0x1]
      %v2270 = vlaneseq
      %v2271 = vshrl.u32 %v2270, 7
      %v2272 = vsub.s32 0, %v2271
      %v2273 = vrot.slane %v2268, %v2272
      %v2275 = vadd.f32 %v2267, %v2273
      %v2276 = vsel %vm853, %v2275, 0.0
      %2277 = vadd.xlane.f32.xlu0 %v2276
      %v2278 = vpop.xlane.xlu0 %2277
      %v2279 = vmul.f32 %v2278, %v857
      %v2280 = vsub.f32 %v2275, %v2279
      %v2281 = vmul.f32 %v2280, %v2280
      %v2282 = vsel %vm853, %v2281, 0.0
      %2283 = vadd.xlane.f32.xlu0 %v2282
      %v2284 = vpop.xlane.xlu0 %2283
      %v2285 = vmul.f32 %v2284, %v857
      %v2286 = vadd.f32 %v2285, 1e-12
      %v2287 = vrsqrt.pop %v2286
      %v2288 = vmul.f32 %v2280, %v2287
      %v2289 = vld [vmem:[%s820] sm:$0x1]
      %v2291 = vlaneseq
      %v2292 = vshrl.u32 %v2291, 7
      %v2293 = vsub.s32 0, %v2292
      %v2294 = vrot.slane %v2289, %v2293
      %v2296 = vmul.f32 %v2288, %v2294
      %v2297 = vld [vmem:[%s823] sm:$0x1]
      %v2299 = vlaneseq
      %v2300 = vshrl.u32 %v2299, 7
      %v2301 = vsub.s32 0, %v2300
      %v2302 = vrot.slane %v2297, %v2301
      %v2304 = vadd.f32 %v2296, %v2302
      %v2305 = vpack.c.bf16 %v2304, %v2304
      %v2306 = vld [vmem:[%s828] sm:$0xff]
      %v2307 = vld [vmem:[%s828 + $0x8] sm:$0xff]
      %v2308 = vld [vmem:[%s828 + $0x10] sm:$0xff]
      %v2309 = vld [vmem:[%s828 + $0x18] sm:$0xff]
      %v2310 = vld [vmem:[%s828 + $0x20] sm:$0xff]
      %v2311 = vld [vmem:[%s828 + $0x28] sm:$0xff]
      %v2312 = vld [vmem:[%s828 + $0x30] sm:$0xff]
      %v2313 = vld [vmem:[%s828 + $0x38] sm:$0xff]
      %v2314 = vld [vmem:[%s828 + $0x40] sm:$0xff]
      %v2315 = vld [vmem:[%s828 + $0x48] sm:$0xff]
      %v2316 = vld [vmem:[%s828 + $0x50] sm:$0xff]
      %v2317 = vld [vmem:[%s828 + $0x58] sm:$0xff]
      %v2318 = vld [vmem:[%s828 + $0x60] sm:$0xff]
      %v2319 = vld [vmem:[%s828 + $0x68] sm:$0xff]
      %v2320 = vld [vmem:[%s828 + $0x70] sm:$0xff]
      %v2321 = vld [vmem:[%s828 + $0x78] sm:$0xff]
      %v2322 = vld [vmem:[%s832] sm:$0x3]
      %v2324 = vlaneseq
      %v2325 = vshrl.u32 %v2324, 7
      %v2326 = vsub.s32 0, %v2325
      %v2327 = vrot.slane %v2322, %v2326
      %v2328 = vlaneseq
      %v2329 = vshrl.u32 %v2328, 7
      %v2330 = vsub.s32 1, %v2329
      %v2331 = vrot.slane %v2322, %v2330
      %v2350 = vunpack.c.l.b16 %v2306
      %v2351 = vunpack.c.h.b16 %v2306
      %v2352 = vunpack.c.l.b16 %v2307
      %v2353 = vunpack.c.h.b16 %v2307
      %v2354 = vunpack.c.l.b16 %v2308
      %v2355 = vunpack.c.h.b16 %v2308
      %v2356 = vunpack.c.l.b16 %v2309
      %v2357 = vunpack.c.h.b16 %v2309
      %v2358 = vunpack.c.l.b16 %v2310
      %v2359 = vunpack.c.h.b16 %v2310
      %v2360 = vunpack.c.l.b16 %v2311
      %v2361 = vunpack.c.h.b16 %v2311
      %v2362 = vunpack.c.l.b16 %v2312
      %v2363 = vunpack.c.h.b16 %v2312
      %v2364 = vunpack.c.l.b16 %v2313
      %v2365 = vunpack.c.h.b16 %v2313
      %v2366 = vunpack.c.l.b16 %v2314
      %v2367 = vunpack.c.h.b16 %v2314
      %v2368 = vunpack.c.l.b16 %v2315
      %v2369 = vunpack.c.h.b16 %v2315
      %v2370 = vunpack.c.l.b16 %v2316
      %v2371 = vunpack.c.h.b16 %v2316
      %v2372 = vunpack.c.l.b16 %v2317
      %v2373 = vunpack.c.h.b16 %v2317
      %v2374 = vunpack.c.l.b16 %v2318
      %v2375 = vunpack.c.h.b16 %v2318
      %v2376 = vunpack.c.l.b16 %v2319
      %v2377 = vunpack.c.h.b16 %v2319
      %v2378 = vunpack.c.l.b16 %v2320
      %v2379 = vunpack.c.h.b16 %v2320
      %v2380 = vunpack.c.l.b16 %v2321
      %v2381 = vunpack.c.h.b16 %v2321
      %v2382 = vpack.c.b16 %v2352, %v2350
      %v2383 = vpack.c.b16 %v2353, %v2351
      %v2384 = vpack.c.b16 %v2356, %v2354
      %v2385 = vpack.c.b16 %v2357, %v2355
      %v2386 = vpack.c.b16 %v2360, %v2358
      %v2387 = vpack.c.b16 %v2361, %v2359
      %v2388 = vpack.c.b16 %v2364, %v2362
      %v2389 = vpack.c.b16 %v2365, %v2363
      %v2390 = vpack.c.b16 %v2368, %v2366
      %v2391 = vpack.c.b16 %v2369, %v2367
      %v2392 = vpack.c.b16 %v2372, %v2370
      %v2393 = vpack.c.b16 %v2373, %v2371
      %v2394 = vpack.c.b16 %v2376, %v2374
      %v2395 = vpack.c.b16 %v2377, %v2375
      %v2396 = vpack.c.b16 %v2380, %v2378
      %v2397 = vpack.c.b16 %v2381, %v2379
      %2414 = vmatprep.subr.bf16.mxu0 %v2397
      %2415 = vmatpush1.bf16.msra.mxu0 %v2396
      %2416 = vmatprep.subr.bf16.mxu0 %v2395
      %2417 = vmatpush1.bf16.msra.mxu0 %v2394
      %2418 = vmatprep.subr.bf16.mxu0 %v2393
      %2419 = vmatpush1.bf16.msra.mxu0 %v2392
      %2420 = vmatprep.subr.bf16.mxu0 %v2391
      %2421 = vmatpush1.bf16.msra.mxu0 %v2390
      %2422 = vmatprep.subr.bf16.mxu0 %v2389
      %2423 = vmatpush1.bf16.msra.mxu0 %v2388
      %2424 = vmatprep.subr.bf16.mxu0 %v2387
      %2425 = vmatpush1.bf16.msra.mxu0 %v2386
      %2426 = vmatprep.subr.bf16.mxu0 %v2385
      %2427 = vmatpush1.bf16.msra.mxu0 %v2384
      %2428 = vmatprep.subr.bf16.mxu0 %v2383
      %2429 = vmatpush1.bf16.msra.mxu0 %v2382
      %2430 = vmatprep.subr.bf16.mxu0 0
      %2431 = vmatpush2.bf16.msra.mxu0 0
      %2432 = vmatprep.subr.bf16.mxu0 0
      %2433 = vmatpush2.bf16.msra.mxu0 0
      %2434 = vmatprep.subr.bf16.mxu0 0
      %2435 = vmatpush2.bf16.msra.mxu0 0
      %2436 = vmatprep.subr.bf16.mxu0 0
      %2437 = vmatpush2.bf16.msra.mxu0 0
      %2438 = vmatprep.subr.bf16.mxu0 0
      %2439 = vmatpush2.bf16.msra.mxu0 0
      %2440 = vmatprep.subr.bf16.mxu0 0
      %2441 = vmatpush2.bf16.msra.mxu0 0
      %2442 = vmatprep.subr.bf16.mxu0 0
      %2443 = vmatpush2.bf16.msra.mxu0 0
      %2444 = vmatprep.subr.bf16.mxu0 0
      %2445 = vmatpush2.bf16.msra.mxu0 0
      %2446 = vmatprep.mubr.bf16.mxu0 0
      %2447 = vmatmul.mubr.bf16.gmra.mxu0 %v2305
      %v2448 = vpop.f32.mrf.mxu0
      %v2449 = vadd.f32 %v2327, %v2448
      %v2450 = vpop.f32.mrf.mxu0
      %v2451 = vadd.f32 %v2331, %v2450
      %v2452 = vpop.f32.mrf.mxu0
      %v2453 = vpop.f32.mrf.mxu0
      %2454 = vdwg.mxu0
      %v2455 = vmul.f32 %v2449, 0.5
      %v2456 = vmul.f32 %v2451, 0.5
      %v2457 = vmul.f32 %v2449, 0.044715
      %v2458 = vmul.f32 %v2451, 0.044715
      %v2459 = vmul.f32 %v2457, %v2449
      %v2460 = vmul.f32 %v2458, %v2451
      %v2461 = vmul.f32 %v2459, %v2449
      %v2462 = vmul.f32 %v2460, %v2451
      %v2463 = vadd.f32 %v2449, %v2461
      %v2464 = vadd.f32 %v2451, %v2462
      %v2465 = vmul.f32 %v2463, 0.7978846
      %v2466 = vmul.f32 %v2464, 0.7978846
      %v2467 = vtanh.pop %v2465
      %v2468 = vtanh.pop %v2466
      %v2469 = vadd.f32 %v2467, 1.0
      %v2470 = vadd.f32 %v2468, 1.0
      %v2471 = vmul.f32 %v2455, %v2469
      %v2472 = vmul.f32 %v2456, %v2470
      %v2473 = vpack.c.bf16 %v2471, %v2471
      %v2474 = vpack.c.bf16 %v2472, %v2472
      %v2475 = vld [vmem:[%s837] sm:$0xf]
      %v2476 = vld [vmem:[%s837 + $0x4] sm:$0xf]
      %v2477 = vld [vmem:[%s837 + $0x8] sm:$0xf]
      %v2478 = vld [vmem:[%s837 + $0xc] sm:$0xf]
      %v2479 = vld [vmem:[%s837 + $0x10] sm:$0xf]
      %v2480 = vld [vmem:[%s837 + $0x14] sm:$0xf]
      %v2481 = vld [vmem:[%s837 + $0x18] sm:$0xf]
      %v2482 = vld [vmem:[%s837 + $0x1c] sm:$0xf]
      %v2483 = vld [vmem:[%s837 + $0x20] sm:$0xf]
      %v2484 = vld [vmem:[%s837 + $0x24] sm:$0xf]
      %v2485 = vld [vmem:[%s837 + $0x28] sm:$0xf]
      %v2486 = vld [vmem:[%s837 + $0x2c] sm:$0xf]
      %v2487 = vld [vmem:[%s837 + $0x30] sm:$0xf]
      %v2488 = vld [vmem:[%s837 + $0x34] sm:$0xf]
      %v2489 = vld [vmem:[%s837 + $0x38] sm:$0xf]
      %v2490 = vld [vmem:[%s837 + $0x3c] sm:$0xf]
      %v2491 = vld [vmem:[%s837 + $0x40] sm:$0xf]
      %v2492 = vld [vmem:[%s837 + $0x44] sm:$0xf]
      %v2493 = vld [vmem:[%s837 + $0x48] sm:$0xf]
      %v2494 = vld [vmem:[%s837 + $0x4c] sm:$0xf]
      %v2495 = vld [vmem:[%s837 + $0x50] sm:$0xf]
      %v2496 = vld [vmem:[%s837 + $0x54] sm:$0xf]
      %v2497 = vld [vmem:[%s837 + $0x58] sm:$0xf]
      %v2498 = vld [vmem:[%s837 + $0x5c] sm:$0xf]
      %v2499 = vld [vmem:[%s837 + $0x60] sm:$0xf]
      %v2500 = vld [vmem:[%s837 + $0x64] sm:$0xf]
      %v2501 = vld [vmem:[%s837 + $0x68] sm:$0xf]
      %v2502 = vld [vmem:[%s837 + $0x6c] sm:$0xf]
      %v2503 = vld [vmem:[%s837 + $0x70] sm:$0xf]
      %v2504 = vld [vmem:[%s837 + $0x74] sm:$0xf]
      %v2505 = vld [vmem:[%s837 + $0x78] sm:$0xf]
      %v2506 = vld [vmem:[%s837 + $0x7c] sm:$0xf]
      %v2539 = vunpack.c.l.b16 %v2475
      %v2540 = vunpack.c.l.b16 %v2476
      %v2541 = vunpack.c.l.b16 %v2477
      %v2542 = vunpack.c.l.b16 %v2478
      %v2543 = vunpack.c.l.b16 %v2479
      %v2544 = vunpack.c.l.b16 %v2480
      %v2545 = vunpack.c.l.b16 %v2481
      %v2546 = vunpack.c.l.b16 %v2482
      %v2547 = vunpack.c.l.b16 %v2483
      %v2548 = vunpack.c.l.b16 %v2484
      %v2549 = vunpack.c.l.b16 %v2485
      %v2550 = vunpack.c.l.b16 %v2486
      %v2551 = vunpack.c.l.b16 %v2487
      %v2552 = vunpack.c.l.b16 %v2488
      %v2553 = vunpack.c.l.b16 %v2489
      %v2554 = vunpack.c.l.b16 %v2490
      %v2555 = vunpack.c.l.b16 %v2491
      %v2556 = vunpack.c.l.b16 %v2492
      %v2557 = vunpack.c.l.b16 %v2493
      %v2558 = vunpack.c.l.b16 %v2494
      %v2559 = vunpack.c.l.b16 %v2495
      %v2560 = vunpack.c.l.b16 %v2496
      %v2561 = vunpack.c.l.b16 %v2497
      %v2562 = vunpack.c.l.b16 %v2498
      %v2563 = vunpack.c.l.b16 %v2499
      %v2564 = vunpack.c.l.b16 %v2500
      %v2565 = vunpack.c.l.b16 %v2501
      %v2566 = vunpack.c.l.b16 %v2502
      %v2567 = vunpack.c.l.b16 %v2503
      %v2568 = vunpack.c.l.b16 %v2504
      %v2569 = vunpack.c.l.b16 %v2505
      %v2570 = vunpack.c.l.b16 %v2506
      %v2571 = vpack.c.b16 %v2540, %v2539
      %v2572 = vpack.c.b16 %v2542, %v2541
      %v2573 = vpack.c.b16 %v2544, %v2543
      %v2574 = vpack.c.b16 %v2546, %v2545
      %v2575 = vpack.c.b16 %v2548, %v2547
      %v2576 = vpack.c.b16 %v2550, %v2549
      %v2577 = vpack.c.b16 %v2552, %v2551
      %v2578 = vpack.c.b16 %v2554, %v2553
      %v2579 = vpack.c.b16 %v2556, %v2555
      %v2580 = vpack.c.b16 %v2558, %v2557
      %v2581 = vpack.c.b16 %v2560, %v2559
      %v2582 = vpack.c.b16 %v2562, %v2561
      %v2583 = vpack.c.b16 %v2564, %v2563
      %v2584 = vpack.c.b16 %v2566, %v2565
      %v2585 = vpack.c.b16 %v2568, %v2567
      %v2586 = vpack.c.b16 %v2570, %v2569
      %2603 = vmatprep.subr.bf16.mxu0 0
      %2604 = vmatpush1.bf16.msra.mxu0 %v2578
      %2605 = vmatprep.subr.bf16.mxu0 0
      %2606 = vmatpush1.bf16.msra.mxu0 %v2577
      %2607 = vmatprep.subr.bf16.mxu0 0
      %2608 = vmatpush1.bf16.msra.mxu0 %v2576
      %2609 = vmatprep.subr.bf16.mxu0 0
      %2610 = vmatpush1.bf16.msra.mxu0 %v2575
      %2611 = vmatprep.subr.bf16.mxu0 0
      %2612 = vmatpush1.bf16.msra.mxu0 %v2574
      %2613 = vmatprep.subr.bf16.mxu0 0
      %2614 = vmatpush1.bf16.msra.mxu0 %v2573
      %2615 = vmatprep.subr.bf16.mxu0 0
      %2616 = vmatpush1.bf16.msra.mxu0 %v2572
      %2617 = vmatprep.subr.bf16.mxu0 0
      %2618 = vmatpush1.bf16.msra.mxu0 %v2571
      %2619 = vmatprep.subr.bf16.mxu0 0
      %2620 = vmatpush2.bf16.msra.mxu0 %v2586
      %2621 = vmatprep.subr.bf16.mxu0 0
      %2622 = vmatpush2.bf16.msra.mxu0 %v2585
      %2623 = vmatprep.subr.bf16.mxu0 0
      %2624 = vmatpush2.bf16.msra.mxu0 %v2584
      %2625 = vmatprep.subr.bf16.mxu0 0
      %2626 = vmatpush2.bf16.msra.mxu0 %v2583
      %2627 = vmatprep.subr.bf16.mxu0 0
      %2628 = vmatpush2.bf16.msra.mxu0 %v2582
      %2629 = vmatprep.subr.bf16.mxu0 0
      %2630 = vmatpush2.bf16.msra.mxu0 %v2581
      %2631 = vmatprep.subr.bf16.mxu0 0
      %2632 = vmatpush2.bf16.msra.mxu0 %v2580
      %2633 = vmatprep.subr.bf16.mxu0 0
      %2634 = vmatpush2.bf16.msra.mxu0 %v2579
      %2635 = vmatprep.mubr.bf16.mxu0 %v2474
      %2636 = vmatmul.mubr.bf16.gmra.mxu0 %v2473
      %v2637 = vpop.f32.mrf.mxu0
      %v2638 = vadd.f32 0.0, %v2637
      %v2639 = vpop.f32.mrf.mxu0
      %v2640 = vpop.f32.mrf.mxu0
      %v2641 = vpop.f32.mrf.mxu0
      %2642 = vdwg.mxu0
      %v2643 = vadd.f32 %v2275, %v2638
      %v2644 = vld [vmem:[%s840] sm:$0x1]
      %v2646 = vlaneseq
      %v2647 = vshrl.u32 %v2646, 7
      %v2648 = vsub.s32 0, %v2647
      %v2649 = vrot.slane %v2644, %v2648
      %v2651 = vadd.f32 %v2643, %v2649
      %2652 = vst [vmem:[#allocation2] sm:$0x1f] %v2651
      %p2653 = scmp.eq.s32.totalorder %s35, 1
      // Predicated region
      $region101: #{fwd.8} parent=95 // pred_check
        %p2654 = pneg %p2653
      $region102: #{fwd.8} parent=95 // pred_check_branch
        %2656 = sbr.rel (%p2654) target = $region104
      $region103: #{fwd.8} parent=95 // pred_region
        %v2657 = vsel %vm853, %v2651, 0.0
        %2658 = vadd.xlane.f32.xlu0 %v2657
        %v2659 = vpop.xlane.xlu0 %2658
        %v2660 = vmul.f32 %v2659, %v857
        %v2661 = vsub.f32 %v2651, %v2660
        %v2662 = vmul.f32 %v2661, %v2661
        %v2663 = vsel %vm853, %v2662, 0.0
        %2664 = vadd.xlane.f32.xlu0 %v2663
        %v2665 = vpop.xlane.xlu0 %2664
        %v2666 = vmul.f32 %v2665, %v857
        %v2667 = vadd.f32 %v2666, 1e-12
        %v2668 = vrsqrt.pop %v2667
        %v2669 = vmul.f32 %v2661, %v2668
        %v2670 = vld [vmem:[%s17] sm:$0x1]
        %v2672 = vlaneseq
        %v2673 = vshrl.u32 %v2672, 7
        %v2674 = vsub.s32 0, %v2673
        %v2675 = vrot.slane %v2670, %v2674
        %v2677 = vmul.f32 %v2669, %v2675
        %v2678 = vld [vmem:[%s18] sm:$0x1]
        %v2680 = vlaneseq
        %v2681 = vshrl.u32 %v2680, 7
        %v2682 = vsub.s32 0, %v2681
        %v2683 = vrot.slane %v2678, %v2682
        %v2685 = vadd.f32 %v2677, %v2683
        %2686 = vst [vmem:[%s844] sm:$0x1f] %v2685
      $region104: #{fwd.8} parent=95 // pred_fallthru
        _
      %p2687 = scmp.lt.s32.totalorder %s34, 1
      %s2688 = scalar_select %p2687, %s34, 1
      %s2689 = smul.addr %s2688, 8
      %s2690 = scalar_lea.vmem %s19, %s2689
      // Predicated region
      $region105: #{fwd.8} parent=95 // pred_check
        %p2691 = pneg %p534
      $region106: #{fwd.8} parent=95 // pred_check_branch
        %2693 = sbr.rel (%p2691) target = $region108
      $region107: #{fwd.8} parent=95 // pred_region
        _
      $region108: #{fwd.8} parent=95 // pred_fallthru
        _
    $region96: #{fwd.8} parent=5 // pred_fallthru
      _
    %p2694 = scmp.le.s32.totalorder 2, %s25
    // Predicated region
    $region109: #{fwd.8} parent=5 // pred_check
      %p2695 = pneg %p2694
    $region110: #{fwd.8} parent=5 // pred_check_branch
      %2697 = sbr.rel (%p2695) target = $region112
    $region111: #{fwd.8} parent=5 // pred_region
      %s2698 = ssub.s32 %s25, 2
      // Predicated region
      $region113: #{fwd.8} parent=111 // pred_check
        %p2699 = pneg %p540
      $region114: #{fwd.8} parent=111 // pred_check_branch
        %2701 = sbr.rel (%p2699) target = $region116
      $region115: #{fwd.8} parent=111 // pred_region
        %p2702 = scmp.lt.s32.totalorder %s36, 1
        %s2703 = scalar_select %p2702, %s36, 1
        %s2704 = smul.addr %s2703, 8
        %s2705 = scalar_lea.vmem %s19, %s2704
      $region116: #{fwd.8} parent=111 // pred_fallthru
        _
    $region112: #{fwd.8} parent=5 // pred_fallthru
      _
  $region6: #{fwd.8} parent=0 // loop_footer
    %s29 = sadd.s32 1, %s25
  $region7: #{fwd.8} parent=0 // loop_footer_branch
    %24 = sbr.rel target = $region3
  $region8: #{fwd.8} parent=0 // loop_exit
    _

</llo_original>
